<compile_context>
chip_gen: v7x
topology: tpu7x:2x2x1
jax: 0.10.0
libtpu: 0.0.40
codegen_flags: <defaults>
</compile_context>

<pallas_src>
import functools

import jax
import jax.numpy as jnp
import numpy as np
from jax.experimental import pallas as pl
from jax.experimental.pallas import tpu as pltpu

C_IMG = 3          # image channels
C_OUT = 3          # lama output channels
KH = KW = 3        # synthetic-lama conv kernel size
C_IN = C_IMG + 1   # image ++ normalized mask
BASE = 7           # top-halo row index in the padded band scratch; keeps the
                   # TH-row interior DMA destination 8-sublane aligned
SR = 8             # strip rows: (8, W) f32 accumulators stay vreg-sized


def coreml_lama_kernel(w_ref, b_ref, img_hbm, msk_hbm, out_ref,
                       pimg, pmsk, sem, *, H, TH):
    # w_ref:   (C_OUT*C_IN*KH*KW,) SMEM  flattened conv weights (OIHW order)
    # b_ref:   (C_OUT,)            SMEM  conv bias
    # img_hbm: (N, C_IMG, H, W)    HBM   un-padded image (pl.ANY, streamed)
    # msk_hbm: (N, 1,     H, W)    HBM   raw mask (pl.ANY, streamed)
    # out_ref: (1, C_OUT, TH, W)   VMEM  clamped output row-band
    # pimg:    (C_IMG, TH+9, W)    VMEM  row-padded image band
    # pmsk:    (TH+9, W)           VMEM  row-padded mask band (normalized in place)
    # sem:     (6,)                DMA semaphores
    n = pl.program_id(0)
    h = pl.program_id(1)
    nb = pl.num_programs(1)
    W = out_ref.shape[-1]

    row0 = pl.multiple_of(h * TH, TH)          # first output row of this band
    r_top = jnp.maximum(row0 - 1, 0)           # clamped halo source rows
    r_bot = jnp.minimum(row0 + TH, H - 1)

    # ----- band streaming: DMA a (TH+2)-row slab straight from HBM into the
    # padded VMEM scratch (TH interior rows + 2 clamped halo rows).  No full
    # image residency and no vector ld/st fill loop.
    copies = [
        pltpu.make_async_copy(img_hbm.at[n, :, pl.ds(row0, TH), :],
                              pimg.at[:, BASE + 1:BASE + 1 + TH, :], sem.at[0]),
        pltpu.make_async_copy(img_hbm.at[n, :, pl.ds(r_top, 1), :],
                              pimg.at[:, BASE:BASE + 1, :], sem.at[1]),
        pltpu.make_async_copy(img_hbm.at[n, :, pl.ds(r_bot, 1), :],
                              pimg.at[:, BASE + 1 + TH:BASE + 2 + TH, :], sem.at[2]),
        pltpu.make_async_copy(msk_hbm.at[n, 0, pl.ds(row0, TH), :],
                              pmsk.at[BASE + 1:BASE + 1 + TH, :], sem.at[3]),
        pltpu.make_async_copy(msk_hbm.at[n, 0, pl.ds(r_top, 1), :],
                              pmsk.at[BASE:BASE + 1, :], sem.at[4]),
        pltpu.make_async_copy(msk_hbm.at[n, 0, pl.ds(r_bot, 1), :],
                              pmsk.at[BASE + 1 + TH:BASE + 2 + TH, :], sem.at[5]),
    ]
    for cp in copies:
        cp.start()
    for cp in copies:
        cp.wait()

    # ----- fused zero padding: at the image top/bottom the clamped halo rows
    # are overwritten with zeros (matches the reference conv's SAME padding).
    @pl.when(h == 0)
    def _():
        pimg[:, BASE:BASE + 1, :] = jnp.zeros((C_IMG, 1, W), jnp.float32)
        pmsk[BASE:BASE + 1, :] = jnp.zeros((1, W), jnp.float32)

    @pl.when(h == nb - 1)
    def _():
        pimg[:, BASE + 1 + TH:BASE + 2 + TH, :] = jnp.zeros((C_IMG, 1, W), jnp.float32)
        pmsk[BASE + 1 + TH:BASE + 2 + TH, :] = jnp.zeros((1, W), jnp.float32)

    # ----- mask normalization ((mask > 0) * 1) in place on the landed slab.
    pmsk[...] = (pmsk[...] > 0).astype(jnp.float32)

    # ----- 3x3 conv (synthetic lama) + sigmoid*255 + clamp, strip-mined over
    # rows so the 9 live accumulators stay a few vregs each.  All taps are
    # plain ref loads; column (x +- 1) taps are applied to the summed partials.
    r0 = 0
    while r0 < TH:
        sz = min(SR, TH - r0)
        zcol = jnp.zeros((sz, 1), jnp.float32)
        accl = [jnp.zeros((sz, W), jnp.float32) for _ in range(C_OUT)]
        accc = [jnp.full((sz, W), b_ref[co], jnp.float32) for co in range(C_OUT)]
        accr = [jnp.zeros((sz, W), jnp.float32) for _ in range(C_OUT)]
        for ci in range(C_IN):
            for kh in range(KH):
                rs = BASE + r0 + kh
                if ci < C_IMG:
                    row = pimg[ci, rs:rs + sz, :]
                else:
                    row = pmsk[rs:rs + sz, :]
                for co in range(C_OUT):
                    wbase = ((co * C_IN + ci) * KH + kh) * KW
                    accl[co] = accl[co] + w_ref[wbase + 0] * row
                    accc[co] = accc[co] + w_ref[wbase + 1] * row
                    accr[co] = accr[co] + w_ref[wbase + 2] * row
        for co in range(C_OUT):
            # shift the summed partials once per output channel (instead of
            # pre-shifting every input plane); the zero column doubles as the
            # SAME padding at the left/right image edge.
            left = jnp.concatenate([zcol, accl[co][:, :-1]], axis=1)    # in[.., x-1]
            right = jnp.concatenate([accr[co][:, 1:], zcol], axis=1)    # in[.., x+1]
            acc = accc[co] + left + right
            # output = clamp(sigmoid(acc) * 255, 0, 255); exp + divide hit the EUP
            y = 255.0 / (1.0 + jnp.exp(-acc))
            out_ref[0, co, r0:r0 + sz, :] = jnp.clip(y, 0.0, 255.0)
        r0 += sz


def _pick_band_rows(H, band_rows):
    """Largest divisor of H that is <= band_rows and a multiple of 8; else H."""
    for t in range(min(band_rows, H), 0, -1):
        if H % t == 0 and t % 8 == 0:
            return t
    return H  # ragged H: single band (block equals full array dim, still legal)


def coreml_lama(image, mask, weight, bias, *, band_rows=64):
    """image: (N, 3, H, W) f32, mask: (N, 1, H, W) -> (N, 3, H, W) f32 in [0, 255]."""
    N, c_img, H, W = image.shape
    assert c_img == C_IMG
    assert mask.shape == (N, 1, H, W)

    TH = _pick_band_rows(H, band_rows)
    nb = H // TH

    # keep the whole compute path in f32 (v5e has no bf16 VPU/EUP)
    image = image.astype(jnp.float32)
    mask = mask.astype(jnp.float32)
    w_flat = weight.astype(jnp.float32).reshape(-1)     # (C_OUT*C_IN*KH*KW,)
    b = bias.astype(jnp.float32)                        # (C_OUT,)

    kernel = functools.partial(coreml_lama_kernel, H=H, TH=TH)

    # VMEM is image-height independent now (band streaming): padded band
    # scratch + double-buffered output band; clamp well under v7x's 64 MiB/TC.
    f32b = 4
    vmem_need = f32b * ((C_IMG + 1) * (TH + 9) * W + 2 * C_OUT * TH * W)
    vmem_limit = int(min(max(4 * vmem_need, 16 * 1024 * 1024), 48 * 1024 * 1024))

    grid_spec = pltpu.PrefetchScalarGridSpec(
        num_scalar_prefetch=0,
        grid=(N, nb),
        in_specs=[
            pl.BlockSpec(memory_space=pltpu.MemorySpace.SMEM),   # conv weights (scalars)
            pl.BlockSpec(memory_space=pltpu.MemorySpace.SMEM),   # conv bias (scalars)
            pl.BlockSpec(memory_space=pl.ANY),                   # image stays in HBM
            pl.BlockSpec(memory_space=pl.ANY),                   # mask stays in HBM
        ],
        out_specs=pl.BlockSpec((1, C_OUT, TH, W), lambda n, h: (n, 0, h, 0)),
        scratch_shapes=[
            pltpu.VMEM((C_IMG, TH + 9, W), jnp.float32),   # padded image band
            pltpu.VMEM((TH + 9, W), jnp.float32),          # padded (normalized) mask band
            pltpu.SemaphoreType.DMA((6,)),
        ],
    )
    return pl.pallas_call(
        kernel,
        out_shape=jax.ShapeDtypeStruct((N, C_OUT, H, W), jnp.float32),
        grid_spec=grid_spec,
        compiler_params=pltpu.CompilerParams(
            dimension_semantics=("parallel", "parallel"),
            vmem_limit_bytes=vmem_limit,
        ),
    )(w_flat, b, image, mask)


def coreml_lama_reference(image, mask, weight, bias):
    """Pure-JAX reference with identical semantics (conv stand-in for lama)."""
    nm = ((mask > 0) * 1).astype(jnp.uint8).astype(jnp.float32)
    x = jnp.concatenate([image.astype(jnp.float32), nm], axis=1)
    y = jax.lax.conv_general_dilated(
        x, weight.astype(jnp.float32), window_strides=(1, 1), padding="SAME",
        dimension_numbers=("NCHW", "OIHW", "NCHW"))
    y = y + bias[None, :, None, None]
    lama_out = jax.nn.sigmoid(y)
    return jnp.clip(lama_out * 255.0, 0.0, 255.0)


if __name__ == "__main__":
    key = jax.random.PRNGKey(0)
    k_img, k_msk, k_w, k_b = jax.random.split(key, 4)

    # Small demo shapes: W = 128 keeps every output store lane-dense; H = 64
    # with band_rows=32 exercises the banded streaming + cross-band row halos.
    N, H, W = 2, 64, 128
    image = jax.random.uniform(k_img, (N, C_IMG, H, W), jnp.float32)          # [0,1) image
    mask = jax.random.uniform(k_msk, (N, 1, H, W), jnp.float32, -1.0, 1.0)    # mixed-sign mask

    # deterministic synthetic-lama parameters: 3x3 conv, (3+1) -> 3 channels (OIHW)
    weight = 0.1 * jax.random.normal(k_w, (C_OUT, C_IN, KH, KW), jnp.float32)
    bias = 0.1 * jax.random.normal(k_b, (C_OUT,), jnp.float32)

    out = coreml_lama(image, mask, weight, bias, band_rows=32)
    out = jax.block_until_ready(out)

    ref = coreml_lama_reference(image, mask, weight, bias)
    # Outputs are on a 0..255 pixel scale; f32 summation-order differences vs.
    # the XLA conv are far below one 8-bit pixel step.
    np.testing.assert_allclose(np.asarray(out), np.asarray(ref), rtol=5e-3, atol=0.5)

    print("KERNEL_OK")
</pallas_src>

<mosaic_0001>
module attributes {stable_mosaic.version = 11 : i64} {
  func.func @coreml_lama_kernel(%arg0: i32, %arg1: i32, %arg2: memref<108xf32, #tpu.memory_space<smem>>, %arg3: memref<3xf32, #tpu.memory_space<smem>>, %arg4: memref<2x3x64x128xf32, #tpu.memory_space<any>>, %arg5: memref<2x1x64x128xf32, #tpu.memory_space<any>>, %arg6: memref<1x3x32x128xf32, #tpu.memory_space<vmem>>, %arg7: memref<3x41x128xf32, #tpu.memory_space<vmem>>, %arg8: memref<41x128xf32, #tpu.memory_space<vmem>>, %arg9: memref<6x!tpu.dma_semaphore, #tpu.memory_space<semaphore_mem>>) attributes {dimension_semantics = [#tpu.dimension_semantics<parallel>, #tpu.dimension_semantics<parallel>], iteration_bounds = array<i64: 2, 2>, scalar_prefetch = 0 : i64, scratch_operands = 3 : i64, tpu.core_type = #tpu.core_type<tc>, window_params = [{transform_indices = @transform_0, window_bounds = array<i64: 108>}, {transform_indices = @transform_1, window_bounds = array<i64: 3>}, {}, {}, {transform_indices = @transform_4, window_bounds = array<i64: 1, 3, 32, 128>}]} {
    %c32_i32 = arith.constant 32 : i32
    %0 = arith.muli %arg1, %c32_i32 : i32
    %1 = tpu.assume_multiple %0, 32 : i32
    %c1_i32 = arith.constant 1 : i32
    %2 = arith.subi %1, %c1_i32 : i32
    %c0_i32 = arith.constant 0 : i32
    %3 = arith.maxsi %2, %c0_i32 : i32
    %c32_i32_0 = arith.constant 32 : i32
    %4 = arith.addi %1, %c32_i32_0 : i32
    %c63_i32 = arith.constant 63 : i32
    %5 = arith.minsi %4, %c63_i32 : i32
    %c0_i32_1 = arith.constant 0 : i32
    %c0_i32_2 = arith.constant 0 : i32
    %c0_i32_3 = arith.constant 0 : i32
    %6 = tpu.memref_slice %arg4[%arg0, %c0_i32_2, %1, %c0_i32_3] : memref<2x3x64x128xf32, #tpu.memory_space<any>> -> memref<1x3x32x128xf32, #tpu.memory_space<any>>
    %7 = tpu.memref_squeeze %6 : memref<1x3x32x128xf32, #tpu.memory_space<any>> -> memref<3x32x128xf32, #tpu.memory_space<any>>
    %c0_i32_4 = arith.constant 0 : i32
    %c8_i32 = arith.constant 8 : i32
    %c0_i32_5 = arith.constant 0 : i32
    %8 = tpu.memref_slice %arg7[%c0_i32_4, %c8_i32, %c0_i32_5] : memref<3x41x128xf32, #tpu.memory_space<vmem>> -> memref<3x32x128xf32, #tpu.memory_space<vmem>>
    %9 = tpu.memref_slice %arg9[%c0_i32_1] : memref<6x!tpu.dma_semaphore, #tpu.memory_space<semaphore_mem>> -> memref<1x!tpu.dma_semaphore, #tpu.memory_space<semaphore_mem>>
    %10 = tpu.memref_squeeze %9 : memref<1x!tpu.dma_semaphore, #tpu.memory_space<semaphore_mem>> -> memref<!tpu.dma_semaphore, #tpu.memory_space<semaphore_mem>>
    tpu.enqueue_dma source(%7 : memref<3x32x128xf32, #tpu.memory_space<any>>) target(%8 : memref<3x32x128xf32, #tpu.memory_space<vmem>>) target_semaphore(%10 : memref<!tpu.dma_semaphore, #tpu.memory_space<semaphore_mem>>)
    %c1_i32_6 = arith.constant 1 : i32
    %c0_i32_7 = arith.constant 0 : i32
    %c0_i32_8 = arith.constant 0 : i32
    %11 = tpu.memref_slice %arg4[%arg0, %c0_i32_7, %3, %c0_i32_8] : memref<2x3x64x128xf32, #tpu.memory_space<any>> -> memref<1x3x1x128xf32, #tpu.memory_space<any>>
    %12 = tpu.memref_squeeze %11 : memref<1x3x1x128xf32, #tpu.memory_space<any>> -> memref<3x1x128xf32, #tpu.memory_space<any>>
    %c0_i32_9 = arith.constant 0 : i32
    %c7_i32 = arith.constant 7 : i32
    %c0_i32_10 = arith.constant 0 : i32
    %13 = tpu.memref_slice %arg7[%c0_i32_9, %c7_i32, %c0_i32_10] : memref<3x41x128xf32, #tpu.memory_space<vmem>> -> memref<3x1x128xf32, #tpu.memory_space<vmem>>
    %14 = tpu.memref_slice %arg9[%c1_i32_6] : memref<6x!tpu.dma_semaphore, #tpu.memory_space<semaphore_mem>> -> memref<1x!tpu.dma_semaphore, #tpu.memory_space<semaphore_mem>>
    %15 = tpu.memref_squeeze %14 : memref<1x!tpu.dma_semaphore, #tpu.memory_space<semaphore_mem>> -> memref<!tpu.dma_semaphore, #tpu.memory_space<semaphore_mem>>
    tpu.enqueue_dma source(%12 : memref<3x1x128xf32, #tpu.memory_space<any>>) target(%13 : memref<3x1x128xf32, #tpu.memory_space<vmem>>) target_semaphore(%15 : memref<!tpu.dma_semaphore, #tpu.memory_space<semaphore_mem>>)
    %c2_i32 = arith.constant 2 : i32
    %c0_i32_11 = arith.constant 0 : i32
    %c0_i32_12 = arith.constant 0 : i32
    %16 = tpu.memref_slice %arg4[%arg0, %c0_i32_11, %5, %c0_i32_12] : memref<2x3x64x128xf32, #tpu.memory_space<any>> -> memref<1x3x1x128xf32, #tpu.memory_space<any>>
    %17 = tpu.memref_squeeze %16 : memref<1x3x1x128xf32, #tpu.memory_space<any>> -> memref<3x1x128xf32, #tpu.memory_space<any>>
    %c0_i32_13 = arith.constant 0 : i32
    %c40_i32 = arith.constant 40 : i32
    %c0_i32_14 = arith.constant 0 : i32
    %18 = tpu.memref_slice %arg7[%c0_i32_13, %c40_i32, %c0_i32_14] : memref<3x41x128xf32, #tpu.memory_space<vmem>> -> memref<3x1x128xf32, #tpu.memory_space<vmem>>
    %19 = tpu.memref_slice %arg9[%c2_i32] : memref<6x!tpu.dma_semaphore, #tpu.memory_space<semaphore_mem>> -> memref<1x!tpu.dma_semaphore, #tpu.memory_space<semaphore_mem>>
    %20 = tpu.memref_squeeze %19 : memref<1x!tpu.dma_semaphore, #tpu.memory_space<semaphore_mem>> -> memref<!tpu.dma_semaphore, #tpu.memory_space<semaphore_mem>>
    tpu.enqueue_dma source(%17 : memref<3x1x128xf32, #tpu.memory_space<any>>) target(%18 : memref<3x1x128xf32, #tpu.memory_space<vmem>>) target_semaphore(%20 : memref<!tpu.dma_semaphore, #tpu.memory_space<semaphore_mem>>)
    %c0_i32_15 = arith.constant 0 : i32
    %c3_i32 = arith.constant 3 : i32
    %c0_i32_16 = arith.constant 0 : i32
    %21 = tpu.memref_slice %arg5[%arg0, %c0_i32_15, %1, %c0_i32_16] : memref<2x1x64x128xf32, #tpu.memory_space<any>> -> memref<1x1x32x128xf32, #tpu.memory_space<any>>
    %22 = tpu.memref_squeeze %21 : memref<1x1x32x128xf32, #tpu.memory_space<any>> -> memref<32x128xf32, #tpu.memory_space<any>>
    %c8_i32_17 = arith.constant 8 : i32
    %c0_i32_18 = arith.constant 0 : i32
    %23 = tpu.memref_slice %arg8[%c8_i32_17, %c0_i32_18] : memref<41x128xf32, #tpu.memory_space<vmem>> -> memref<32x128xf32, #tpu.memory_space<vmem>>
    %24 = tpu.memref_slice %arg9[%c3_i32] : memref<6x!tpu.dma_semaphore, #tpu.memory_space<semaphore_mem>> -> memref<1x!tpu.dma_semaphore, #tpu.memory_space<semaphore_mem>>
    %25 = tpu.memref_squeeze %24 : memref<1x!tpu.dma_semaphore, #tpu.memory_space<semaphore_mem>> -> memref<!tpu.dma_semaphore, #tpu.memory_space<semaphore_mem>>
    tpu.enqueue_dma source(%22 : memref<32x128xf32, #tpu.memory_space<any>>) target(%23 : memref<32x128xf32, #tpu.memory_space<vmem>>) target_semaphore(%25 : memref<!tpu.dma_semaphore, #tpu.memory_space<semaphore_mem>>)
    %c0_i32_19 = arith.constant 0 : i32
    %c4_i32 = arith.constant 4 : i32
    %c0_i32_20 = arith.constant 0 : i32
    %26 = tpu.memref_slice %arg5[%arg0, %c0_i32_19, %3, %c0_i32_20] : memref<2x1x64x128xf32, #tpu.memory_space<any>> -> memref<1x1x1x128xf32, #tpu.memory_space<any>>
    %27 = tpu.memref_squeeze %26 : memref<1x1x1x128xf32, #tpu.memory_space<any>> -> memref<1x128xf32, #tpu.memory_space<any>>
    %c7_i32_21 = arith.constant 7 : i32
    %c0_i32_22 = arith.constant 0 : i32
    %28 = tpu.memref_slice %arg8[%c7_i32_21, %c0_i32_22] : memref<41x128xf32, #tpu.memory_space<vmem>> -> memref<1x128xf32, #tpu.memory_space<vmem>>
    %29 = tpu.memref_slice %arg9[%c4_i32] : memref<6x!tpu.dma_semaphore, #tpu.memory_space<semaphore_mem>> -> memref<1x!tpu.dma_semaphore, #tpu.memory_space<semaphore_mem>>
    %30 = tpu.memref_squeeze %29 : memref<1x!tpu.dma_semaphore, #tpu.memory_space<semaphore_mem>> -> memref<!tpu.dma_semaphore, #tpu.memory_space<semaphore_mem>>
    tpu.enqueue_dma source(%27 : memref<1x128xf32, #tpu.memory_space<any>>) target(%28 : memref<1x128xf32, #tpu.memory_space<vmem>>) target_semaphore(%30 : memref<!tpu.dma_semaphore, #tpu.memory_space<semaphore_mem>>)
    %c0_i32_23 = arith.constant 0 : i32
    %c5_i32 = arith.constant 5 : i32
    %c0_i32_24 = arith.constant 0 : i32
    %31 = tpu.memref_slice %arg5[%arg0, %c0_i32_23, %5, %c0_i32_24] : memref<2x1x64x128xf32, #tpu.memory_space<any>> -> memref<1x1x1x128xf32, #tpu.memory_space<any>>
    %32 = tpu.memref_squeeze %31 : memref<1x1x1x128xf32, #tpu.memory_space<any>> -> memref<1x128xf32, #tpu.memory_space<any>>
    %c40_i32_25 = arith.constant 40 : i32
    %c0_i32_26 = arith.constant 0 : i32
    %33 = tpu.memref_slice %arg8[%c40_i32_25, %c0_i32_26] : memref<41x128xf32, #tpu.memory_space<vmem>> -> memref<1x128xf32, #tpu.memory_space<vmem>>
    %34 = tpu.memref_slice %arg9[%c5_i32] : memref<6x!tpu.dma_semaphore, #tpu.memory_space<semaphore_mem>> -> memref<1x!tpu.dma_semaphore, #tpu.memory_space<semaphore_mem>>
    %35 = tpu.memref_squeeze %34 : memref<1x!tpu.dma_semaphore, #tpu.memory_space<semaphore_mem>> -> memref<!tpu.dma_semaphore, #tpu.memory_space<semaphore_mem>>
    tpu.enqueue_dma source(%32 : memref<1x128xf32, #tpu.memory_space<any>>) target(%33 : memref<1x128xf32, #tpu.memory_space<vmem>>) target_semaphore(%35 : memref<!tpu.dma_semaphore, #tpu.memory_space<semaphore_mem>>)
    %c0_i32_27 = arith.constant 0 : i32
    %c0_i32_28 = arith.constant 0 : i32
    %c0_i32_29 = arith.constant 0 : i32
    %36 = tpu.memref_slice %arg4[%arg0, %c0_i32_28, %1, %c0_i32_29] : memref<2x3x64x128xf32, #tpu.memory_space<any>> -> memref<1x3x32x128xf32, #tpu.memory_space<any>>
    %37 = tpu.memref_squeeze %36 : memref<1x3x32x128xf32, #tpu.memory_space<any>> -> memref<3x32x128xf32, #tpu.memory_space<any>>
    %c0_i32_30 = arith.constant 0 : i32
    %c8_i32_31 = arith.constant 8 : i32
    %c0_i32_32 = arith.constant 0 : i32
    %38 = tpu.memref_slice %arg7[%c0_i32_30, %c8_i32_31, %c0_i32_32] : memref<3x41x128xf32, #tpu.memory_space<vmem>> -> memref<3x32x128xf32, #tpu.memory_space<vmem>>
    %39 = tpu.memref_slice %arg9[%c0_i32_27] : memref<6x!tpu.dma_semaphore, #tpu.memory_space<semaphore_mem>> -> memref<1x!tpu.dma_semaphore, #tpu.memory_space<semaphore_mem>>
    %40 = tpu.memref_squeeze %39 : memref<1x!tpu.dma_semaphore, #tpu.memory_space<semaphore_mem>> -> memref<!tpu.dma_semaphore, #tpu.memory_space<semaphore_mem>>
    tpu.wait_dma2 semaphore(%40 : memref<!tpu.dma_semaphore, #tpu.memory_space<semaphore_mem>>) src(%37 : memref<3x32x128xf32, #tpu.memory_space<any>>) dst(%38 : memref<3x32x128xf32, #tpu.memory_space<vmem>>)
    %c1_i32_33 = arith.constant 1 : i32
    %c0_i32_34 = arith.constant 0 : i32
    %c0_i32_35 = arith.constant 0 : i32
    %41 = tpu.memref_slice %arg4[%arg0, %c0_i32_34, %3, %c0_i32_35] : memref<2x3x64x128xf32, #tpu.memory_space<any>> -> memref<1x3x1x128xf32, #tpu.memory_space<any>>
    %42 = tpu.memref_squeeze %41 : memref<1x3x1x128xf32, #tpu.memory_space<any>> -> memref<3x1x128xf32, #tpu.memory_space<any>>
    %c0_i32_36 = arith.constant 0 : i32
    %c7_i32_37 = arith.constant 7 : i32
    %c0_i32_38 = arith.constant 0 : i32
    %43 = tpu.memref_slice %arg7[%c0_i32_36, %c7_i32_37, %c0_i32_38] : memref<3x41x128xf32, #tpu.memory_space<vmem>> -> memref<3x1x128xf32, #tpu.memory_space<vmem>>
    %44 = tpu.memref_slice %arg9[%c1_i32_33] : memref<6x!tpu.dma_semaphore, #tpu.memory_space<semaphore_mem>> -> memref<1x!tpu.dma_semaphore, #tpu.memory_space<semaphore_mem>>
    %45 = tpu.memref_squeeze %44 : memref<1x!tpu.dma_semaphore, #tpu.memory_space<semaphore_mem>> -> memref<!tpu.dma_semaphore, #tpu.memory_space<semaphore_mem>>
    tpu.wait_dma2 semaphore(%45 : memref<!tpu.dma_semaphore, #tpu.memory_space<semaphore_mem>>) src(%42 : memref<3x1x128xf32, #tpu.memory_space<any>>) dst(%43 : memref<3x1x128xf32, #tpu.memory_space<vmem>>)
    %c2_i32_39 = arith.constant 2 : i32
    %c0_i32_40 = arith.constant 0 : i32
    %c0_i32_41 = arith.constant 0 : i32
    %46 = tpu.memref_slice %arg4[%arg0, %c0_i32_40, %5, %c0_i32_41] : memref<2x3x64x128xf32, #tpu.memory_space<any>> -> memref<1x3x1x128xf32, #tpu.memory_space<any>>
    %47 = tpu.memref_squeeze %46 : memref<1x3x1x128xf32, #tpu.memory_space<any>> -> memref<3x1x128xf32, #tpu.memory_space<any>>
    %c0_i32_42 = arith.constant 0 : i32
    %c40_i32_43 = arith.constant 40 : i32
    %c0_i32_44 = arith.constant 0 : i32
    %48 = tpu.memref_slice %arg7[%c0_i32_42, %c40_i32_43, %c0_i32_44] : memref<3x41x128xf32, #tpu.memory_space<vmem>> -> memref<3x1x128xf32, #tpu.memory_space<vmem>>
    %49 = tpu.memref_slice %arg9[%c2_i32_39] : memref<6x!tpu.dma_semaphore, #tpu.memory_space<semaphore_mem>> -> memref<1x!tpu.dma_semaphore, #tpu.memory_space<semaphore_mem>>
    %50 = tpu.memref_squeeze %49 : memref<1x!tpu.dma_semaphore, #tpu.memory_space<semaphore_mem>> -> memref<!tpu.dma_semaphore, #tpu.memory_space<semaphore_mem>>
    tpu.wait_dma2 semaphore(%50 : memref<!tpu.dma_semaphore, #tpu.memory_space<semaphore_mem>>) src(%47 : memref<3x1x128xf32, #tpu.memory_space<any>>) dst(%48 : memref<3x1x128xf32, #tpu.memory_space<vmem>>)
    %c0_i32_45 = arith.constant 0 : i32
    %c3_i32_46 = arith.constant 3 : i32
    %c0_i32_47 = arith.constant 0 : i32
    %51 = tpu.memref_slice %arg5[%arg0, %c0_i32_45, %1, %c0_i32_47] : memref<2x1x64x128xf32, #tpu.memory_space<any>> -> memref<1x1x32x128xf32, #tpu.memory_space<any>>
    %52 = tpu.memref_squeeze %51 : memref<1x1x32x128xf32, #tpu.memory_space<any>> -> memref<32x128xf32, #tpu.memory_space<any>>
    %c8_i32_48 = arith.constant 8 : i32
    %c0_i32_49 = arith.constant 0 : i32
    %53 = tpu.memref_slice %arg8[%c8_i32_48, %c0_i32_49] : memref<41x128xf32, #tpu.memory_space<vmem>> -> memref<32x128xf32, #tpu.memory_space<vmem>>
    %54 = tpu.memref_slice %arg9[%c3_i32_46] : memref<6x!tpu.dma_semaphore, #tpu.memory_space<semaphore_mem>> -> memref<1x!tpu.dma_semaphore, #tpu.memory_space<semaphore_mem>>
    %55 = tpu.memref_squeeze %54 : memref<1x!tpu.dma_semaphore, #tpu.memory_space<semaphore_mem>> -> memref<!tpu.dma_semaphore, #tpu.memory_space<semaphore_mem>>
    tpu.wait_dma2 semaphore(%55 : memref<!tpu.dma_semaphore, #tpu.memory_space<semaphore_mem>>) src(%52 : memref<32x128xf32, #tpu.memory_space<any>>) dst(%53 : memref<32x128xf32, #tpu.memory_space<vmem>>)
    %c0_i32_50 = arith.constant 0 : i32
    %c4_i32_51 = arith.constant 4 : i32
    %c0_i32_52 = arith.constant 0 : i32
    %56 = tpu.memref_slice %arg5[%arg0, %c0_i32_50, %3, %c0_i32_52] : memref<2x1x64x128xf32, #tpu.memory_space<any>> -> memref<1x1x1x128xf32, #tpu.memory_space<any>>
    %57 = tpu.memref_squeeze %56 : memref<1x1x1x128xf32, #tpu.memory_space<any>> -> memref<1x128xf32, #tpu.memory_space<any>>
    %c7_i32_53 = arith.constant 7 : i32
    %c0_i32_54 = arith.constant 0 : i32
    %58 = tpu.memref_slice %arg8[%c7_i32_53, %c0_i32_54] : memref<41x128xf32, #tpu.memory_space<vmem>> -> memref<1x128xf32, #tpu.memory_space<vmem>>
    %59 = tpu.memref_slice %arg9[%c4_i32_51] : memref<6x!tpu.dma_semaphore, #tpu.memory_space<semaphore_mem>> -> memref<1x!tpu.dma_semaphore, #tpu.memory_space<semaphore_mem>>
    %60 = tpu.memref_squeeze %59 : memref<1x!tpu.dma_semaphore, #tpu.memory_space<semaphore_mem>> -> memref<!tpu.dma_semaphore, #tpu.memory_space<semaphore_mem>>
    tpu.wait_dma2 semaphore(%60 : memref<!tpu.dma_semaphore, #tpu.memory_space<semaphore_mem>>) src(%57 : memref<1x128xf32, #tpu.memory_space<any>>) dst(%58 : memref<1x128xf32, #tpu.memory_space<vmem>>)
    %c0_i32_55 = arith.constant 0 : i32
    %c5_i32_56 = arith.constant 5 : i32
    %c0_i32_57 = arith.constant 0 : i32
    %61 = tpu.memref_slice %arg5[%arg0, %c0_i32_55, %5, %c0_i32_57] : memref<2x1x64x128xf32, #tpu.memory_space<any>> -> memref<1x1x1x128xf32, #tpu.memory_space<any>>
    %62 = tpu.memref_squeeze %61 : memref<1x1x1x128xf32, #tpu.memory_space<any>> -> memref<1x128xf32, #tpu.memory_space<any>>
    %c40_i32_58 = arith.constant 40 : i32
    %c0_i32_59 = arith.constant 0 : i32
    %63 = tpu.memref_slice %arg8[%c40_i32_58, %c0_i32_59] : memref<41x128xf32, #tpu.memory_space<vmem>> -> memref<1x128xf32, #tpu.memory_space<vmem>>
    %64 = tpu.memref_slice %arg9[%c5_i32_56] : memref<6x!tpu.dma_semaphore, #tpu.memory_space<semaphore_mem>> -> memref<1x!tpu.dma_semaphore, #tpu.memory_space<semaphore_mem>>
    %65 = tpu.memref_squeeze %64 : memref<1x!tpu.dma_semaphore, #tpu.memory_space<semaphore_mem>> -> memref<!tpu.dma_semaphore, #tpu.memory_space<semaphore_mem>>
    tpu.wait_dma2 semaphore(%65 : memref<!tpu.dma_semaphore, #tpu.memory_space<semaphore_mem>>) src(%62 : memref<1x128xf32, #tpu.memory_space<any>>) dst(%63 : memref<1x128xf32, #tpu.memory_space<vmem>>)
    %c0_i32_60 = arith.constant 0 : i32
    %66 = arith.cmpi eq, %arg1, %c0_i32_60 : i32
    %67 = arith.extui %66 : i1 to i32
    %c0_i32_61 = arith.constant 0 : i32
    %68 = arith.cmpi ne, %67, %c0_i32_61 : i32
    scf.if %68 {
      %cst_672 = arith.constant 0.000000e+00 : f32
      %2182 = vector.broadcast %cst_672 : f32 to vector<3x1x128xf32>
      %c0_673 = arith.constant 0 : index
      %c7_674 = arith.constant 7 : index
      %c0_675 = arith.constant 0 : index
      %2183 = vector.load %arg7[%c0_673, %c7_674, %c0_675] : memref<3x41x128xf32, #tpu.memory_space<vmem>>, vector<3x1x128xf32>
      tpu.vector_store %arg7[%c0_673, %c7_674, %c0_675], %2182 {strides = array<i32>} : memref<3x41x128xf32, #tpu.memory_space<vmem>>, vector<3x1x128xf32>,
      %cst_676 = arith.constant 0.000000e+00 : f32
      %2184 = vector.broadcast %cst_676 : f32 to vector<1x128xf32>
      %c7_677 = arith.constant 7 : index
      %c0_678 = arith.constant 0 : index
      %2185 = vector.load %arg8[%c7_677, %c0_678] : memref<41x128xf32, #tpu.memory_space<vmem>>, vector<1x128xf32>
      tpu.vector_store %arg8[%c7_677, %c0_678], %2184 {strides = array<i32>} : memref<41x128xf32, #tpu.memory_space<vmem>>, vector<1x128xf32>,
    } else {
    }
    %c1_i32_62 = arith.constant 1 : i32
    %69 = arith.cmpi eq, %arg1, %c1_i32_62 : i32
    %70 = arith.extui %69 : i1 to i32
    %c0_i32_63 = arith.constant 0 : i32
    %71 = arith.cmpi ne, %70, %c0_i32_63 : i32
    scf.if %71 {
      %cst_672 = arith.constant 0.000000e+00 : f32
      %2182 = vector.broadcast %cst_672 : f32 to vector<3x1x128xf32>
      %c0_673 = arith.constant 0 : index
      %c40_674 = arith.constant 40 : index
      %c0_675 = arith.constant 0 : index
      %2183 = vector.load %arg7[%c0_673, %c40_674, %c0_675] : memref<3x41x128xf32, #tpu.memory_space<vmem>>, vector<3x1x128xf32>
      tpu.vector_store %arg7[%c0_673, %c40_674, %c0_675], %2182 {strides = array<i32>} : memref<3x41x128xf32, #tpu.memory_space<vmem>>, vector<3x1x128xf32>,
      %cst_676 = arith.constant 0.000000e+00 : f32
      %2184 = vector.broadcast %cst_676 : f32 to vector<1x128xf32>
      %c40_677 = arith.constant 40 : index
      %c0_678 = arith.constant 0 : index
      %2185 = vector.load %arg8[%c40_677, %c0_678] : memref<41x128xf32, #tpu.memory_space<vmem>>, vector<1x128xf32>
      tpu.vector_store %arg8[%c40_677, %c0_678], %2184 {strides = array<i32>} : memref<41x128xf32, #tpu.memory_space<vmem>>, vector<1x128xf32>,
    } else {
    }
    %c0 = arith.constant 0 : index
    %c0_64 = arith.constant 0 : index
    %72 = vector.load %arg8[%c0, %c0_64] : memref<41x128xf32, #tpu.memory_space<vmem>>, vector<41x128xf32>
    %cst = arith.constant 0.000000e+00 : f32
    %73 = vector.broadcast %cst : f32 to vector<41x128xf32>
    %74 = arith.cmpf ogt, %72, %73 : vector<41x128xf32>
    %75 = arith.extui %74 : vector<41x128xi1> to vector<41x128xi32>
    %76 = arith.sitofp %75 : vector<41x128xi32> to vector<41x128xf32>
    %c0_65 = arith.constant 0 : index
    %c0_66 = arith.constant 0 : index
    %77 = vector.load %arg8[%c0_65, %c0_66] : memref<41x128xf32, #tpu.memory_space<vmem>>, vector<41x128xf32>
    tpu.vector_store %arg8[%c0_65, %c0_66], %76 {strides = array<i32>} : memref<41x128xf32, #tpu.memory_space<vmem>>, vector<41x128xf32>,
    %cst_67 = arith.constant 0.000000e+00 : f32
    %78 = vector.broadcast %cst_67 : f32 to vector<8x1xf32>
    %cst_68 = arith.constant 0.000000e+00 : f32
    %79 = vector.broadcast %cst_68 : f32 to vector<8x128xf32>
    %cst_69 = arith.constant 0.000000e+00 : f32
    %80 = vector.broadcast %cst_69 : f32 to vector<8x128xf32>
    %cst_70 = arith.constant 0.000000e+00 : f32
    %81 = vector.broadcast %cst_70 : f32 to vector<8x128xf32>
    %c0_71 = arith.constant 0 : index
    %82 = memref.load %arg3[%c0_71] : memref<3xf32, #tpu.memory_space<smem>>
    %83 = vector.broadcast %82 : f32 to vector<8x128xf32>
    %c1 = arith.constant 1 : index
    %84 = memref.load %arg3[%c1] : memref<3xf32, #tpu.memory_space<smem>>
    %85 = vector.broadcast %84 : f32 to vector<8x128xf32>
    %c2 = arith.constant 2 : index
    %86 = memref.load %arg3[%c2] : memref<3xf32, #tpu.memory_space<smem>>
    %87 = vector.broadcast %86 : f32 to vector<8x128xf32>
    %cst_72 = arith.constant 0.000000e+00 : f32
    %88 = vector.broadcast %cst_72 : f32 to vector<8x128xf32>
    %cst_73 = arith.constant 0.000000e+00 : f32
    %89 = vector.broadcast %cst_73 : f32 to vector<8x128xf32>
    %cst_74 = arith.constant 0.000000e+00 : f32
    %90 = vector.broadcast %cst_74 : f32 to vector<8x128xf32>
    %c0_75 = arith.constant 0 : index
    %c7 = arith.constant 7 : index
    %c0_76 = arith.constant 0 : index
    %91 = vector.load %arg7[%c0_75, %c7, %c0_76] : memref<3x41x128xf32, #tpu.memory_space<vmem>>, vector<1x8x128xf32>
    %92 = vector.shape_cast %91 : vector<1x8x128xf32> to vector<8x128xf32>
    %c0_77 = arith.constant 0 : index
    %93 = memref.load %arg2[%c0_77] : memref<108xf32, #tpu.memory_space<smem>>
    %94 = vector.broadcast %93 : f32 to vector<8x128xf32>
    %95 = arith.mulf %94, %92 : vector<8x128xf32>
    %96 = arith.addf %79, %95 : vector<8x128xf32>
    %c1_78 = arith.constant 1 : index
    %97 = memref.load %arg2[%c1_78] : memref<108xf32, #tpu.memory_space<smem>>
    %98 = vector.broadcast %97 : f32 to vector<8x128xf32>
    %99 = arith.mulf %98, %92 : vector<8x128xf32>
    %100 = arith.addf %83, %99 : vector<8x128xf32>
    %c2_79 = arith.constant 2 : index
    %101 = memref.load %arg2[%c2_79] : memref<108xf32, #tpu.memory_space<smem>>
    %102 = vector.broadcast %101 : f32 to vector<8x128xf32>
    %103 = arith.mulf %102, %92 : vector<8x128xf32>
    %104 = arith.addf %88, %103 : vector<8x128xf32>
    %c36 = arith.constant 36 : index
    %105 = memref.load %arg2[%c36] : memref<108xf32, #tpu.memory_space<smem>>
    %106 = vector.broadcast %105 : f32 to vector<8x128xf32>
    %107 = arith.mulf %106, %92 : vector<8x128xf32>
    %108 = arith.addf %80, %107 : vector<8x128xf32>
    %c37 = arith.constant 37 : index
    %109 = memref.load %arg2[%c37] : memref<108xf32, #tpu.memory_space<smem>>
    %110 = vector.broadcast %109 : f32 to vector<8x128xf32>
    %111 = arith.mulf %110, %92 : vector<8x128xf32>
    %112 = arith.addf %85, %111 : vector<8x128xf32>
    %c38 = arith.constant 38 : index
    %113 = memref.load %arg2[%c38] : memref<108xf32, #tpu.memory_space<smem>>
    %114 = vector.broadcast %113 : f32 to vector<8x128xf32>
    %115 = arith.mulf %114, %92 : vector<8x128xf32>
    %116 = arith.addf %89, %115 : vector<8x128xf32>
    %c72 = arith.constant 72 : index
    %117 = memref.load %arg2[%c72] : memref<108xf32, #tpu.memory_space<smem>>
    %118 = vector.broadcast %117 : f32 to vector<8x128xf32>
    %119 = arith.mulf %118, %92 : vector<8x128xf32>
    %120 = arith.addf %81, %119 : vector<8x128xf32>
    %c73 = arith.constant 73 : index
    %121 = memref.load %arg2[%c73] : memref<108xf32, #tpu.memory_space<smem>>
    %122 = vector.broadcast %121 : f32 to vector<8x128xf32>
    %123 = arith.mulf %122, %92 : vector<8x128xf32>
    %124 = arith.addf %87, %123 : vector<8x128xf32>
    %c74 = arith.constant 74 : index
    %125 = memref.load %arg2[%c74] : memref<108xf32, #tpu.memory_space<smem>>
    %126 = vector.broadcast %125 : f32 to vector<8x128xf32>
    %127 = arith.mulf %126, %92 : vector<8x128xf32>
    %128 = arith.addf %90, %127 : vector<8x128xf32>
    %c0_80 = arith.constant 0 : index
    %c8 = arith.constant 8 : index
    %c0_81 = arith.constant 0 : index
    %129 = vector.load %arg7[%c0_80, %c8, %c0_81] : memref<3x41x128xf32, #tpu.memory_space<vmem>>, vector<1x8x128xf32>
    %130 = vector.shape_cast %129 : vector<1x8x128xf32> to vector<8x128xf32>
    %c3 = arith.constant 3 : index
    %131 = memref.load %arg2[%c3] : memref<108xf32, #tpu.memory_space<smem>>
    %132 = vector.broadcast %131 : f32 to vector<8x128xf32>
    %133 = arith.mulf %132, %130 : vector<8x128xf32>
    %134 = arith.addf %96, %133 : vector<8x128xf32>
    %c4 = arith.constant 4 : index
    %135 = memref.load %arg2[%c4] : memref<108xf32, #tpu.memory_space<smem>>
    %136 = vector.broadcast %135 : f32 to vector<8x128xf32>
    %137 = arith.mulf %136, %130 : vector<8x128xf32>
    %138 = arith.addf %100, %137 : vector<8x128xf32>
    %c5 = arith.constant 5 : index
    %139 = memref.load %arg2[%c5] : memref<108xf32, #tpu.memory_space<smem>>
    %140 = vector.broadcast %139 : f32 to vector<8x128xf32>
    %141 = arith.mulf %140, %130 : vector<8x128xf32>
    %142 = arith.addf %104, %141 : vector<8x128xf32>
    %c39 = arith.constant 39 : index
    %143 = memref.load %arg2[%c39] : memref<108xf32, #tpu.memory_space<smem>>
    %144 = vector.broadcast %143 : f32 to vector<8x128xf32>
    %145 = arith.mulf %144, %130 : vector<8x128xf32>
    %146 = arith.addf %108, %145 : vector<8x128xf32>
    %c40 = arith.constant 40 : index
    %147 = memref.load %arg2[%c40] : memref<108xf32, #tpu.memory_space<smem>>
    %148 = vector.broadcast %147 : f32 to vector<8x128xf32>
    %149 = arith.mulf %148, %130 : vector<8x128xf32>
    %150 = arith.addf %112, %149 : vector<8x128xf32>
    %c41 = arith.constant 41 : index
    %151 = memref.load %arg2[%c41] : memref<108xf32, #tpu.memory_space<smem>>
    %152 = vector.broadcast %151 : f32 to vector<8x128xf32>
    %153 = arith.mulf %152, %130 : vector<8x128xf32>
    %154 = arith.addf %116, %153 : vector<8x128xf32>
    %c75 = arith.constant 75 : index
    %155 = memref.load %arg2[%c75] : memref<108xf32, #tpu.memory_space<smem>>
    %156 = vector.broadcast %155 : f32 to vector<8x128xf32>
    %157 = arith.mulf %156, %130 : vector<8x128xf32>
    %158 = arith.addf %120, %157 : vector<8x128xf32>
    %c76 = arith.constant 76 : index
    %159 = memref.load %arg2[%c76] : memref<108xf32, #tpu.memory_space<smem>>
    %160 = vector.broadcast %159 : f32 to vector<8x128xf32>
    %161 = arith.mulf %160, %130 : vector<8x128xf32>
    %162 = arith.addf %124, %161 : vector<8x128xf32>
    %c77 = arith.constant 77 : index
    %163 = memref.load %arg2[%c77] : memref<108xf32, #tpu.memory_space<smem>>
    %164 = vector.broadcast %163 : f32 to vector<8x128xf32>
    %165 = arith.mulf %164, %130 : vector<8x128xf32>
    %166 = arith.addf %128, %165 : vector<8x128xf32>
    %c0_82 = arith.constant 0 : index
    %c9 = arith.constant 9 : index
    %c0_83 = arith.constant 0 : index
    %167 = vector.load %arg7[%c0_82, %c9, %c0_83] : memref<3x41x128xf32, #tpu.memory_space<vmem>>, vector<1x8x128xf32>
    %168 = vector.shape_cast %167 : vector<1x8x128xf32> to vector<8x128xf32>
    %c6 = arith.constant 6 : index
    %169 = memref.load %arg2[%c6] : memref<108xf32, #tpu.memory_space<smem>>
    %170 = vector.broadcast %169 : f32 to vector<8x128xf32>
    %171 = arith.mulf %170, %168 : vector<8x128xf32>
    %172 = arith.addf %134, %171 : vector<8x128xf32>
    %c7_84 = arith.constant 7 : index
    %173 = memref.load %arg2[%c7_84] : memref<108xf32, #tpu.memory_space<smem>>
    %174 = vector.broadcast %173 : f32 to vector<8x128xf32>
    %175 = arith.mulf %174, %168 : vector<8x128xf32>
    %176 = arith.addf %138, %175 : vector<8x128xf32>
    %c8_85 = arith.constant 8 : index
    %177 = memref.load %arg2[%c8_85] : memref<108xf32, #tpu.memory_space<smem>>
    %178 = vector.broadcast %177 : f32 to vector<8x128xf32>
    %179 = arith.mulf %178, %168 : vector<8x128xf32>
    %180 = arith.addf %142, %179 : vector<8x128xf32>
    %c42 = arith.constant 42 : index
    %181 = memref.load %arg2[%c42] : memref<108xf32, #tpu.memory_space<smem>>
    %182 = vector.broadcast %181 : f32 to vector<8x128xf32>
    %183 = arith.mulf %182, %168 : vector<8x128xf32>
    %184 = arith.addf %146, %183 : vector<8x128xf32>
    %c43 = arith.constant 43 : index
    %185 = memref.load %arg2[%c43] : memref<108xf32, #tpu.memory_space<smem>>
    %186 = vector.broadcast %185 : f32 to vector<8x128xf32>
    %187 = arith.mulf %186, %168 : vector<8x128xf32>
    %188 = arith.addf %150, %187 : vector<8x128xf32>
    %c44 = arith.constant 44 : index
    %189 = memref.load %arg2[%c44] : memref<108xf32, #tpu.memory_space<smem>>
    %190 = vector.broadcast %189 : f32 to vector<8x128xf32>
    %191 = arith.mulf %190, %168 : vector<8x128xf32>
    %192 = arith.addf %154, %191 : vector<8x128xf32>
    %c78 = arith.constant 78 : index
    %193 = memref.load %arg2[%c78] : memref<108xf32, #tpu.memory_space<smem>>
    %194 = vector.broadcast %193 : f32 to vector<8x128xf32>
    %195 = arith.mulf %194, %168 : vector<8x128xf32>
    %196 = arith.addf %158, %195 : vector<8x128xf32>
    %c79 = arith.constant 79 : index
    %197 = memref.load %arg2[%c79] : memref<108xf32, #tpu.memory_space<smem>>
    %198 = vector.broadcast %197 : f32 to vector<8x128xf32>
    %199 = arith.mulf %198, %168 : vector<8x128xf32>
    %200 = arith.addf %162, %199 : vector<8x128xf32>
    %c80 = arith.constant 80 : index
    %201 = memref.load %arg2[%c80] : memref<108xf32, #tpu.memory_space<smem>>
    %202 = vector.broadcast %201 : f32 to vector<8x128xf32>
    %203 = arith.mulf %202, %168 : vector<8x128xf32>
    %204 = arith.addf %166, %203 : vector<8x128xf32>
    %c1_86 = arith.constant 1 : index
    %c7_87 = arith.constant 7 : index
    %c0_88 = arith.constant 0 : index
    %205 = vector.load %arg7[%c1_86, %c7_87, %c0_88] : memref<3x41x128xf32, #tpu.memory_space<vmem>>, vector<1x8x128xf32>
    %206 = vector.shape_cast %205 : vector<1x8x128xf32> to vector<8x128xf32>
    %c9_89 = arith.constant 9 : index
    %207 = memref.load %arg2[%c9_89] : memref<108xf32, #tpu.memory_space<smem>>
    %208 = vector.broadcast %207 : f32 to vector<8x128xf32>
    %209 = arith.mulf %208, %206 : vector<8x128xf32>
    %210 = arith.addf %172, %209 : vector<8x128xf32>
    %c10 = arith.constant 10 : index
    %211 = memref.load %arg2[%c10] : memref<108xf32, #tpu.memory_space<smem>>
    %212 = vector.broadcast %211 : f32 to vector<8x128xf32>
    %213 = arith.mulf %212, %206 : vector<8x128xf32>
    %214 = arith.addf %176, %213 : vector<8x128xf32>
    %c11 = arith.constant 11 : index
    %215 = memref.load %arg2[%c11] : memref<108xf32, #tpu.memory_space<smem>>
    %216 = vector.broadcast %215 : f32 to vector<8x128xf32>
    %217 = arith.mulf %216, %206 : vector<8x128xf32>
    %218 = arith.addf %180, %217 : vector<8x128xf32>
    %c45 = arith.constant 45 : index
    %219 = memref.load %arg2[%c45] : memref<108xf32, #tpu.memory_space<smem>>
    %220 = vector.broadcast %219 : f32 to vector<8x128xf32>
    %221 = arith.mulf %220, %206 : vector<8x128xf32>
    %222 = arith.addf %184, %221 : vector<8x128xf32>
    %c46 = arith.constant 46 : index
    %223 = memref.load %arg2[%c46] : memref<108xf32, #tpu.memory_space<smem>>
    %224 = vector.broadcast %223 : f32 to vector<8x128xf32>
    %225 = arith.mulf %224, %206 : vector<8x128xf32>
    %226 = arith.addf %188, %225 : vector<8x128xf32>
    %c47 = arith.constant 47 : index
    %227 = memref.load %arg2[%c47] : memref<108xf32, #tpu.memory_space<smem>>
    %228 = vector.broadcast %227 : f32 to vector<8x128xf32>
    %229 = arith.mulf %228, %206 : vector<8x128xf32>
    %230 = arith.addf %192, %229 : vector<8x128xf32>
    %c81 = arith.constant 81 : index
    %231 = memref.load %arg2[%c81] : memref<108xf32, #tpu.memory_space<smem>>
    %232 = vector.broadcast %231 : f32 to vector<8x128xf32>
    %233 = arith.mulf %232, %206 : vector<8x128xf32>
    %234 = arith.addf %196, %233 : vector<8x128xf32>
    %c82 = arith.constant 82 : index
    %235 = memref.load %arg2[%c82] : memref<108xf32, #tpu.memory_space<smem>>
    %236 = vector.broadcast %235 : f32 to vector<8x128xf32>
    %237 = arith.mulf %236, %206 : vector<8x128xf32>
    %238 = arith.addf %200, %237 : vector<8x128xf32>
    %c83 = arith.constant 83 : index
    %239 = memref.load %arg2[%c83] : memref<108xf32, #tpu.memory_space<smem>>
    %240 = vector.broadcast %239 : f32 to vector<8x128xf32>
    %241 = arith.mulf %240, %206 : vector<8x128xf32>
    %242 = arith.addf %204, %241 : vector<8x128xf32>
    %c1_90 = arith.constant 1 : index
    %c8_91 = arith.constant 8 : index
    %c0_92 = arith.constant 0 : index
    %243 = vector.load %arg7[%c1_90, %c8_91, %c0_92] : memref<3x41x128xf32, #tpu.memory_space<vmem>>, vector<1x8x128xf32>
    %244 = vector.shape_cast %243 : vector<1x8x128xf32> to vector<8x128xf32>
    %c12 = arith.constant 12 : index
    %245 = memref.load %arg2[%c12] : memref<108xf32, #tpu.memory_space<smem>>
    %246 = vector.broadcast %245 : f32 to vector<8x128xf32>
    %247 = arith.mulf %246, %244 : vector<8x128xf32>
    %248 = arith.addf %210, %247 : vector<8x128xf32>
    %c13 = arith.constant 13 : index
    %249 = memref.load %arg2[%c13] : memref<108xf32, #tpu.memory_space<smem>>
    %250 = vector.broadcast %249 : f32 to vector<8x128xf32>
    %251 = arith.mulf %250, %244 : vector<8x128xf32>
    %252 = arith.addf %214, %251 : vector<8x128xf32>
    %c14 = arith.constant 14 : index
    %253 = memref.load %arg2[%c14] : memref<108xf32, #tpu.memory_space<smem>>
    %254 = vector.broadcast %253 : f32 to vector<8x128xf32>
    %255 = arith.mulf %254, %244 : vector<8x128xf32>
    %256 = arith.addf %218, %255 : vector<8x128xf32>
    %c48 = arith.constant 48 : index
    %257 = memref.load %arg2[%c48] : memref<108xf32, #tpu.memory_space<smem>>
    %258 = vector.broadcast %257 : f32 to vector<8x128xf32>
    %259 = arith.mulf %258, %244 : vector<8x128xf32>
    %260 = arith.addf %222, %259 : vector<8x128xf32>
    %c49 = arith.constant 49 : index
    %261 = memref.load %arg2[%c49] : memref<108xf32, #tpu.memory_space<smem>>
    %262 = vector.broadcast %261 : f32 to vector<8x128xf32>
    %263 = arith.mulf %262, %244 : vector<8x128xf32>
    %264 = arith.addf %226, %263 : vector<8x128xf32>
    %c50 = arith.constant 50 : index
    %265 = memref.load %arg2[%c50] : memref<108xf32, #tpu.memory_space<smem>>
    %266 = vector.broadcast %265 : f32 to vector<8x128xf32>
    %267 = arith.mulf %266, %244 : vector<8x128xf32>
    %268 = arith.addf %230, %267 : vector<8x128xf32>
    %c84 = arith.constant 84 : index
    %269 = memref.load %arg2[%c84] : memref<108xf32, #tpu.memory_space<smem>>
    %270 = vector.broadcast %269 : f32 to vector<8x128xf32>
    %271 = arith.mulf %270, %244 : vector<8x128xf32>
    %272 = arith.addf %234, %271 : vector<8x128xf32>
    %c85 = arith.constant 85 : index
    %273 = memref.load %arg2[%c85] : memref<108xf32, #tpu.memory_space<smem>>
    %274 = vector.broadcast %273 : f32 to vector<8x128xf32>
    %275 = arith.mulf %274, %244 : vector<8x128xf32>
    %276 = arith.addf %238, %275 : vector<8x128xf32>
    %c86 = arith.constant 86 : index
    %277 = memref.load %arg2[%c86] : memref<108xf32, #tpu.memory_space<smem>>
    %278 = vector.broadcast %277 : f32 to vector<8x128xf32>
    %279 = arith.mulf %278, %244 : vector<8x128xf32>
    %280 = arith.addf %242, %279 : vector<8x128xf32>
    %c1_93 = arith.constant 1 : index
    %c9_94 = arith.constant 9 : index
    %c0_95 = arith.constant 0 : index
    %281 = vector.load %arg7[%c1_93, %c9_94, %c0_95] : memref<3x41x128xf32, #tpu.memory_space<vmem>>, vector<1x8x128xf32>
    %282 = vector.shape_cast %281 : vector<1x8x128xf32> to vector<8x128xf32>
    %c15 = arith.constant 15 : index
    %283 = memref.load %arg2[%c15] : memref<108xf32, #tpu.memory_space<smem>>
    %284 = vector.broadcast %283 : f32 to vector<8x128xf32>
    %285 = arith.mulf %284, %282 : vector<8x128xf32>
    %286 = arith.addf %248, %285 : vector<8x128xf32>
    %c16 = arith.constant 16 : index
    %287 = memref.load %arg2[%c16] : memref<108xf32, #tpu.memory_space<smem>>
    %288 = vector.broadcast %287 : f32 to vector<8x128xf32>
    %289 = arith.mulf %288, %282 : vector<8x128xf32>
    %290 = arith.addf %252, %289 : vector<8x128xf32>
    %c17 = arith.constant 17 : index
    %291 = memref.load %arg2[%c17] : memref<108xf32, #tpu.memory_space<smem>>
    %292 = vector.broadcast %291 : f32 to vector<8x128xf32>
    %293 = arith.mulf %292, %282 : vector<8x128xf32>
    %294 = arith.addf %256, %293 : vector<8x128xf32>
    %c51 = arith.constant 51 : index
    %295 = memref.load %arg2[%c51] : memref<108xf32, #tpu.memory_space<smem>>
    %296 = vector.broadcast %295 : f32 to vector<8x128xf32>
    %297 = arith.mulf %296, %282 : vector<8x128xf32>
    %298 = arith.addf %260, %297 : vector<8x128xf32>
    %c52 = arith.constant 52 : index
    %299 = memref.load %arg2[%c52] : memref<108xf32, #tpu.memory_space<smem>>
    %300 = vector.broadcast %299 : f32 to vector<8x128xf32>
    %301 = arith.mulf %300, %282 : vector<8x128xf32>
    %302 = arith.addf %264, %301 : vector<8x128xf32>
    %c53 = arith.constant 53 : index
    %303 = memref.load %arg2[%c53] : memref<108xf32, #tpu.memory_space<smem>>
    %304 = vector.broadcast %303 : f32 to vector<8x128xf32>
    %305 = arith.mulf %304, %282 : vector<8x128xf32>
    %306 = arith.addf %268, %305 : vector<8x128xf32>
    %c87 = arith.constant 87 : index
    %307 = memref.load %arg2[%c87] : memref<108xf32, #tpu.memory_space<smem>>
    %308 = vector.broadcast %307 : f32 to vector<8x128xf32>
    %309 = arith.mulf %308, %282 : vector<8x128xf32>
    %310 = arith.addf %272, %309 : vector<8x128xf32>
    %c88 = arith.constant 88 : index
    %311 = memref.load %arg2[%c88] : memref<108xf32, #tpu.memory_space<smem>>
    %312 = vector.broadcast %311 : f32 to vector<8x128xf32>
    %313 = arith.mulf %312, %282 : vector<8x128xf32>
    %314 = arith.addf %276, %313 : vector<8x128xf32>
    %c89 = arith.constant 89 : index
    %315 = memref.load %arg2[%c89] : memref<108xf32, #tpu.memory_space<smem>>
    %316 = vector.broadcast %315 : f32 to vector<8x128xf32>
    %317 = arith.mulf %316, %282 : vector<8x128xf32>
    %318 = arith.addf %280, %317 : vector<8x128xf32>
    %c2_96 = arith.constant 2 : index
    %c7_97 = arith.constant 7 : index
    %c0_98 = arith.constant 0 : index
    %319 = vector.load %arg7[%c2_96, %c7_97, %c0_98] : memref<3x41x128xf32, #tpu.memory_space<vmem>>, vector<1x8x128xf32>
    %320 = vector.shape_cast %319 : vector<1x8x128xf32> to vector<8x128xf32>
    %c18 = arith.constant 18 : index
    %321 = memref.load %arg2[%c18] : memref<108xf32, #tpu.memory_space<smem>>
    %322 = vector.broadcast %321 : f32 to vector<8x128xf32>
    %323 = arith.mulf %322, %320 : vector<8x128xf32>
    %324 = arith.addf %286, %323 : vector<8x128xf32>
    %c19 = arith.constant 19 : index
    %325 = memref.load %arg2[%c19] : memref<108xf32, #tpu.memory_space<smem>>
    %326 = vector.broadcast %325 : f32 to vector<8x128xf32>
    %327 = arith.mulf %326, %320 : vector<8x128xf32>
    %328 = arith.addf %290, %327 : vector<8x128xf32>
    %c20 = arith.constant 20 : index
    %329 = memref.load %arg2[%c20] : memref<108xf32, #tpu.memory_space<smem>>
    %330 = vector.broadcast %329 : f32 to vector<8x128xf32>
    %331 = arith.mulf %330, %320 : vector<8x128xf32>
    %332 = arith.addf %294, %331 : vector<8x128xf32>
    %c54 = arith.constant 54 : index
    %333 = memref.load %arg2[%c54] : memref<108xf32, #tpu.memory_space<smem>>
    %334 = vector.broadcast %333 : f32 to vector<8x128xf32>
    %335 = arith.mulf %334, %320 : vector<8x128xf32>
    %336 = arith.addf %298, %335 : vector<8x128xf32>
    %c55 = arith.constant 55 : index
    %337 = memref.load %arg2[%c55] : memref<108xf32, #tpu.memory_space<smem>>
    %338 = vector.broadcast %337 : f32 to vector<8x128xf32>
    %339 = arith.mulf %338, %320 : vector<8x128xf32>
    %340 = arith.addf %302, %339 : vector<8x128xf32>
    %c56 = arith.constant 56 : index
    %341 = memref.load %arg2[%c56] : memref<108xf32, #tpu.memory_space<smem>>
    %342 = vector.broadcast %341 : f32 to vector<8x128xf32>
    %343 = arith.mulf %342, %320 : vector<8x128xf32>
    %344 = arith.addf %306, %343 : vector<8x128xf32>
    %c90 = arith.constant 90 : index
    %345 = memref.load %arg2[%c90] : memref<108xf32, #tpu.memory_space<smem>>
    %346 = vector.broadcast %345 : f32 to vector<8x128xf32>
    %347 = arith.mulf %346, %320 : vector<8x128xf32>
    %348 = arith.addf %310, %347 : vector<8x128xf32>
    %c91 = arith.constant 91 : index
    %349 = memref.load %arg2[%c91] : memref<108xf32, #tpu.memory_space<smem>>
    %350 = vector.broadcast %349 : f32 to vector<8x128xf32>
    %351 = arith.mulf %350, %320 : vector<8x128xf32>
    %352 = arith.addf %314, %351 : vector<8x128xf32>
    %c92 = arith.constant 92 : index
    %353 = memref.load %arg2[%c92] : memref<108xf32, #tpu.memory_space<smem>>
    %354 = vector.broadcast %353 : f32 to vector<8x128xf32>
    %355 = arith.mulf %354, %320 : vector<8x128xf32>
    %356 = arith.addf %318, %355 : vector<8x128xf32>
    %c2_99 = arith.constant 2 : index
    %c8_100 = arith.constant 8 : index
    %c0_101 = arith.constant 0 : index
    %357 = vector.load %arg7[%c2_99, %c8_100, %c0_101] : memref<3x41x128xf32, #tpu.memory_space<vmem>>, vector<1x8x128xf32>
    %358 = vector.shape_cast %357 : vector<1x8x128xf32> to vector<8x128xf32>
    %c21 = arith.constant 21 : index
    %359 = memref.load %arg2[%c21] : memref<108xf32, #tpu.memory_space<smem>>
    %360 = vector.broadcast %359 : f32 to vector<8x128xf32>
    %361 = arith.mulf %360, %358 : vector<8x128xf32>
    %362 = arith.addf %324, %361 : vector<8x128xf32>
    %c22 = arith.constant 22 : index
    %363 = memref.load %arg2[%c22] : memref<108xf32, #tpu.memory_space<smem>>
    %364 = vector.broadcast %363 : f32 to vector<8x128xf32>
    %365 = arith.mulf %364, %358 : vector<8x128xf32>
    %366 = arith.addf %328, %365 : vector<8x128xf32>
    %c23 = arith.constant 23 : index
    %367 = memref.load %arg2[%c23] : memref<108xf32, #tpu.memory_space<smem>>
    %368 = vector.broadcast %367 : f32 to vector<8x128xf32>
    %369 = arith.mulf %368, %358 : vector<8x128xf32>
    %370 = arith.addf %332, %369 : vector<8x128xf32>
    %c57 = arith.constant 57 : index
    %371 = memref.load %arg2[%c57] : memref<108xf32, #tpu.memory_space<smem>>
    %372 = vector.broadcast %371 : f32 to vector<8x128xf32>
    %373 = arith.mulf %372, %358 : vector<8x128xf32>
    %374 = arith.addf %336, %373 : vector<8x128xf32>
    %c58 = arith.constant 58 : index
    %375 = memref.load %arg2[%c58] : memref<108xf32, #tpu.memory_space<smem>>
    %376 = vector.broadcast %375 : f32 to vector<8x128xf32>
    %377 = arith.mulf %376, %358 : vector<8x128xf32>
    %378 = arith.addf %340, %377 : vector<8x128xf32>
    %c59 = arith.constant 59 : index
    %379 = memref.load %arg2[%c59] : memref<108xf32, #tpu.memory_space<smem>>
    %380 = vector.broadcast %379 : f32 to vector<8x128xf32>
    %381 = arith.mulf %380, %358 : vector<8x128xf32>
    %382 = arith.addf %344, %381 : vector<8x128xf32>
    %c93 = arith.constant 93 : index
    %383 = memref.load %arg2[%c93] : memref<108xf32, #tpu.memory_space<smem>>
    %384 = vector.broadcast %383 : f32 to vector<8x128xf32>
    %385 = arith.mulf %384, %358 : vector<8x128xf32>
    %386 = arith.addf %348, %385 : vector<8x128xf32>
    %c94 = arith.constant 94 : index
    %387 = memref.load %arg2[%c94] : memref<108xf32, #tpu.memory_space<smem>>
    %388 = vector.broadcast %387 : f32 to vector<8x128xf32>
    %389 = arith.mulf %388, %358 : vector<8x128xf32>
    %390 = arith.addf %352, %389 : vector<8x128xf32>
    %c95 = arith.constant 95 : index
    %391 = memref.load %arg2[%c95] : memref<108xf32, #tpu.memory_space<smem>>
    %392 = vector.broadcast %391 : f32 to vector<8x128xf32>
    %393 = arith.mulf %392, %358 : vector<8x128xf32>
    %394 = arith.addf %356, %393 : vector<8x128xf32>
    %c2_102 = arith.constant 2 : index
    %c9_103 = arith.constant 9 : index
    %c0_104 = arith.constant 0 : index
    %395 = vector.load %arg7[%c2_102, %c9_103, %c0_104] : memref<3x41x128xf32, #tpu.memory_space<vmem>>, vector<1x8x128xf32>
    %396 = vector.shape_cast %395 : vector<1x8x128xf32> to vector<8x128xf32>
    %c24 = arith.constant 24 : index
    %397 = memref.load %arg2[%c24] : memref<108xf32, #tpu.memory_space<smem>>
    %398 = vector.broadcast %397 : f32 to vector<8x128xf32>
    %399 = arith.mulf %398, %396 : vector<8x128xf32>
    %400 = arith.addf %362, %399 : vector<8x128xf32>
    %c25 = arith.constant 25 : index
    %401 = memref.load %arg2[%c25] : memref<108xf32, #tpu.memory_space<smem>>
    %402 = vector.broadcast %401 : f32 to vector<8x128xf32>
    %403 = arith.mulf %402, %396 : vector<8x128xf32>
    %404 = arith.addf %366, %403 : vector<8x128xf32>
    %c26 = arith.constant 26 : index
    %405 = memref.load %arg2[%c26] : memref<108xf32, #tpu.memory_space<smem>>
    %406 = vector.broadcast %405 : f32 to vector<8x128xf32>
    %407 = arith.mulf %406, %396 : vector<8x128xf32>
    %408 = arith.addf %370, %407 : vector<8x128xf32>
    %c60 = arith.constant 60 : index
    %409 = memref.load %arg2[%c60] : memref<108xf32, #tpu.memory_space<smem>>
    %410 = vector.broadcast %409 : f32 to vector<8x128xf32>
    %411 = arith.mulf %410, %396 : vector<8x128xf32>
    %412 = arith.addf %374, %411 : vector<8x128xf32>
    %c61 = arith.constant 61 : index
    %413 = memref.load %arg2[%c61] : memref<108xf32, #tpu.memory_space<smem>>
    %414 = vector.broadcast %413 : f32 to vector<8x128xf32>
    %415 = arith.mulf %414, %396 : vector<8x128xf32>
    %416 = arith.addf %378, %415 : vector<8x128xf32>
    %c62 = arith.constant 62 : index
    %417 = memref.load %arg2[%c62] : memref<108xf32, #tpu.memory_space<smem>>
    %418 = vector.broadcast %417 : f32 to vector<8x128xf32>
    %419 = arith.mulf %418, %396 : vector<8x128xf32>
    %420 = arith.addf %382, %419 : vector<8x128xf32>
    %c96 = arith.constant 96 : index
    %421 = memref.load %arg2[%c96] : memref<108xf32, #tpu.memory_space<smem>>
    %422 = vector.broadcast %421 : f32 to vector<8x128xf32>
    %423 = arith.mulf %422, %396 : vector<8x128xf32>
    %424 = arith.addf %386, %423 : vector<8x128xf32>
    %c97 = arith.constant 97 : index
    %425 = memref.load %arg2[%c97] : memref<108xf32, #tpu.memory_space<smem>>
    %426 = vector.broadcast %425 : f32 to vector<8x128xf32>
    %427 = arith.mulf %426, %396 : vector<8x128xf32>
    %428 = arith.addf %390, %427 : vector<8x128xf32>
    %c98 = arith.constant 98 : index
    %429 = memref.load %arg2[%c98] : memref<108xf32, #tpu.memory_space<smem>>
    %430 = vector.broadcast %429 : f32 to vector<8x128xf32>
    %431 = arith.mulf %430, %396 : vector<8x128xf32>
    %432 = arith.addf %394, %431 : vector<8x128xf32>
    %c7_105 = arith.constant 7 : index
    %c0_106 = arith.constant 0 : index
    %433 = vector.load %arg8[%c7_105, %c0_106] : memref<41x128xf32, #tpu.memory_space<vmem>>, vector<8x128xf32>
    %c27 = arith.constant 27 : index
    %434 = memref.load %arg2[%c27] : memref<108xf32, #tpu.memory_space<smem>>
    %435 = vector.broadcast %434 : f32 to vector<8x128xf32>
    %436 = arith.mulf %435, %433 : vector<8x128xf32>
    %437 = arith.addf %400, %436 : vector<8x128xf32>
    %c28 = arith.constant 28 : index
    %438 = memref.load %arg2[%c28] : memref<108xf32, #tpu.memory_space<smem>>
    %439 = vector.broadcast %438 : f32 to vector<8x128xf32>
    %440 = arith.mulf %439, %433 : vector<8x128xf32>
    %441 = arith.addf %404, %440 : vector<8x128xf32>
    %c29 = arith.constant 29 : index
    %442 = memref.load %arg2[%c29] : memref<108xf32, #tpu.memory_space<smem>>
    %443 = vector.broadcast %442 : f32 to vector<8x128xf32>
    %444 = arith.mulf %443, %433 : vector<8x128xf32>
    %445 = arith.addf %408, %444 : vector<8x128xf32>
    %c63 = arith.constant 63 : index
    %446 = memref.load %arg2[%c63] : memref<108xf32, #tpu.memory_space<smem>>
    %447 = vector.broadcast %446 : f32 to vector<8x128xf32>
    %448 = arith.mulf %447, %433 : vector<8x128xf32>
    %449 = arith.addf %412, %448 : vector<8x128xf32>
    %c64 = arith.constant 64 : index
    %450 = memref.load %arg2[%c64] : memref<108xf32, #tpu.memory_space<smem>>
    %451 = vector.broadcast %450 : f32 to vector<8x128xf32>
    %452 = arith.mulf %451, %433 : vector<8x128xf32>
    %453 = arith.addf %416, %452 : vector<8x128xf32>
    %c65 = arith.constant 65 : index
    %454 = memref.load %arg2[%c65] : memref<108xf32, #tpu.memory_space<smem>>
    %455 = vector.broadcast %454 : f32 to vector<8x128xf32>
    %456 = arith.mulf %455, %433 : vector<8x128xf32>
    %457 = arith.addf %420, %456 : vector<8x128xf32>
    %c99 = arith.constant 99 : index
    %458 = memref.load %arg2[%c99] : memref<108xf32, #tpu.memory_space<smem>>
    %459 = vector.broadcast %458 : f32 to vector<8x128xf32>
    %460 = arith.mulf %459, %433 : vector<8x128xf32>
    %461 = arith.addf %424, %460 : vector<8x128xf32>
    %c100 = arith.constant 100 : index
    %462 = memref.load %arg2[%c100] : memref<108xf32, #tpu.memory_space<smem>>
    %463 = vector.broadcast %462 : f32 to vector<8x128xf32>
    %464 = arith.mulf %463, %433 : vector<8x128xf32>
    %465 = arith.addf %428, %464 : vector<8x128xf32>
    %c101 = arith.constant 101 : index
    %466 = memref.load %arg2[%c101] : memref<108xf32, #tpu.memory_space<smem>>
    %467 = vector.broadcast %466 : f32 to vector<8x128xf32>
    %468 = arith.mulf %467, %433 : vector<8x128xf32>
    %469 = arith.addf %432, %468 : vector<8x128xf32>
    %c8_107 = arith.constant 8 : index
    %c0_108 = arith.constant 0 : index
    %470 = vector.load %arg8[%c8_107, %c0_108] : memref<41x128xf32, #tpu.memory_space<vmem>>, vector<8x128xf32>
    %c30 = arith.constant 30 : index
    %471 = memref.load %arg2[%c30] : memref<108xf32, #tpu.memory_space<smem>>
    %472 = vector.broadcast %471 : f32 to vector<8x128xf32>
    %473 = arith.mulf %472, %470 : vector<8x128xf32>
    %474 = arith.addf %437, %473 : vector<8x128xf32>
    %c31 = arith.constant 31 : index
    %475 = memref.load %arg2[%c31] : memref<108xf32, #tpu.memory_space<smem>>
    %476 = vector.broadcast %475 : f32 to vector<8x128xf32>
    %477 = arith.mulf %476, %470 : vector<8x128xf32>
    %478 = arith.addf %441, %477 : vector<8x128xf32>
    %c32 = arith.constant 32 : index
    %479 = memref.load %arg2[%c32] : memref<108xf32, #tpu.memory_space<smem>>
    %480 = vector.broadcast %479 : f32 to vector<8x128xf32>
    %481 = arith.mulf %480, %470 : vector<8x128xf32>
    %482 = arith.addf %445, %481 : vector<8x128xf32>
    %c66 = arith.constant 66 : index
    %483 = memref.load %arg2[%c66] : memref<108xf32, #tpu.memory_space<smem>>
    %484 = vector.broadcast %483 : f32 to vector<8x128xf32>
    %485 = arith.mulf %484, %470 : vector<8x128xf32>
    %486 = arith.addf %449, %485 : vector<8x128xf32>
    %c67 = arith.constant 67 : index
    %487 = memref.load %arg2[%c67] : memref<108xf32, #tpu.memory_space<smem>>
    %488 = vector.broadcast %487 : f32 to vector<8x128xf32>
    %489 = arith.mulf %488, %470 : vector<8x128xf32>
    %490 = arith.addf %453, %489 : vector<8x128xf32>
    %c68 = arith.constant 68 : index
    %491 = memref.load %arg2[%c68] : memref<108xf32, #tpu.memory_space<smem>>
    %492 = vector.broadcast %491 : f32 to vector<8x128xf32>
    %493 = arith.mulf %492, %470 : vector<8x128xf32>
    %494 = arith.addf %457, %493 : vector<8x128xf32>
    %c102 = arith.constant 102 : index
    %495 = memref.load %arg2[%c102] : memref<108xf32, #tpu.memory_space<smem>>
    %496 = vector.broadcast %495 : f32 to vector<8x128xf32>
    %497 = arith.mulf %496, %470 : vector<8x128xf32>
    %498 = arith.addf %461, %497 : vector<8x128xf32>
    %c103 = arith.constant 103 : index
    %499 = memref.load %arg2[%c103] : memref<108xf32, #tpu.memory_space<smem>>
    %500 = vector.broadcast %499 : f32 to vector<8x128xf32>
    %501 = arith.mulf %500, %470 : vector<8x128xf32>
    %502 = arith.addf %465, %501 : vector<8x128xf32>
    %c104 = arith.constant 104 : index
    %503 = memref.load %arg2[%c104] : memref<108xf32, #tpu.memory_space<smem>>
    %504 = vector.broadcast %503 : f32 to vector<8x128xf32>
    %505 = arith.mulf %504, %470 : vector<8x128xf32>
    %506 = arith.addf %469, %505 : vector<8x128xf32>
    %c9_109 = arith.constant 9 : index
    %c0_110 = arith.constant 0 : index
    %507 = vector.load %arg8[%c9_109, %c0_110] : memref<41x128xf32, #tpu.memory_space<vmem>>, vector<8x128xf32>
    %c33 = arith.constant 33 : index
    %508 = memref.load %arg2[%c33] : memref<108xf32, #tpu.memory_space<smem>>
    %509 = vector.broadcast %508 : f32 to vector<8x128xf32>
    %510 = arith.mulf %509, %507 : vector<8x128xf32>
    %511 = arith.addf %474, %510 : vector<8x128xf32>
    %c34 = arith.constant 34 : index
    %512 = memref.load %arg2[%c34] : memref<108xf32, #tpu.memory_space<smem>>
    %513 = vector.broadcast %512 : f32 to vector<8x128xf32>
    %514 = arith.mulf %513, %507 : vector<8x128xf32>
    %515 = arith.addf %478, %514 : vector<8x128xf32>
    %c35 = arith.constant 35 : index
    %516 = memref.load %arg2[%c35] : memref<108xf32, #tpu.memory_space<smem>>
    %517 = vector.broadcast %516 : f32 to vector<8x128xf32>
    %518 = arith.mulf %517, %507 : vector<8x128xf32>
    %519 = arith.addf %482, %518 : vector<8x128xf32>
    %c69 = arith.constant 69 : index
    %520 = memref.load %arg2[%c69] : memref<108xf32, #tpu.memory_space<smem>>
    %521 = vector.broadcast %520 : f32 to vector<8x128xf32>
    %522 = arith.mulf %521, %507 : vector<8x128xf32>
    %523 = arith.addf %486, %522 : vector<8x128xf32>
    %c70 = arith.constant 70 : index
    %524 = memref.load %arg2[%c70] : memref<108xf32, #tpu.memory_space<smem>>
    %525 = vector.broadcast %524 : f32 to vector<8x128xf32>
    %526 = arith.mulf %525, %507 : vector<8x128xf32>
    %527 = arith.addf %490, %526 : vector<8x128xf32>
    %c71 = arith.constant 71 : index
    %528 = memref.load %arg2[%c71] : memref<108xf32, #tpu.memory_space<smem>>
    %529 = vector.broadcast %528 : f32 to vector<8x128xf32>
    %530 = arith.mulf %529, %507 : vector<8x128xf32>
    %531 = arith.addf %494, %530 : vector<8x128xf32>
    %c105 = arith.constant 105 : index
    %532 = memref.load %arg2[%c105] : memref<108xf32, #tpu.memory_space<smem>>
    %533 = vector.broadcast %532 : f32 to vector<8x128xf32>
    %534 = arith.mulf %533, %507 : vector<8x128xf32>
    %535 = arith.addf %498, %534 : vector<8x128xf32>
    %c106 = arith.constant 106 : index
    %536 = memref.load %arg2[%c106] : memref<108xf32, #tpu.memory_space<smem>>
    %537 = vector.broadcast %536 : f32 to vector<8x128xf32>
    %538 = arith.mulf %537, %507 : vector<8x128xf32>
    %539 = arith.addf %502, %538 : vector<8x128xf32>
    %c107 = arith.constant 107 : index
    %540 = memref.load %arg2[%c107] : memref<108xf32, #tpu.memory_space<smem>>
    %541 = vector.broadcast %540 : f32 to vector<8x128xf32>
    %542 = arith.mulf %541, %507 : vector<8x128xf32>
    %543 = arith.addf %506, %542 : vector<8x128xf32>
    %544 = vector.extract_strided_slice %511 {offsets = [0, 0], sizes = [8, 127], strides = [1, 1]} : vector<8x128xf32> to vector<8x127xf32>
    %545 = tpu.concatenate %78, %544 in 1 : vector<8x1xf32>, vector<8x127xf32> -> vector<8x128xf32>
    %546 = vector.extract_strided_slice %519 {offsets = [0, 1], sizes = [8, 127], strides = [1, 1]} : vector<8x128xf32> to vector<8x127xf32>
    %547 = tpu.concatenate %546, %78 in 1 : vector<8x127xf32>, vector<8x1xf32> -> vector<8x128xf32>
    %548 = arith.addf %515, %545 : vector<8x128xf32>
    %549 = arith.addf %548, %547 : vector<8x128xf32>
    %cst_111 = arith.constant 0.000000e+00 : f32
    %550 = vector.broadcast %cst_111 : f32 to vector<8x128xf32>
    %551 = arith.subf %550, %549 : vector<8x128xf32>
    %552 = math.exp %551 : vector<8x128xf32>
    %cst_112 = arith.constant 1.000000e+00 : f32
    %553 = vector.broadcast %cst_112 : f32 to vector<8x128xf32>
    %554 = arith.addf %553, %552 : vector<8x128xf32>
    %cst_113 = arith.constant 2.550000e+02 : f32
    %555 = vector.broadcast %cst_113 : f32 to vector<8x128xf32>
    %556 = arith.divf %555, %554 : vector<8x128xf32>
    %cst_114 = arith.constant 0.000000e+00 : f32
    %cst_115 = arith.constant 2.550000e+02 : f32
    %557 = vector.broadcast %cst_114 : f32 to vector<8x128xf32>
    %558 = arith.maximumf %557, %556 : vector<8x128xf32>
    %559 = vector.broadcast %cst_115 : f32 to vector<8x128xf32>
    %560 = arith.minimumf %559, %558 : vector<8x128xf32>
    %c0_116 = arith.constant 0 : index
    %c0_117 = arith.constant 0 : index
    %c0_118 = arith.constant 0 : index
    %c0_119 = arith.constant 0 : index
    %561 = vector.load %arg6[%c0_116, %c0_117, %c0_118, %c0_119] : memref<1x3x32x128xf32, #tpu.memory_space<vmem>>, vector<1x1x8x128xf32>
    %562 = vector.shape_cast %561 : vector<1x1x8x128xf32> to vector<8x128xf32>
    %563 = vector.shape_cast %560 : vector<8x128xf32> to vector<1x1x8x128xf32>
    tpu.vector_store %arg6[%c0_116, %c0_117, %c0_118, %c0_119], %563 {strides = array<i32>} : memref<1x3x32x128xf32, #tpu.memory_space<vmem>>, vector<1x1x8x128xf32>,
    %564 = vector.extract_strided_slice %523 {offsets = [0, 0], sizes = [8, 127], strides = [1, 1]} : vector<8x128xf32> to vector<8x127xf32>
    %565 = tpu.concatenate %78, %564 in 1 : vector<8x1xf32>, vector<8x127xf32> -> vector<8x128xf32>
    %566 = vector.extract_strided_slice %531 {offsets = [0, 1], sizes = [8, 127], strides = [1, 1]} : vector<8x128xf32> to vector<8x127xf32>
    %567 = tpu.concatenate %566, %78 in 1 : vector<8x127xf32>, vector<8x1xf32> -> vector<8x128xf32>
    %568 = arith.addf %527, %565 : vector<8x128xf32>
    %569 = arith.addf %568, %567 : vector<8x128xf32>
    %cst_120 = arith.constant 0.000000e+00 : f32
    %570 = vector.broadcast %cst_120 : f32 to vector<8x128xf32>
    %571 = arith.subf %570, %569 : vector<8x128xf32>
    %572 = math.exp %571 : vector<8x128xf32>
    %cst_121 = arith.constant 1.000000e+00 : f32
    %573 = vector.broadcast %cst_121 : f32 to vector<8x128xf32>
    %574 = arith.addf %573, %572 : vector<8x128xf32>
    %cst_122 = arith.constant 2.550000e+02 : f32
    %575 = vector.broadcast %cst_122 : f32 to vector<8x128xf32>
    %576 = arith.divf %575, %574 : vector<8x128xf32>
    %cst_123 = arith.constant 0.000000e+00 : f32
    %cst_124 = arith.constant 2.550000e+02 : f32
    %577 = vector.broadcast %cst_123 : f32 to vector<8x128xf32>
    %578 = arith.maximumf %577, %576 : vector<8x128xf32>
    %579 = vector.broadcast %cst_124 : f32 to vector<8x128xf32>
    %580 = arith.minimumf %579, %578 : vector<8x128xf32>
    %c0_125 = arith.constant 0 : index
    %c1_126 = arith.constant 1 : index
    %c0_127 = arith.constant 0 : index
    %c0_128 = arith.constant 0 : index
    %581 = vector.load %arg6[%c0_125, %c1_126, %c0_127, %c0_128] : memref<1x3x32x128xf32, #tpu.memory_space<vmem>>, vector<1x1x8x128xf32>
    %582 = vector.shape_cast %581 : vector<1x1x8x128xf32> to vector<8x128xf32>
    %583 = vector.shape_cast %580 : vector<8x128xf32> to vector<1x1x8x128xf32>
    tpu.vector_store %arg6[%c0_125, %c1_126, %c0_127, %c0_128], %583 {strides = array<i32>} : memref<1x3x32x128xf32, #tpu.memory_space<vmem>>, vector<1x1x8x128xf32>,
    %584 = vector.extract_strided_slice %535 {offsets = [0, 0], sizes = [8, 127], strides = [1, 1]} : vector<8x128xf32> to vector<8x127xf32>
    %585 = tpu.concatenate %78, %584 in 1 : vector<8x1xf32>, vector<8x127xf32> -> vector<8x128xf32>
    %586 = vector.extract_strided_slice %543 {offsets = [0, 1], sizes = [8, 127], strides = [1, 1]} : vector<8x128xf32> to vector<8x127xf32>
    %587 = tpu.concatenate %586, %78 in 1 : vector<8x127xf32>, vector<8x1xf32> -> vector<8x128xf32>
    %588 = arith.addf %539, %585 : vector<8x128xf32>
    %589 = arith.addf %588, %587 : vector<8x128xf32>
    %cst_129 = arith.constant 0.000000e+00 : f32
    %590 = vector.broadcast %cst_129 : f32 to vector<8x128xf32>
    %591 = arith.subf %590, %589 : vector<8x128xf32>
    %592 = math.exp %591 : vector<8x128xf32>
    %cst_130 = arith.constant 1.000000e+00 : f32
    %593 = vector.broadcast %cst_130 : f32 to vector<8x128xf32>
    %594 = arith.addf %593, %592 : vector<8x128xf32>
    %cst_131 = arith.constant 2.550000e+02 : f32
    %595 = vector.broadcast %cst_131 : f32 to vector<8x128xf32>
    %596 = arith.divf %595, %594 : vector<8x128xf32>
    %cst_132 = arith.constant 0.000000e+00 : f32
    %cst_133 = arith.constant 2.550000e+02 : f32
    %597 = vector.broadcast %cst_132 : f32 to vector<8x128xf32>
    %598 = arith.maximumf %597, %596 : vector<8x128xf32>
    %599 = vector.broadcast %cst_133 : f32 to vector<8x128xf32>
    %600 = arith.minimumf %599, %598 : vector<8x128xf32>
    %c0_134 = arith.constant 0 : index
    %c2_135 = arith.constant 2 : index
    %c0_136 = arith.constant 0 : index
    %c0_137 = arith.constant 0 : index
    %601 = vector.load %arg6[%c0_134, %c2_135, %c0_136, %c0_137] : memref<1x3x32x128xf32, #tpu.memory_space<vmem>>, vector<1x1x8x128xf32>
    %602 = vector.shape_cast %601 : vector<1x1x8x128xf32> to vector<8x128xf32>
    %603 = vector.shape_cast %600 : vector<8x128xf32> to vector<1x1x8x128xf32>
    tpu.vector_store %arg6[%c0_134, %c2_135, %c0_136, %c0_137], %603 {strides = array<i32>} : memref<1x3x32x128xf32, #tpu.memory_space<vmem>>, vector<1x1x8x128xf32>,
    %cst_138 = arith.constant 0.000000e+00 : f32
    %604 = vector.broadcast %cst_138 : f32 to vector<8x1xf32>
    %cst_139 = arith.constant 0.000000e+00 : f32
    %605 = vector.broadcast %cst_139 : f32 to vector<8x128xf32>
    %cst_140 = arith.constant 0.000000e+00 : f32
    %606 = vector.broadcast %cst_140 : f32 to vector<8x128xf32>
    %cst_141 = arith.constant 0.000000e+00 : f32
    %607 = vector.broadcast %cst_141 : f32 to vector<8x128xf32>
    %c0_142 = arith.constant 0 : index
    %608 = memref.load %arg3[%c0_142] : memref<3xf32, #tpu.memory_space<smem>>
    %609 = vector.broadcast %608 : f32 to vector<8x128xf32>
    %c1_143 = arith.constant 1 : index
    %610 = memref.load %arg3[%c1_143] : memref<3xf32, #tpu.memory_space<smem>>
    %611 = vector.broadcast %610 : f32 to vector<8x128xf32>
    %c2_144 = arith.constant 2 : index
    %612 = memref.load %arg3[%c2_144] : memref<3xf32, #tpu.memory_space<smem>>
    %613 = vector.broadcast %612 : f32 to vector<8x128xf32>
    %cst_145 = arith.constant 0.000000e+00 : f32
    %614 = vector.broadcast %cst_145 : f32 to vector<8x128xf32>
    %cst_146 = arith.constant 0.000000e+00 : f32
    %615 = vector.broadcast %cst_146 : f32 to vector<8x128xf32>
    %cst_147 = arith.constant 0.000000e+00 : f32
    %616 = vector.broadcast %cst_147 : f32 to vector<8x128xf32>
    %c0_148 = arith.constant 0 : index
    %c15_149 = arith.constant 15 : index
    %c0_150 = arith.constant 0 : index
    %617 = vector.load %arg7[%c0_148, %c15_149, %c0_150] : memref<3x41x128xf32, #tpu.memory_space<vmem>>, vector<1x8x128xf32>
    %618 = vector.shape_cast %617 : vector<1x8x128xf32> to vector<8x128xf32>
    %c0_151 = arith.constant 0 : index
    %619 = memref.load %arg2[%c0_151] : memref<108xf32, #tpu.memory_space<smem>>
    %620 = vector.broadcast %619 : f32 to vector<8x128xf32>
    %621 = arith.mulf %620, %618 : vector<8x128xf32>
    %622 = arith.addf %605, %621 : vector<8x128xf32>
    %c1_152 = arith.constant 1 : index
    %623 = memref.load %arg2[%c1_152] : memref<108xf32, #tpu.memory_space<smem>>
    %624 = vector.broadcast %623 : f32 to vector<8x128xf32>
    %625 = arith.mulf %624, %618 : vector<8x128xf32>
    %626 = arith.addf %609, %625 : vector<8x128xf32>
    %c2_153 = arith.constant 2 : index
    %627 = memref.load %arg2[%c2_153] : memref<108xf32, #tpu.memory_space<smem>>
    %628 = vector.broadcast %627 : f32 to vector<8x128xf32>
    %629 = arith.mulf %628, %618 : vector<8x128xf32>
    %630 = arith.addf %614, %629 : vector<8x128xf32>
    %c36_154 = arith.constant 36 : index
    %631 = memref.load %arg2[%c36_154] : memref<108xf32, #tpu.memory_space<smem>>
    %632 = vector.broadcast %631 : f32 to vector<8x128xf32>
    %633 = arith.mulf %632, %618 : vector<8x128xf32>
    %634 = arith.addf %606, %633 : vector<8x128xf32>
    %c37_155 = arith.constant 37 : index
    %635 = memref.load %arg2[%c37_155] : memref<108xf32, #tpu.memory_space<smem>>
    %636 = vector.broadcast %635 : f32 to vector<8x128xf32>
    %637 = arith.mulf %636, %618 : vector<8x128xf32>
    %638 = arith.addf %611, %637 : vector<8x128xf32>
    %c38_156 = arith.constant 38 : index
    %639 = memref.load %arg2[%c38_156] : memref<108xf32, #tpu.memory_space<smem>>
    %640 = vector.broadcast %639 : f32 to vector<8x128xf32>
    %641 = arith.mulf %640, %618 : vector<8x128xf32>
    %642 = arith.addf %615, %641 : vector<8x128xf32>
    %c72_157 = arith.constant 72 : index
    %643 = memref.load %arg2[%c72_157] : memref<108xf32, #tpu.memory_space<smem>>
    %644 = vector.broadcast %643 : f32 to vector<8x128xf32>
    %645 = arith.mulf %644, %618 : vector<8x128xf32>
    %646 = arith.addf %607, %645 : vector<8x128xf32>
    %c73_158 = arith.constant 73 : index
    %647 = memref.load %arg2[%c73_158] : memref<108xf32, #tpu.memory_space<smem>>
    %648 = vector.broadcast %647 : f32 to vector<8x128xf32>
    %649 = arith.mulf %648, %618 : vector<8x128xf32>
    %650 = arith.addf %613, %649 : vector<8x128xf32>
    %c74_159 = arith.constant 74 : index
    %651 = memref.load %arg2[%c74_159] : memref<108xf32, #tpu.memory_space<smem>>
    %652 = vector.broadcast %651 : f32 to vector<8x128xf32>
    %653 = arith.mulf %652, %618 : vector<8x128xf32>
    %654 = arith.addf %616, %653 : vector<8x128xf32>
    %c0_160 = arith.constant 0 : index
    %c16_161 = arith.constant 16 : index
    %c0_162 = arith.constant 0 : index
    %655 = vector.load %arg7[%c0_160, %c16_161, %c0_162] : memref<3x41x128xf32, #tpu.memory_space<vmem>>, vector<1x8x128xf32>
    %656 = vector.shape_cast %655 : vector<1x8x128xf32> to vector<8x128xf32>
    %c3_163 = arith.constant 3 : index
    %657 = memref.load %arg2[%c3_163] : memref<108xf32, #tpu.memory_space<smem>>
    %658 = vector.broadcast %657 : f32 to vector<8x128xf32>
    %659 = arith.mulf %658, %656 : vector<8x128xf32>
    %660 = arith.addf %622, %659 : vector<8x128xf32>
    %c4_164 = arith.constant 4 : index
    %661 = memref.load %arg2[%c4_164] : memref<108xf32, #tpu.memory_space<smem>>
    %662 = vector.broadcast %661 : f32 to vector<8x128xf32>
    %663 = arith.mulf %662, %656 : vector<8x128xf32>
    %664 = arith.addf %626, %663 : vector<8x128xf32>
    %c5_165 = arith.constant 5 : index
    %665 = memref.load %arg2[%c5_165] : memref<108xf32, #tpu.memory_space<smem>>
    %666 = vector.broadcast %665 : f32 to vector<8x128xf32>
    %667 = arith.mulf %666, %656 : vector<8x128xf32>
    %668 = arith.addf %630, %667 : vector<8x128xf32>
    %c39_166 = arith.constant 39 : index
    %669 = memref.load %arg2[%c39_166] : memref<108xf32, #tpu.memory_space<smem>>
    %670 = vector.broadcast %669 : f32 to vector<8x128xf32>
    %671 = arith.mulf %670, %656 : vector<8x128xf32>
    %672 = arith.addf %634, %671 : vector<8x128xf32>
    %c40_167 = arith.constant 40 : index
    %673 = memref.load %arg2[%c40_167] : memref<108xf32, #tpu.memory_space<smem>>
    %674 = vector.broadcast %673 : f32 to vector<8x128xf32>
    %675 = arith.mulf %674, %656 : vector<8x128xf32>
    %676 = arith.addf %638, %675 : vector<8x128xf32>
    %c41_168 = arith.constant 41 : index
    %677 = memref.load %arg2[%c41_168] : memref<108xf32, #tpu.memory_space<smem>>
    %678 = vector.broadcast %677 : f32 to vector<8x128xf32>
    %679 = arith.mulf %678, %656 : vector<8x128xf32>
    %680 = arith.addf %642, %679 : vector<8x128xf32>
    %c75_169 = arith.constant 75 : index
    %681 = memref.load %arg2[%c75_169] : memref<108xf32, #tpu.memory_space<smem>>
    %682 = vector.broadcast %681 : f32 to vector<8x128xf32>
    %683 = arith.mulf %682, %656 : vector<8x128xf32>
    %684 = arith.addf %646, %683 : vector<8x128xf32>
    %c76_170 = arith.constant 76 : index
    %685 = memref.load %arg2[%c76_170] : memref<108xf32, #tpu.memory_space<smem>>
    %686 = vector.broadcast %685 : f32 to vector<8x128xf32>
    %687 = arith.mulf %686, %656 : vector<8x128xf32>
    %688 = arith.addf %650, %687 : vector<8x128xf32>
    %c77_171 = arith.constant 77 : index
    %689 = memref.load %arg2[%c77_171] : memref<108xf32, #tpu.memory_space<smem>>
    %690 = vector.broadcast %689 : f32 to vector<8x128xf32>
    %691 = arith.mulf %690, %656 : vector<8x128xf32>
    %692 = arith.addf %654, %691 : vector<8x128xf32>
    %c0_172 = arith.constant 0 : index
    %c17_173 = arith.constant 17 : index
    %c0_174 = arith.constant 0 : index
    %693 = vector.load %arg7[%c0_172, %c17_173, %c0_174] : memref<3x41x128xf32, #tpu.memory_space<vmem>>, vector<1x8x128xf32>
    %694 = vector.shape_cast %693 : vector<1x8x128xf32> to vector<8x128xf32>
    %c6_175 = arith.constant 6 : index
    %695 = memref.load %arg2[%c6_175] : memref<108xf32, #tpu.memory_space<smem>>
    %696 = vector.broadcast %695 : f32 to vector<8x128xf32>
    %697 = arith.mulf %696, %694 : vector<8x128xf32>
    %698 = arith.addf %660, %697 : vector<8x128xf32>
    %c7_176 = arith.constant 7 : index
    %699 = memref.load %arg2[%c7_176] : memref<108xf32, #tpu.memory_space<smem>>
    %700 = vector.broadcast %699 : f32 to vector<8x128xf32>
    %701 = arith.mulf %700, %694 : vector<8x128xf32>
    %702 = arith.addf %664, %701 : vector<8x128xf32>
    %c8_177 = arith.constant 8 : index
    %703 = memref.load %arg2[%c8_177] : memref<108xf32, #tpu.memory_space<smem>>
    %704 = vector.broadcast %703 : f32 to vector<8x128xf32>
    %705 = arith.mulf %704, %694 : vector<8x128xf32>
    %706 = arith.addf %668, %705 : vector<8x128xf32>
    %c42_178 = arith.constant 42 : index
    %707 = memref.load %arg2[%c42_178] : memref<108xf32, #tpu.memory_space<smem>>
    %708 = vector.broadcast %707 : f32 to vector<8x128xf32>
    %709 = arith.mulf %708, %694 : vector<8x128xf32>
    %710 = arith.addf %672, %709 : vector<8x128xf32>
    %c43_179 = arith.constant 43 : index
    %711 = memref.load %arg2[%c43_179] : memref<108xf32, #tpu.memory_space<smem>>
    %712 = vector.broadcast %711 : f32 to vector<8x128xf32>
    %713 = arith.mulf %712, %694 : vector<8x128xf32>
    %714 = arith.addf %676, %713 : vector<8x128xf32>
    %c44_180 = arith.constant 44 : index
    %715 = memref.load %arg2[%c44_180] : memref<108xf32, #tpu.memory_space<smem>>
    %716 = vector.broadcast %715 : f32 to vector<8x128xf32>
    %717 = arith.mulf %716, %694 : vector<8x128xf32>
    %718 = arith.addf %680, %717 : vector<8x128xf32>
    %c78_181 = arith.constant 78 : index
    %719 = memref.load %arg2[%c78_181] : memref<108xf32, #tpu.memory_space<smem>>
    %720 = vector.broadcast %719 : f32 to vector<8x128xf32>
    %721 = arith.mulf %720, %694 : vector<8x128xf32>
    %722 = arith.addf %684, %721 : vector<8x128xf32>
    %c79_182 = arith.constant 79 : index
    %723 = memref.load %arg2[%c79_182] : memref<108xf32, #tpu.memory_space<smem>>
    %724 = vector.broadcast %723 : f32 to vector<8x128xf32>
    %725 = arith.mulf %724, %694 : vector<8x128xf32>
    %726 = arith.addf %688, %725 : vector<8x128xf32>
    %c80_183 = arith.constant 80 : index
    %727 = memref.load %arg2[%c80_183] : memref<108xf32, #tpu.memory_space<smem>>
    %728 = vector.broadcast %727 : f32 to vector<8x128xf32>
    %729 = arith.mulf %728, %694 : vector<8x128xf32>
    %730 = arith.addf %692, %729 : vector<8x128xf32>
    %c1_184 = arith.constant 1 : index
    %c15_185 = arith.constant 15 : index
    %c0_186 = arith.constant 0 : index
    %731 = vector.load %arg7[%c1_184, %c15_185, %c0_186] : memref<3x41x128xf32, #tpu.memory_space<vmem>>, vector<1x8x128xf32>
    %732 = vector.shape_cast %731 : vector<1x8x128xf32> to vector<8x128xf32>
    %c9_187 = arith.constant 9 : index
    %733 = memref.load %arg2[%c9_187] : memref<108xf32, #tpu.memory_space<smem>>
    %734 = vector.broadcast %733 : f32 to vector<8x128xf32>
    %735 = arith.mulf %734, %732 : vector<8x128xf32>
    %736 = arith.addf %698, %735 : vector<8x128xf32>
    %c10_188 = arith.constant 10 : index
    %737 = memref.load %arg2[%c10_188] : memref<108xf32, #tpu.memory_space<smem>>
    %738 = vector.broadcast %737 : f32 to vector<8x128xf32>
    %739 = arith.mulf %738, %732 : vector<8x128xf32>
    %740 = arith.addf %702, %739 : vector<8x128xf32>
    %c11_189 = arith.constant 11 : index
    %741 = memref.load %arg2[%c11_189] : memref<108xf32, #tpu.memory_space<smem>>
    %742 = vector.broadcast %741 : f32 to vector<8x128xf32>
    %743 = arith.mulf %742, %732 : vector<8x128xf32>
    %744 = arith.addf %706, %743 : vector<8x128xf32>
    %c45_190 = arith.constant 45 : index
    %745 = memref.load %arg2[%c45_190] : memref<108xf32, #tpu.memory_space<smem>>
    %746 = vector.broadcast %745 : f32 to vector<8x128xf32>
    %747 = arith.mulf %746, %732 : vector<8x128xf32>
    %748 = arith.addf %710, %747 : vector<8x128xf32>
    %c46_191 = arith.constant 46 : index
    %749 = memref.load %arg2[%c46_191] : memref<108xf32, #tpu.memory_space<smem>>
    %750 = vector.broadcast %749 : f32 to vector<8x128xf32>
    %751 = arith.mulf %750, %732 : vector<8x128xf32>
    %752 = arith.addf %714, %751 : vector<8x128xf32>
    %c47_192 = arith.constant 47 : index
    %753 = memref.load %arg2[%c47_192] : memref<108xf32, #tpu.memory_space<smem>>
    %754 = vector.broadcast %753 : f32 to vector<8x128xf32>
    %755 = arith.mulf %754, %732 : vector<8x128xf32>
    %756 = arith.addf %718, %755 : vector<8x128xf32>
    %c81_193 = arith.constant 81 : index
    %757 = memref.load %arg2[%c81_193] : memref<108xf32, #tpu.memory_space<smem>>
    %758 = vector.broadcast %757 : f32 to vector<8x128xf32>
    %759 = arith.mulf %758, %732 : vector<8x128xf32>
    %760 = arith.addf %722, %759 : vector<8x128xf32>
    %c82_194 = arith.constant 82 : index
    %761 = memref.load %arg2[%c82_194] : memref<108xf32, #tpu.memory_space<smem>>
    %762 = vector.broadcast %761 : f32 to vector<8x128xf32>
    %763 = arith.mulf %762, %732 : vector<8x128xf32>
    %764 = arith.addf %726, %763 : vector<8x128xf32>
    %c83_195 = arith.constant 83 : index
    %765 = memref.load %arg2[%c83_195] : memref<108xf32, #tpu.memory_space<smem>>
    %766 = vector.broadcast %765 : f32 to vector<8x128xf32>
    %767 = arith.mulf %766, %732 : vector<8x128xf32>
    %768 = arith.addf %730, %767 : vector<8x128xf32>
    %c1_196 = arith.constant 1 : index
    %c16_197 = arith.constant 16 : index
    %c0_198 = arith.constant 0 : index
    %769 = vector.load %arg7[%c1_196, %c16_197, %c0_198] : memref<3x41x128xf32, #tpu.memory_space<vmem>>, vector<1x8x128xf32>
    %770 = vector.shape_cast %769 : vector<1x8x128xf32> to vector<8x128xf32>
    %c12_199 = arith.constant 12 : index
    %771 = memref.load %arg2[%c12_199] : memref<108xf32, #tpu.memory_space<smem>>
    %772 = vector.broadcast %771 : f32 to vector<8x128xf32>
    %773 = arith.mulf %772, %770 : vector<8x128xf32>
    %774 = arith.addf %736, %773 : vector<8x128xf32>
    %c13_200 = arith.constant 13 : index
    %775 = memref.load %arg2[%c13_200] : memref<108xf32, #tpu.memory_space<smem>>
    %776 = vector.broadcast %775 : f32 to vector<8x128xf32>
    %777 = arith.mulf %776, %770 : vector<8x128xf32>
    %778 = arith.addf %740, %777 : vector<8x128xf32>
    %c14_201 = arith.constant 14 : index
    %779 = memref.load %arg2[%c14_201] : memref<108xf32, #tpu.memory_space<smem>>
    %780 = vector.broadcast %779 : f32 to vector<8x128xf32>
    %781 = arith.mulf %780, %770 : vector<8x128xf32>
    %782 = arith.addf %744, %781 : vector<8x128xf32>
    %c48_202 = arith.constant 48 : index
    %783 = memref.load %arg2[%c48_202] : memref<108xf32, #tpu.memory_space<smem>>
    %784 = vector.broadcast %783 : f32 to vector<8x128xf32>
    %785 = arith.mulf %784, %770 : vector<8x128xf32>
    %786 = arith.addf %748, %785 : vector<8x128xf32>
    %c49_203 = arith.constant 49 : index
    %787 = memref.load %arg2[%c49_203] : memref<108xf32, #tpu.memory_space<smem>>
    %788 = vector.broadcast %787 : f32 to vector<8x128xf32>
    %789 = arith.mulf %788, %770 : vector<8x128xf32>
    %790 = arith.addf %752, %789 : vector<8x128xf32>
    %c50_204 = arith.constant 50 : index
    %791 = memref.load %arg2[%c50_204] : memref<108xf32, #tpu.memory_space<smem>>
    %792 = vector.broadcast %791 : f32 to vector<8x128xf32>
    %793 = arith.mulf %792, %770 : vector<8x128xf32>
    %794 = arith.addf %756, %793 : vector<8x128xf32>
    %c84_205 = arith.constant 84 : index
    %795 = memref.load %arg2[%c84_205] : memref<108xf32, #tpu.memory_space<smem>>
    %796 = vector.broadcast %795 : f32 to vector<8x128xf32>
    %797 = arith.mulf %796, %770 : vector<8x128xf32>
    %798 = arith.addf %760, %797 : vector<8x128xf32>
    %c85_206 = arith.constant 85 : index
    %799 = memref.load %arg2[%c85_206] : memref<108xf32, #tpu.memory_space<smem>>
    %800 = vector.broadcast %799 : f32 to vector<8x128xf32>
    %801 = arith.mulf %800, %770 : vector<8x128xf32>
    %802 = arith.addf %764, %801 : vector<8x128xf32>
    %c86_207 = arith.constant 86 : index
    %803 = memref.load %arg2[%c86_207] : memref<108xf32, #tpu.memory_space<smem>>
    %804 = vector.broadcast %803 : f32 to vector<8x128xf32>
    %805 = arith.mulf %804, %770 : vector<8x128xf32>
    %806 = arith.addf %768, %805 : vector<8x128xf32>
    %c1_208 = arith.constant 1 : index
    %c17_209 = arith.constant 17 : index
    %c0_210 = arith.constant 0 : index
    %807 = vector.load %arg7[%c1_208, %c17_209, %c0_210] : memref<3x41x128xf32, #tpu.memory_space<vmem>>, vector<1x8x128xf32>
    %808 = vector.shape_cast %807 : vector<1x8x128xf32> to vector<8x128xf32>
    %c15_211 = arith.constant 15 : index
    %809 = memref.load %arg2[%c15_211] : memref<108xf32, #tpu.memory_space<smem>>
    %810 = vector.broadcast %809 : f32 to vector<8x128xf32>
    %811 = arith.mulf %810, %808 : vector<8x128xf32>
    %812 = arith.addf %774, %811 : vector<8x128xf32>
    %c16_212 = arith.constant 16 : index
    %813 = memref.load %arg2[%c16_212] : memref<108xf32, #tpu.memory_space<smem>>
    %814 = vector.broadcast %813 : f32 to vector<8x128xf32>
    %815 = arith.mulf %814, %808 : vector<8x128xf32>
    %816 = arith.addf %778, %815 : vector<8x128xf32>
    %c17_213 = arith.constant 17 : index
    %817 = memref.load %arg2[%c17_213] : memref<108xf32, #tpu.memory_space<smem>>
    %818 = vector.broadcast %817 : f32 to vector<8x128xf32>
    %819 = arith.mulf %818, %808 : vector<8x128xf32>
    %820 = arith.addf %782, %819 : vector<8x128xf32>
    %c51_214 = arith.constant 51 : index
    %821 = memref.load %arg2[%c51_214] : memref<108xf32, #tpu.memory_space<smem>>
    %822 = vector.broadcast %821 : f32 to vector<8x128xf32>
    %823 = arith.mulf %822, %808 : vector<8x128xf32>
    %824 = arith.addf %786, %823 : vector<8x128xf32>
    %c52_215 = arith.constant 52 : index
    %825 = memref.load %arg2[%c52_215] : memref<108xf32, #tpu.memory_space<smem>>
    %826 = vector.broadcast %825 : f32 to vector<8x128xf32>
    %827 = arith.mulf %826, %808 : vector<8x128xf32>
    %828 = arith.addf %790, %827 : vector<8x128xf32>
    %c53_216 = arith.constant 53 : index
    %829 = memref.load %arg2[%c53_216] : memref<108xf32, #tpu.memory_space<smem>>
    %830 = vector.broadcast %829 : f32 to vector<8x128xf32>
    %831 = arith.mulf %830, %808 : vector<8x128xf32>
    %832 = arith.addf %794, %831 : vector<8x128xf32>
    %c87_217 = arith.constant 87 : index
    %833 = memref.load %arg2[%c87_217] : memref<108xf32, #tpu.memory_space<smem>>
    %834 = vector.broadcast %833 : f32 to vector<8x128xf32>
    %835 = arith.mulf %834, %808 : vector<8x128xf32>
    %836 = arith.addf %798, %835 : vector<8x128xf32>
    %c88_218 = arith.constant 88 : index
    %837 = memref.load %arg2[%c88_218] : memref<108xf32, #tpu.memory_space<smem>>
    %838 = vector.broadcast %837 : f32 to vector<8x128xf32>
    %839 = arith.mulf %838, %808 : vector<8x128xf32>
    %840 = arith.addf %802, %839 : vector<8x128xf32>
    %c89_219 = arith.constant 89 : index
    %841 = memref.load %arg2[%c89_219] : memref<108xf32, #tpu.memory_space<smem>>
    %842 = vector.broadcast %841 : f32 to vector<8x128xf32>
    %843 = arith.mulf %842, %808 : vector<8x128xf32>
    %844 = arith.addf %806, %843 : vector<8x128xf32>
    %c2_220 = arith.constant 2 : index
    %c15_221 = arith.constant 15 : index
    %c0_222 = arith.constant 0 : index
    %845 = vector.load %arg7[%c2_220, %c15_221, %c0_222] : memref<3x41x128xf32, #tpu.memory_space<vmem>>, vector<1x8x128xf32>
    %846 = vector.shape_cast %845 : vector<1x8x128xf32> to vector<8x128xf32>
    %c18_223 = arith.constant 18 : index
    %847 = memref.load %arg2[%c18_223] : memref<108xf32, #tpu.memory_space<smem>>
    %848 = vector.broadcast %847 : f32 to vector<8x128xf32>
    %849 = arith.mulf %848, %846 : vector<8x128xf32>
    %850 = arith.addf %812, %849 : vector<8x128xf32>
    %c19_224 = arith.constant 19 : index
    %851 = memref.load %arg2[%c19_224] : memref<108xf32, #tpu.memory_space<smem>>
    %852 = vector.broadcast %851 : f32 to vector<8x128xf32>
    %853 = arith.mulf %852, %846 : vector<8x128xf32>
    %854 = arith.addf %816, %853 : vector<8x128xf32>
    %c20_225 = arith.constant 20 : index
    %855 = memref.load %arg2[%c20_225] : memref<108xf32, #tpu.memory_space<smem>>
    %856 = vector.broadcast %855 : f32 to vector<8x128xf32>
    %857 = arith.mulf %856, %846 : vector<8x128xf32>
    %858 = arith.addf %820, %857 : vector<8x128xf32>
    %c54_226 = arith.constant 54 : index
    %859 = memref.load %arg2[%c54_226] : memref<108xf32, #tpu.memory_space<smem>>
    %860 = vector.broadcast %859 : f32 to vector<8x128xf32>
    %861 = arith.mulf %860, %846 : vector<8x128xf32>
    %862 = arith.addf %824, %861 : vector<8x128xf32>
    %c55_227 = arith.constant 55 : index
    %863 = memref.load %arg2[%c55_227] : memref<108xf32, #tpu.memory_space<smem>>
    %864 = vector.broadcast %863 : f32 to vector<8x128xf32>
    %865 = arith.mulf %864, %846 : vector<8x128xf32>
    %866 = arith.addf %828, %865 : vector<8x128xf32>
    %c56_228 = arith.constant 56 : index
    %867 = memref.load %arg2[%c56_228] : memref<108xf32, #tpu.memory_space<smem>>
    %868 = vector.broadcast %867 : f32 to vector<8x128xf32>
    %869 = arith.mulf %868, %846 : vector<8x128xf32>
    %870 = arith.addf %832, %869 : vector<8x128xf32>
    %c90_229 = arith.constant 90 : index
    %871 = memref.load %arg2[%c90_229] : memref<108xf32, #tpu.memory_space<smem>>
    %872 = vector.broadcast %871 : f32 to vector<8x128xf32>
    %873 = arith.mulf %872, %846 : vector<8x128xf32>
    %874 = arith.addf %836, %873 : vector<8x128xf32>
    %c91_230 = arith.constant 91 : index
    %875 = memref.load %arg2[%c91_230] : memref<108xf32, #tpu.memory_space<smem>>
    %876 = vector.broadcast %875 : f32 to vector<8x128xf32>
    %877 = arith.mulf %876, %846 : vector<8x128xf32>
    %878 = arith.addf %840, %877 : vector<8x128xf32>
    %c92_231 = arith.constant 92 : index
    %879 = memref.load %arg2[%c92_231] : memref<108xf32, #tpu.memory_space<smem>>
    %880 = vector.broadcast %879 : f32 to vector<8x128xf32>
    %881 = arith.mulf %880, %846 : vector<8x128xf32>
    %882 = arith.addf %844, %881 : vector<8x128xf32>
    %c2_232 = arith.constant 2 : index
    %c16_233 = arith.constant 16 : index
    %c0_234 = arith.constant 0 : index
    %883 = vector.load %arg7[%c2_232, %c16_233, %c0_234] : memref<3x41x128xf32, #tpu.memory_space<vmem>>, vector<1x8x128xf32>
    %884 = vector.shape_cast %883 : vector<1x8x128xf32> to vector<8x128xf32>
    %c21_235 = arith.constant 21 : index
    %885 = memref.load %arg2[%c21_235] : memref<108xf32, #tpu.memory_space<smem>>
    %886 = vector.broadcast %885 : f32 to vector<8x128xf32>
    %887 = arith.mulf %886, %884 : vector<8x128xf32>
    %888 = arith.addf %850, %887 : vector<8x128xf32>
    %c22_236 = arith.constant 22 : index
    %889 = memref.load %arg2[%c22_236] : memref<108xf32, #tpu.memory_space<smem>>
    %890 = vector.broadcast %889 : f32 to vector<8x128xf32>
    %891 = arith.mulf %890, %884 : vector<8x128xf32>
    %892 = arith.addf %854, %891 : vector<8x128xf32>
    %c23_237 = arith.constant 23 : index
    %893 = memref.load %arg2[%c23_237] : memref<108xf32, #tpu.memory_space<smem>>
    %894 = vector.broadcast %893 : f32 to vector<8x128xf32>
    %895 = arith.mulf %894, %884 : vector<8x128xf32>
    %896 = arith.addf %858, %895 : vector<8x128xf32>
    %c57_238 = arith.constant 57 : index
    %897 = memref.load %arg2[%c57_238] : memref<108xf32, #tpu.memory_space<smem>>
    %898 = vector.broadcast %897 : f32 to vector<8x128xf32>
    %899 = arith.mulf %898, %884 : vector<8x128xf32>
    %900 = arith.addf %862, %899 : vector<8x128xf32>
    %c58_239 = arith.constant 58 : index
    %901 = memref.load %arg2[%c58_239] : memref<108xf32, #tpu.memory_space<smem>>
    %902 = vector.broadcast %901 : f32 to vector<8x128xf32>
    %903 = arith.mulf %902, %884 : vector<8x128xf32>
    %904 = arith.addf %866, %903 : vector<8x128xf32>
    %c59_240 = arith.constant 59 : index
    %905 = memref.load %arg2[%c59_240] : memref<108xf32, #tpu.memory_space<smem>>
    %906 = vector.broadcast %905 : f32 to vector<8x128xf32>
    %907 = arith.mulf %906, %884 : vector<8x128xf32>
    %908 = arith.addf %870, %907 : vector<8x128xf32>
    %c93_241 = arith.constant 93 : index
    %909 = memref.load %arg2[%c93_241] : memref<108xf32, #tpu.memory_space<smem>>
    %910 = vector.broadcast %909 : f32 to vector<8x128xf32>
    %911 = arith.mulf %910, %884 : vector<8x128xf32>
    %912 = arith.addf %874, %911 : vector<8x128xf32>
    %c94_242 = arith.constant 94 : index
    %913 = memref.load %arg2[%c94_242] : memref<108xf32, #tpu.memory_space<smem>>
    %914 = vector.broadcast %913 : f32 to vector<8x128xf32>
    %915 = arith.mulf %914, %884 : vector<8x128xf32>
    %916 = arith.addf %878, %915 : vector<8x128xf32>
    %c95_243 = arith.constant 95 : index
    %917 = memref.load %arg2[%c95_243] : memref<108xf32, #tpu.memory_space<smem>>
    %918 = vector.broadcast %917 : f32 to vector<8x128xf32>
    %919 = arith.mulf %918, %884 : vector<8x128xf32>
    %920 = arith.addf %882, %919 : vector<8x128xf32>
    %c2_244 = arith.constant 2 : index
    %c17_245 = arith.constant 17 : index
    %c0_246 = arith.constant 0 : index
    %921 = vector.load %arg7[%c2_244, %c17_245, %c0_246] : memref<3x41x128xf32, #tpu.memory_space<vmem>>, vector<1x8x128xf32>
    %922 = vector.shape_cast %921 : vector<1x8x128xf32> to vector<8x128xf32>
    %c24_247 = arith.constant 24 : index
    %923 = memref.load %arg2[%c24_247] : memref<108xf32, #tpu.memory_space<smem>>
    %924 = vector.broadcast %923 : f32 to vector<8x128xf32>
    %925 = arith.mulf %924, %922 : vector<8x128xf32>
    %926 = arith.addf %888, %925 : vector<8x128xf32>
    %c25_248 = arith.constant 25 : index
    %927 = memref.load %arg2[%c25_248] : memref<108xf32, #tpu.memory_space<smem>>
    %928 = vector.broadcast %927 : f32 to vector<8x128xf32>
    %929 = arith.mulf %928, %922 : vector<8x128xf32>
    %930 = arith.addf %892, %929 : vector<8x128xf32>
    %c26_249 = arith.constant 26 : index
    %931 = memref.load %arg2[%c26_249] : memref<108xf32, #tpu.memory_space<smem>>
    %932 = vector.broadcast %931 : f32 to vector<8x128xf32>
    %933 = arith.mulf %932, %922 : vector<8x128xf32>
    %934 = arith.addf %896, %933 : vector<8x128xf32>
    %c60_250 = arith.constant 60 : index
    %935 = memref.load %arg2[%c60_250] : memref<108xf32, #tpu.memory_space<smem>>
    %936 = vector.broadcast %935 : f32 to vector<8x128xf32>
    %937 = arith.mulf %936, %922 : vector<8x128xf32>
    %938 = arith.addf %900, %937 : vector<8x128xf32>
    %c61_251 = arith.constant 61 : index
    %939 = memref.load %arg2[%c61_251] : memref<108xf32, #tpu.memory_space<smem>>
    %940 = vector.broadcast %939 : f32 to vector<8x128xf32>
    %941 = arith.mulf %940, %922 : vector<8x128xf32>
    %942 = arith.addf %904, %941 : vector<8x128xf32>
    %c62_252 = arith.constant 62 : index
    %943 = memref.load %arg2[%c62_252] : memref<108xf32, #tpu.memory_space<smem>>
    %944 = vector.broadcast %943 : f32 to vector<8x128xf32>
    %945 = arith.mulf %944, %922 : vector<8x128xf32>
    %946 = arith.addf %908, %945 : vector<8x128xf32>
    %c96_253 = arith.constant 96 : index
    %947 = memref.load %arg2[%c96_253] : memref<108xf32, #tpu.memory_space<smem>>
    %948 = vector.broadcast %947 : f32 to vector<8x128xf32>
    %949 = arith.mulf %948, %922 : vector<8x128xf32>
    %950 = arith.addf %912, %949 : vector<8x128xf32>
    %c97_254 = arith.constant 97 : index
    %951 = memref.load %arg2[%c97_254] : memref<108xf32, #tpu.memory_space<smem>>
    %952 = vector.broadcast %951 : f32 to vector<8x128xf32>
    %953 = arith.mulf %952, %922 : vector<8x128xf32>
    %954 = arith.addf %916, %953 : vector<8x128xf32>
    %c98_255 = arith.constant 98 : index
    %955 = memref.load %arg2[%c98_255] : memref<108xf32, #tpu.memory_space<smem>>
    %956 = vector.broadcast %955 : f32 to vector<8x128xf32>
    %957 = arith.mulf %956, %922 : vector<8x128xf32>
    %958 = arith.addf %920, %957 : vector<8x128xf32>
    %c15_256 = arith.constant 15 : index
    %c0_257 = arith.constant 0 : index
    %959 = vector.load %arg8[%c15_256, %c0_257] : memref<41x128xf32, #tpu.memory_space<vmem>>, vector<8x128xf32>
    %c27_258 = arith.constant 27 : index
    %960 = memref.load %arg2[%c27_258] : memref<108xf32, #tpu.memory_space<smem>>
    %961 = vector.broadcast %960 : f32 to vector<8x128xf32>
    %962 = arith.mulf %961, %959 : vector<8x128xf32>
    %963 = arith.addf %926, %962 : vector<8x128xf32>
    %c28_259 = arith.constant 28 : index
    %964 = memref.load %arg2[%c28_259] : memref<108xf32, #tpu.memory_space<smem>>
    %965 = vector.broadcast %964 : f32 to vector<8x128xf32>
    %966 = arith.mulf %965, %959 : vector<8x128xf32>
    %967 = arith.addf %930, %966 : vector<8x128xf32>
    %c29_260 = arith.constant 29 : index
    %968 = memref.load %arg2[%c29_260] : memref<108xf32, #tpu.memory_space<smem>>
    %969 = vector.broadcast %968 : f32 to vector<8x128xf32>
    %970 = arith.mulf %969, %959 : vector<8x128xf32>
    %971 = arith.addf %934, %970 : vector<8x128xf32>
    %c63_261 = arith.constant 63 : index
    %972 = memref.load %arg2[%c63_261] : memref<108xf32, #tpu.memory_space<smem>>
    %973 = vector.broadcast %972 : f32 to vector<8x128xf32>
    %974 = arith.mulf %973, %959 : vector<8x128xf32>
    %975 = arith.addf %938, %974 : vector<8x128xf32>
    %c64_262 = arith.constant 64 : index
    %976 = memref.load %arg2[%c64_262] : memref<108xf32, #tpu.memory_space<smem>>
    %977 = vector.broadcast %976 : f32 to vector<8x128xf32>
    %978 = arith.mulf %977, %959 : vector<8x128xf32>
    %979 = arith.addf %942, %978 : vector<8x128xf32>
    %c65_263 = arith.constant 65 : index
    %980 = memref.load %arg2[%c65_263] : memref<108xf32, #tpu.memory_space<smem>>
    %981 = vector.broadcast %980 : f32 to vector<8x128xf32>
    %982 = arith.mulf %981, %959 : vector<8x128xf32>
    %983 = arith.addf %946, %982 : vector<8x128xf32>
    %c99_264 = arith.constant 99 : index
    %984 = memref.load %arg2[%c99_264] : memref<108xf32, #tpu.memory_space<smem>>
    %985 = vector.broadcast %984 : f32 to vector<8x128xf32>
    %986 = arith.mulf %985, %959 : vector<8x128xf32>
    %987 = arith.addf %950, %986 : vector<8x128xf32>
    %c100_265 = arith.constant 100 : index
    %988 = memref.load %arg2[%c100_265] : memref<108xf32, #tpu.memory_space<smem>>
    %989 = vector.broadcast %988 : f32 to vector<8x128xf32>
    %990 = arith.mulf %989, %959 : vector<8x128xf32>
    %991 = arith.addf %954, %990 : vector<8x128xf32>
    %c101_266 = arith.constant 101 : index
    %992 = memref.load %arg2[%c101_266] : memref<108xf32, #tpu.memory_space<smem>>
    %993 = vector.broadcast %992 : f32 to vector<8x128xf32>
    %994 = arith.mulf %993, %959 : vector<8x128xf32>
    %995 = arith.addf %958, %994 : vector<8x128xf32>
    %c16_267 = arith.constant 16 : index
    %c0_268 = arith.constant 0 : index
    %996 = vector.load %arg8[%c16_267, %c0_268] : memref<41x128xf32, #tpu.memory_space<vmem>>, vector<8x128xf32>
    %c30_269 = arith.constant 30 : index
    %997 = memref.load %arg2[%c30_269] : memref<108xf32, #tpu.memory_space<smem>>
    %998 = vector.broadcast %997 : f32 to vector<8x128xf32>
    %999 = arith.mulf %998, %996 : vector<8x128xf32>
    %1000 = arith.addf %963, %999 : vector<8x128xf32>
    %c31_270 = arith.constant 31 : index
    %1001 = memref.load %arg2[%c31_270] : memref<108xf32, #tpu.memory_space<smem>>
    %1002 = vector.broadcast %1001 : f32 to vector<8x128xf32>
    %1003 = arith.mulf %1002, %996 : vector<8x128xf32>
    %1004 = arith.addf %967, %1003 : vector<8x128xf32>
    %c32_271 = arith.constant 32 : index
    %1005 = memref.load %arg2[%c32_271] : memref<108xf32, #tpu.memory_space<smem>>
    %1006 = vector.broadcast %1005 : f32 to vector<8x128xf32>
    %1007 = arith.mulf %1006, %996 : vector<8x128xf32>
    %1008 = arith.addf %971, %1007 : vector<8x128xf32>
    %c66_272 = arith.constant 66 : index
    %1009 = memref.load %arg2[%c66_272] : memref<108xf32, #tpu.memory_space<smem>>
    %1010 = vector.broadcast %1009 : f32 to vector<8x128xf32>
    %1011 = arith.mulf %1010, %996 : vector<8x128xf32>
    %1012 = arith.addf %975, %1011 : vector<8x128xf32>
    %c67_273 = arith.constant 67 : index
    %1013 = memref.load %arg2[%c67_273] : memref<108xf32, #tpu.memory_space<smem>>
    %1014 = vector.broadcast %1013 : f32 to vector<8x128xf32>
    %1015 = arith.mulf %1014, %996 : vector<8x128xf32>
    %1016 = arith.addf %979, %1015 : vector<8x128xf32>
    %c68_274 = arith.constant 68 : index
    %1017 = memref.load %arg2[%c68_274] : memref<108xf32, #tpu.memory_space<smem>>
    %1018 = vector.broadcast %1017 : f32 to vector<8x128xf32>
    %1019 = arith.mulf %1018, %996 : vector<8x128xf32>
    %1020 = arith.addf %983, %1019 : vector<8x128xf32>
    %c102_275 = arith.constant 102 : index
    %1021 = memref.load %arg2[%c102_275] : memref<108xf32, #tpu.memory_space<smem>>
    %1022 = vector.broadcast %1021 : f32 to vector<8x128xf32>
    %1023 = arith.mulf %1022, %996 : vector<8x128xf32>
    %1024 = arith.addf %987, %1023 : vector<8x128xf32>
    %c103_276 = arith.constant 103 : index
    %1025 = memref.load %arg2[%c103_276] : memref<108xf32, #tpu.memory_space<smem>>
    %1026 = vector.broadcast %1025 : f32 to vector<8x128xf32>
    %1027 = arith.mulf %1026, %996 : vector<8x128xf32>
    %1028 = arith.addf %991, %1027 : vector<8x128xf32>
    %c104_277 = arith.constant 104 : index
    %1029 = memref.load %arg2[%c104_277] : memref<108xf32, #tpu.memory_space<smem>>
    %1030 = vector.broadcast %1029 : f32 to vector<8x128xf32>
    %1031 = arith.mulf %1030, %996 : vector<8x128xf32>
    %1032 = arith.addf %995, %1031 : vector<8x128xf32>
    %c17_278 = arith.constant 17 : index
    %c0_279 = arith.constant 0 : index
    %1033 = vector.load %arg8[%c17_278, %c0_279] : memref<41x128xf32, #tpu.memory_space<vmem>>, vector<8x128xf32>
    %c33_280 = arith.constant 33 : index
    %1034 = memref.load %arg2[%c33_280] : memref<108xf32, #tpu.memory_space<smem>>
    %1035 = vector.broadcast %1034 : f32 to vector<8x128xf32>
    %1036 = arith.mulf %1035, %1033 : vector<8x128xf32>
    %1037 = arith.addf %1000, %1036 : vector<8x128xf32>
    %c34_281 = arith.constant 34 : index
    %1038 = memref.load %arg2[%c34_281] : memref<108xf32, #tpu.memory_space<smem>>
    %1039 = vector.broadcast %1038 : f32 to vector<8x128xf32>
    %1040 = arith.mulf %1039, %1033 : vector<8x128xf32>
    %1041 = arith.addf %1004, %1040 : vector<8x128xf32>
    %c35_282 = arith.constant 35 : index
    %1042 = memref.load %arg2[%c35_282] : memref<108xf32, #tpu.memory_space<smem>>
    %1043 = vector.broadcast %1042 : f32 to vector<8x128xf32>
    %1044 = arith.mulf %1043, %1033 : vector<8x128xf32>
    %1045 = arith.addf %1008, %1044 : vector<8x128xf32>
    %c69_283 = arith.constant 69 : index
    %1046 = memref.load %arg2[%c69_283] : memref<108xf32, #tpu.memory_space<smem>>
    %1047 = vector.broadcast %1046 : f32 to vector<8x128xf32>
    %1048 = arith.mulf %1047, %1033 : vector<8x128xf32>
    %1049 = arith.addf %1012, %1048 : vector<8x128xf32>
    %c70_284 = arith.constant 70 : index
    %1050 = memref.load %arg2[%c70_284] : memref<108xf32, #tpu.memory_space<smem>>
    %1051 = vector.broadcast %1050 : f32 to vector<8x128xf32>
    %1052 = arith.mulf %1051, %1033 : vector<8x128xf32>
    %1053 = arith.addf %1016, %1052 : vector<8x128xf32>
    %c71_285 = arith.constant 71 : index
    %1054 = memref.load %arg2[%c71_285] : memref<108xf32, #tpu.memory_space<smem>>
    %1055 = vector.broadcast %1054 : f32 to vector<8x128xf32>
    %1056 = arith.mulf %1055, %1033 : vector<8x128xf32>
    %1057 = arith.addf %1020, %1056 : vector<8x128xf32>
    %c105_286 = arith.constant 105 : index
    %1058 = memref.load %arg2[%c105_286] : memref<108xf32, #tpu.memory_space<smem>>
    %1059 = vector.broadcast %1058 : f32 to vector<8x128xf32>
    %1060 = arith.mulf %1059, %1033 : vector<8x128xf32>
    %1061 = arith.addf %1024, %1060 : vector<8x128xf32>
    %c106_287 = arith.constant 106 : index
    %1062 = memref.load %arg2[%c106_287] : memref<108xf32, #tpu.memory_space<smem>>
    %1063 = vector.broadcast %1062 : f32 to vector<8x128xf32>
    %1064 = arith.mulf %1063, %1033 : vector<8x128xf32>
    %1065 = arith.addf %1028, %1064 : vector<8x128xf32>
    %c107_288 = arith.constant 107 : index
    %1066 = memref.load %arg2[%c107_288] : memref<108xf32, #tpu.memory_space<smem>>
    %1067 = vector.broadcast %1066 : f32 to vector<8x128xf32>
    %1068 = arith.mulf %1067, %1033 : vector<8x128xf32>
    %1069 = arith.addf %1032, %1068 : vector<8x128xf32>
    %1070 = vector.extract_strided_slice %1037 {offsets = [0, 0], sizes = [8, 127], strides = [1, 1]} : vector<8x128xf32> to vector<8x127xf32>
    %1071 = tpu.concatenate %604, %1070 in 1 : vector<8x1xf32>, vector<8x127xf32> -> vector<8x128xf32>
    %1072 = vector.extract_strided_slice %1045 {offsets = [0, 1], sizes = [8, 127], strides = [1, 1]} : vector<8x128xf32> to vector<8x127xf32>
    %1073 = tpu.concatenate %1072, %604 in 1 : vector<8x127xf32>, vector<8x1xf32> -> vector<8x128xf32>
    %1074 = arith.addf %1041, %1071 : vector<8x128xf32>
    %1075 = arith.addf %1074, %1073 : vector<8x128xf32>
    %cst_289 = arith.constant 0.000000e+00 : f32
    %1076 = vector.broadcast %cst_289 : f32 to vector<8x128xf32>
    %1077 = arith.subf %1076, %1075 : vector<8x128xf32>
    %1078 = math.exp %1077 : vector<8x128xf32>
    %cst_290 = arith.constant 1.000000e+00 : f32
    %1079 = vector.broadcast %cst_290 : f32 to vector<8x128xf32>
    %1080 = arith.addf %1079, %1078 : vector<8x128xf32>
    %cst_291 = arith.constant 2.550000e+02 : f32
    %1081 = vector.broadcast %cst_291 : f32 to vector<8x128xf32>
    %1082 = arith.divf %1081, %1080 : vector<8x128xf32>
    %cst_292 = arith.constant 0.000000e+00 : f32
    %cst_293 = arith.constant 2.550000e+02 : f32
    %1083 = vector.broadcast %cst_292 : f32 to vector<8x128xf32>
    %1084 = arith.maximumf %1083, %1082 : vector<8x128xf32>
    %1085 = vector.broadcast %cst_293 : f32 to vector<8x128xf32>
    %1086 = arith.minimumf %1085, %1084 : vector<8x128xf32>
    %c0_294 = arith.constant 0 : index
    %c0_295 = arith.constant 0 : index
    %c8_296 = arith.constant 8 : index
    %c0_297 = arith.constant 0 : index
    %1087 = vector.load %arg6[%c0_294, %c0_295, %c8_296, %c0_297] : memref<1x3x32x128xf32, #tpu.memory_space<vmem>>, vector<1x1x8x128xf32>
    %1088 = vector.shape_cast %1087 : vector<1x1x8x128xf32> to vector<8x128xf32>
    %1089 = vector.shape_cast %1086 : vector<8x128xf32> to vector<1x1x8x128xf32>
    tpu.vector_store %arg6[%c0_294, %c0_295, %c8_296, %c0_297], %1089 {strides = array<i32>} : memref<1x3x32x128xf32, #tpu.memory_space<vmem>>, vector<1x1x8x128xf32>,
    %1090 = vector.extract_strided_slice %1049 {offsets = [0, 0], sizes = [8, 127], strides = [1, 1]} : vector<8x128xf32> to vector<8x127xf32>
    %1091 = tpu.concatenate %604, %1090 in 1 : vector<8x1xf32>, vector<8x127xf32> -> vector<8x128xf32>
    %1092 = vector.extract_strided_slice %1057 {offsets = [0, 1], sizes = [8, 127], strides = [1, 1]} : vector<8x128xf32> to vector<8x127xf32>
    %1093 = tpu.concatenate %1092, %604 in 1 : vector<8x127xf32>, vector<8x1xf32> -> vector<8x128xf32>
    %1094 = arith.addf %1053, %1091 : vector<8x128xf32>
    %1095 = arith.addf %1094, %1093 : vector<8x128xf32>
    %cst_298 = arith.constant 0.000000e+00 : f32
    %1096 = vector.broadcast %cst_298 : f32 to vector<8x128xf32>
    %1097 = arith.subf %1096, %1095 : vector<8x128xf32>
    %1098 = math.exp %1097 : vector<8x128xf32>
    %cst_299 = arith.constant 1.000000e+00 : f32
    %1099 = vector.broadcast %cst_299 : f32 to vector<8x128xf32>
    %1100 = arith.addf %1099, %1098 : vector<8x128xf32>
    %cst_300 = arith.constant 2.550000e+02 : f32
    %1101 = vector.broadcast %cst_300 : f32 to vector<8x128xf32>
    %1102 = arith.divf %1101, %1100 : vector<8x128xf32>
    %cst_301 = arith.constant 0.000000e+00 : f32
    %cst_302 = arith.constant 2.550000e+02 : f32
    %1103 = vector.broadcast %cst_301 : f32 to vector<8x128xf32>
    %1104 = arith.maximumf %1103, %1102 : vector<8x128xf32>
    %1105 = vector.broadcast %cst_302 : f32 to vector<8x128xf32>
    %1106 = arith.minimumf %1105, %1104 : vector<8x128xf32>
    %c0_303 = arith.constant 0 : index
    %c1_304 = arith.constant 1 : index
    %c8_305 = arith.constant 8 : index
    %c0_306 = arith.constant 0 : index
    %1107 = vector.load %arg6[%c0_303, %c1_304, %c8_305, %c0_306] : memref<1x3x32x128xf32, #tpu.memory_space<vmem>>, vector<1x1x8x128xf32>
    %1108 = vector.shape_cast %1107 : vector<1x1x8x128xf32> to vector<8x128xf32>
    %1109 = vector.shape_cast %1106 : vector<8x128xf32> to vector<1x1x8x128xf32>
    tpu.vector_store %arg6[%c0_303, %c1_304, %c8_305, %c0_306], %1109 {strides = array<i32>} : memref<1x3x32x128xf32, #tpu.memory_space<vmem>>, vector<1x1x8x128xf32>,
    %1110 = vector.extract_strided_slice %1061 {offsets = [0, 0], sizes = [8, 127], strides = [1, 1]} : vector<8x128xf32> to vector<8x127xf32>
    %1111 = tpu.concatenate %604, %1110 in 1 : vector<8x1xf32>, vector<8x127xf32> -> vector<8x128xf32>
    %1112 = vector.extract_strided_slice %1069 {offsets = [0, 1], sizes = [8, 127], strides = [1, 1]} : vector<8x128xf32> to vector<8x127xf32>
    %1113 = tpu.concatenate %1112, %604 in 1 : vector<8x127xf32>, vector<8x1xf32> -> vector<8x128xf32>
    %1114 = arith.addf %1065, %1111 : vector<8x128xf32>
    %1115 = arith.addf %1114, %1113 : vector<8x128xf32>
    %cst_307 = arith.constant 0.000000e+00 : f32
    %1116 = vector.broadcast %cst_307 : f32 to vector<8x128xf32>
    %1117 = arith.subf %1116, %1115 : vector<8x128xf32>
    %1118 = math.exp %1117 : vector<8x128xf32>
    %cst_308 = arith.constant 1.000000e+00 : f32
    %1119 = vector.broadcast %cst_308 : f32 to vector<8x128xf32>
    %1120 = arith.addf %1119, %1118 : vector<8x128xf32>
    %cst_309 = arith.constant 2.550000e+02 : f32
    %1121 = vector.broadcast %cst_309 : f32 to vector<8x128xf32>
    %1122 = arith.divf %1121, %1120 : vector<8x128xf32>
    %cst_310 = arith.constant 0.000000e+00 : f32
    %cst_311 = arith.constant 2.550000e+02 : f32
    %1123 = vector.broadcast %cst_310 : f32 to vector<8x128xf32>
    %1124 = arith.maximumf %1123, %1122 : vector<8x128xf32>
    %1125 = vector.broadcast %cst_311 : f32 to vector<8x128xf32>
    %1126 = arith.minimumf %1125, %1124 : vector<8x128xf32>
    %c0_312 = arith.constant 0 : index
    %c2_313 = arith.constant 2 : index
    %c8_314 = arith.constant 8 : index
    %c0_315 = arith.constant 0 : index
    %1127 = vector.load %arg6[%c0_312, %c2_313, %c8_314, %c0_315] : memref<1x3x32x128xf32, #tpu.memory_space<vmem>>, vector<1x1x8x128xf32>
    %1128 = vector.shape_cast %1127 : vector<1x1x8x128xf32> to vector<8x128xf32>
    %1129 = vector.shape_cast %1126 : vector<8x128xf32> to vector<1x1x8x128xf32>
    tpu.vector_store %arg6[%c0_312, %c2_313, %c8_314, %c0_315], %1129 {strides = array<i32>} : memref<1x3x32x128xf32, #tpu.memory_space<vmem>>, vector<1x1x8x128xf32>,
    %cst_316 = arith.constant 0.000000e+00 : f32
    %1130 = vector.broadcast %cst_316 : f32 to vector<8x1xf32>
    %cst_317 = arith.constant 0.000000e+00 : f32
    %1131 = vector.broadcast %cst_317 : f32 to vector<8x128xf32>
    %cst_318 = arith.constant 0.000000e+00 : f32
    %1132 = vector.broadcast %cst_318 : f32 to vector<8x128xf32>
    %cst_319 = arith.constant 0.000000e+00 : f32
    %1133 = vector.broadcast %cst_319 : f32 to vector<8x128xf32>
    %c0_320 = arith.constant 0 : index
    %1134 = memref.load %arg3[%c0_320] : memref<3xf32, #tpu.memory_space<smem>>
    %1135 = vector.broadcast %1134 : f32 to vector<8x128xf32>
    %c1_321 = arith.constant 1 : index
    %1136 = memref.load %arg3[%c1_321] : memref<3xf32, #tpu.memory_space<smem>>
    %1137 = vector.broadcast %1136 : f32 to vector<8x128xf32>
    %c2_322 = arith.constant 2 : index
    %1138 = memref.load %arg3[%c2_322] : memref<3xf32, #tpu.memory_space<smem>>
    %1139 = vector.broadcast %1138 : f32 to vector<8x128xf32>
    %cst_323 = arith.constant 0.000000e+00 : f32
    %1140 = vector.broadcast %cst_323 : f32 to vector<8x128xf32>
    %cst_324 = arith.constant 0.000000e+00 : f32
    %1141 = vector.broadcast %cst_324 : f32 to vector<8x128xf32>
    %cst_325 = arith.constant 0.000000e+00 : f32
    %1142 = vector.broadcast %cst_325 : f32 to vector<8x128xf32>
    %c0_326 = arith.constant 0 : index
    %c23_327 = arith.constant 23 : index
    %c0_328 = arith.constant 0 : index
    %1143 = vector.load %arg7[%c0_326, %c23_327, %c0_328] : memref<3x41x128xf32, #tpu.memory_space<vmem>>, vector<1x8x128xf32>
    %1144 = vector.shape_cast %1143 : vector<1x8x128xf32> to vector<8x128xf32>
    %c0_329 = arith.constant 0 : index
    %1145 = memref.load %arg2[%c0_329] : memref<108xf32, #tpu.memory_space<smem>>
    %1146 = vector.broadcast %1145 : f32 to vector<8x128xf32>
    %1147 = arith.mulf %1146, %1144 : vector<8x128xf32>
    %1148 = arith.addf %1131, %1147 : vector<8x128xf32>
    %c1_330 = arith.constant 1 : index
    %1149 = memref.load %arg2[%c1_330] : memref<108xf32, #tpu.memory_space<smem>>
    %1150 = vector.broadcast %1149 : f32 to vector<8x128xf32>
    %1151 = arith.mulf %1150, %1144 : vector<8x128xf32>
    %1152 = arith.addf %1135, %1151 : vector<8x128xf32>
    %c2_331 = arith.constant 2 : index
    %1153 = memref.load %arg2[%c2_331] : memref<108xf32, #tpu.memory_space<smem>>
    %1154 = vector.broadcast %1153 : f32 to vector<8x128xf32>
    %1155 = arith.mulf %1154, %1144 : vector<8x128xf32>
    %1156 = arith.addf %1140, %1155 : vector<8x128xf32>
    %c36_332 = arith.constant 36 : index
    %1157 = memref.load %arg2[%c36_332] : memref<108xf32, #tpu.memory_space<smem>>
    %1158 = vector.broadcast %1157 : f32 to vector<8x128xf32>
    %1159 = arith.mulf %1158, %1144 : vector<8x128xf32>
    %1160 = arith.addf %1132, %1159 : vector<8x128xf32>
    %c37_333 = arith.constant 37 : index
    %1161 = memref.load %arg2[%c37_333] : memref<108xf32, #tpu.memory_space<smem>>
    %1162 = vector.broadcast %1161 : f32 to vector<8x128xf32>
    %1163 = arith.mulf %1162, %1144 : vector<8x128xf32>
    %1164 = arith.addf %1137, %1163 : vector<8x128xf32>
    %c38_334 = arith.constant 38 : index
    %1165 = memref.load %arg2[%c38_334] : memref<108xf32, #tpu.memory_space<smem>>
    %1166 = vector.broadcast %1165 : f32 to vector<8x128xf32>
    %1167 = arith.mulf %1166, %1144 : vector<8x128xf32>
    %1168 = arith.addf %1141, %1167 : vector<8x128xf32>
    %c72_335 = arith.constant 72 : index
    %1169 = memref.load %arg2[%c72_335] : memref<108xf32, #tpu.memory_space<smem>>
    %1170 = vector.broadcast %1169 : f32 to vector<8x128xf32>
    %1171 = arith.mulf %1170, %1144 : vector<8x128xf32>
    %1172 = arith.addf %1133, %1171 : vector<8x128xf32>
    %c73_336 = arith.constant 73 : index
    %1173 = memref.load %arg2[%c73_336] : memref<108xf32, #tpu.memory_space<smem>>
    %1174 = vector.broadcast %1173 : f32 to vector<8x128xf32>
    %1175 = arith.mulf %1174, %1144 : vector<8x128xf32>
    %1176 = arith.addf %1139, %1175 : vector<8x128xf32>
    %c74_337 = arith.constant 74 : index
    %1177 = memref.load %arg2[%c74_337] : memref<108xf32, #tpu.memory_space<smem>>
    %1178 = vector.broadcast %1177 : f32 to vector<8x128xf32>
    %1179 = arith.mulf %1178, %1144 : vector<8x128xf32>
    %1180 = arith.addf %1142, %1179 : vector<8x128xf32>
    %c0_338 = arith.constant 0 : index
    %c24_339 = arith.constant 24 : index
    %c0_340 = arith.constant 0 : index
    %1181 = vector.load %arg7[%c0_338, %c24_339, %c0_340] : memref<3x41x128xf32, #tpu.memory_space<vmem>>, vector<1x8x128xf32>
    %1182 = vector.shape_cast %1181 : vector<1x8x128xf32> to vector<8x128xf32>
    %c3_341 = arith.constant 3 : index
    %1183 = memref.load %arg2[%c3_341] : memref<108xf32, #tpu.memory_space<smem>>
    %1184 = vector.broadcast %1183 : f32 to vector<8x128xf32>
    %1185 = arith.mulf %1184, %1182 : vector<8x128xf32>
    %1186 = arith.addf %1148, %1185 : vector<8x128xf32>
    %c4_342 = arith.constant 4 : index
    %1187 = memref.load %arg2[%c4_342] : memref<108xf32, #tpu.memory_space<smem>>
    %1188 = vector.broadcast %1187 : f32 to vector<8x128xf32>
    %1189 = arith.mulf %1188, %1182 : vector<8x128xf32>
    %1190 = arith.addf %1152, %1189 : vector<8x128xf32>
    %c5_343 = arith.constant 5 : index
    %1191 = memref.load %arg2[%c5_343] : memref<108xf32, #tpu.memory_space<smem>>
    %1192 = vector.broadcast %1191 : f32 to vector<8x128xf32>
    %1193 = arith.mulf %1192, %1182 : vector<8x128xf32>
    %1194 = arith.addf %1156, %1193 : vector<8x128xf32>
    %c39_344 = arith.constant 39 : index
    %1195 = memref.load %arg2[%c39_344] : memref<108xf32, #tpu.memory_space<smem>>
    %1196 = vector.broadcast %1195 : f32 to vector<8x128xf32>
    %1197 = arith.mulf %1196, %1182 : vector<8x128xf32>
    %1198 = arith.addf %1160, %1197 : vector<8x128xf32>
    %c40_345 = arith.constant 40 : index
    %1199 = memref.load %arg2[%c40_345] : memref<108xf32, #tpu.memory_space<smem>>
    %1200 = vector.broadcast %1199 : f32 to vector<8x128xf32>
    %1201 = arith.mulf %1200, %1182 : vector<8x128xf32>
    %1202 = arith.addf %1164, %1201 : vector<8x128xf32>
    %c41_346 = arith.constant 41 : index
    %1203 = memref.load %arg2[%c41_346] : memref<108xf32, #tpu.memory_space<smem>>
    %1204 = vector.broadcast %1203 : f32 to vector<8x128xf32>
    %1205 = arith.mulf %1204, %1182 : vector<8x128xf32>
    %1206 = arith.addf %1168, %1205 : vector<8x128xf32>
    %c75_347 = arith.constant 75 : index
    %1207 = memref.load %arg2[%c75_347] : memref<108xf32, #tpu.memory_space<smem>>
    %1208 = vector.broadcast %1207 : f32 to vector<8x128xf32>
    %1209 = arith.mulf %1208, %1182 : vector<8x128xf32>
    %1210 = arith.addf %1172, %1209 : vector<8x128xf32>
    %c76_348 = arith.constant 76 : index
    %1211 = memref.load %arg2[%c76_348] : memref<108xf32, #tpu.memory_space<smem>>
    %1212 = vector.broadcast %1211 : f32 to vector<8x128xf32>
    %1213 = arith.mulf %1212, %1182 : vector<8x128xf32>
    %1214 = arith.addf %1176, %1213 : vector<8x128xf32>
    %c77_349 = arith.constant 77 : index
    %1215 = memref.load %arg2[%c77_349] : memref<108xf32, #tpu.memory_space<smem>>
    %1216 = vector.broadcast %1215 : f32 to vector<8x128xf32>
    %1217 = arith.mulf %1216, %1182 : vector<8x128xf32>
    %1218 = arith.addf %1180, %1217 : vector<8x128xf32>
    %c0_350 = arith.constant 0 : index
    %c25_351 = arith.constant 25 : index
    %c0_352 = arith.constant 0 : index
    %1219 = vector.load %arg7[%c0_350, %c25_351, %c0_352] : memref<3x41x128xf32, #tpu.memory_space<vmem>>, vector<1x8x128xf32>
    %1220 = vector.shape_cast %1219 : vector<1x8x128xf32> to vector<8x128xf32>
    %c6_353 = arith.constant 6 : index
    %1221 = memref.load %arg2[%c6_353] : memref<108xf32, #tpu.memory_space<smem>>
    %1222 = vector.broadcast %1221 : f32 to vector<8x128xf32>
    %1223 = arith.mulf %1222, %1220 : vector<8x128xf32>
    %1224 = arith.addf %1186, %1223 : vector<8x128xf32>
    %c7_354 = arith.constant 7 : index
    %1225 = memref.load %arg2[%c7_354] : memref<108xf32, #tpu.memory_space<smem>>
    %1226 = vector.broadcast %1225 : f32 to vector<8x128xf32>
    %1227 = arith.mulf %1226, %1220 : vector<8x128xf32>
    %1228 = arith.addf %1190, %1227 : vector<8x128xf32>
    %c8_355 = arith.constant 8 : index
    %1229 = memref.load %arg2[%c8_355] : memref<108xf32, #tpu.memory_space<smem>>
    %1230 = vector.broadcast %1229 : f32 to vector<8x128xf32>
    %1231 = arith.mulf %1230, %1220 : vector<8x128xf32>
    %1232 = arith.addf %1194, %1231 : vector<8x128xf32>
    %c42_356 = arith.constant 42 : index
    %1233 = memref.load %arg2[%c42_356] : memref<108xf32, #tpu.memory_space<smem>>
    %1234 = vector.broadcast %1233 : f32 to vector<8x128xf32>
    %1235 = arith.mulf %1234, %1220 : vector<8x128xf32>
    %1236 = arith.addf %1198, %1235 : vector<8x128xf32>
    %c43_357 = arith.constant 43 : index
    %1237 = memref.load %arg2[%c43_357] : memref<108xf32, #tpu.memory_space<smem>>
    %1238 = vector.broadcast %1237 : f32 to vector<8x128xf32>
    %1239 = arith.mulf %1238, %1220 : vector<8x128xf32>
    %1240 = arith.addf %1202, %1239 : vector<8x128xf32>
    %c44_358 = arith.constant 44 : index
    %1241 = memref.load %arg2[%c44_358] : memref<108xf32, #tpu.memory_space<smem>>
    %1242 = vector.broadcast %1241 : f32 to vector<8x128xf32>
    %1243 = arith.mulf %1242, %1220 : vector<8x128xf32>
    %1244 = arith.addf %1206, %1243 : vector<8x128xf32>
    %c78_359 = arith.constant 78 : index
    %1245 = memref.load %arg2[%c78_359] : memref<108xf32, #tpu.memory_space<smem>>
    %1246 = vector.broadcast %1245 : f32 to vector<8x128xf32>
    %1247 = arith.mulf %1246, %1220 : vector<8x128xf32>
    %1248 = arith.addf %1210, %1247 : vector<8x128xf32>
    %c79_360 = arith.constant 79 : index
    %1249 = memref.load %arg2[%c79_360] : memref<108xf32, #tpu.memory_space<smem>>
    %1250 = vector.broadcast %1249 : f32 to vector<8x128xf32>
    %1251 = arith.mulf %1250, %1220 : vector<8x128xf32>
    %1252 = arith.addf %1214, %1251 : vector<8x128xf32>
    %c80_361 = arith.constant 80 : index
    %1253 = memref.load %arg2[%c80_361] : memref<108xf32, #tpu.memory_space<smem>>
    %1254 = vector.broadcast %1253 : f32 to vector<8x128xf32>
    %1255 = arith.mulf %1254, %1220 : vector<8x128xf32>
    %1256 = arith.addf %1218, %1255 : vector<8x128xf32>
    %c1_362 = arith.constant 1 : index
    %c23_363 = arith.constant 23 : index
    %c0_364 = arith.constant 0 : index
    %1257 = vector.load %arg7[%c1_362, %c23_363, %c0_364] : memref<3x41x128xf32, #tpu.memory_space<vmem>>, vector<1x8x128xf32>
    %1258 = vector.shape_cast %1257 : vector<1x8x128xf32> to vector<8x128xf32>
    %c9_365 = arith.constant 9 : index
    %1259 = memref.load %arg2[%c9_365] : memref<108xf32, #tpu.memory_space<smem>>
    %1260 = vector.broadcast %1259 : f32 to vector<8x128xf32>
    %1261 = arith.mulf %1260, %1258 : vector<8x128xf32>
    %1262 = arith.addf %1224, %1261 : vector<8x128xf32>
    %c10_366 = arith.constant 10 : index
    %1263 = memref.load %arg2[%c10_366] : memref<108xf32, #tpu.memory_space<smem>>
    %1264 = vector.broadcast %1263 : f32 to vector<8x128xf32>
    %1265 = arith.mulf %1264, %1258 : vector<8x128xf32>
    %1266 = arith.addf %1228, %1265 : vector<8x128xf32>
    %c11_367 = arith.constant 11 : index
    %1267 = memref.load %arg2[%c11_367] : memref<108xf32, #tpu.memory_space<smem>>
    %1268 = vector.broadcast %1267 : f32 to vector<8x128xf32>
    %1269 = arith.mulf %1268, %1258 : vector<8x128xf32>
    %1270 = arith.addf %1232, %1269 : vector<8x128xf32>
    %c45_368 = arith.constant 45 : index
    %1271 = memref.load %arg2[%c45_368] : memref<108xf32, #tpu.memory_space<smem>>
    %1272 = vector.broadcast %1271 : f32 to vector<8x128xf32>
    %1273 = arith.mulf %1272, %1258 : vector<8x128xf32>
    %1274 = arith.addf %1236, %1273 : vector<8x128xf32>
    %c46_369 = arith.constant 46 : index
    %1275 = memref.load %arg2[%c46_369] : memref<108xf32, #tpu.memory_space<smem>>
    %1276 = vector.broadcast %1275 : f32 to vector<8x128xf32>
    %1277 = arith.mulf %1276, %1258 : vector<8x128xf32>
    %1278 = arith.addf %1240, %1277 : vector<8x128xf32>
    %c47_370 = arith.constant 47 : index
    %1279 = memref.load %arg2[%c47_370] : memref<108xf32, #tpu.memory_space<smem>>
    %1280 = vector.broadcast %1279 : f32 to vector<8x128xf32>
    %1281 = arith.mulf %1280, %1258 : vector<8x128xf32>
    %1282 = arith.addf %1244, %1281 : vector<8x128xf32>
    %c81_371 = arith.constant 81 : index
    %1283 = memref.load %arg2[%c81_371] : memref<108xf32, #tpu.memory_space<smem>>
    %1284 = vector.broadcast %1283 : f32 to vector<8x128xf32>
    %1285 = arith.mulf %1284, %1258 : vector<8x128xf32>
    %1286 = arith.addf %1248, %1285 : vector<8x128xf32>
    %c82_372 = arith.constant 82 : index
    %1287 = memref.load %arg2[%c82_372] : memref<108xf32, #tpu.memory_space<smem>>
    %1288 = vector.broadcast %1287 : f32 to vector<8x128xf32>
    %1289 = arith.mulf %1288, %1258 : vector<8x128xf32>
    %1290 = arith.addf %1252, %1289 : vector<8x128xf32>
    %c83_373 = arith.constant 83 : index
    %1291 = memref.load %arg2[%c83_373] : memref<108xf32, #tpu.memory_space<smem>>
    %1292 = vector.broadcast %1291 : f32 to vector<8x128xf32>
    %1293 = arith.mulf %1292, %1258 : vector<8x128xf32>
    %1294 = arith.addf %1256, %1293 : vector<8x128xf32>
    %c1_374 = arith.constant 1 : index
    %c24_375 = arith.constant 24 : index
    %c0_376 = arith.constant 0 : index
    %1295 = vector.load %arg7[%c1_374, %c24_375, %c0_376] : memref<3x41x128xf32, #tpu.memory_space<vmem>>, vector<1x8x128xf32>
    %1296 = vector.shape_cast %1295 : vector<1x8x128xf32> to vector<8x128xf32>
    %c12_377 = arith.constant 12 : index
    %1297 = memref.load %arg2[%c12_377] : memref<108xf32, #tpu.memory_space<smem>>
    %1298 = vector.broadcast %1297 : f32 to vector<8x128xf32>
    %1299 = arith.mulf %1298, %1296 : vector<8x128xf32>
    %1300 = arith.addf %1262, %1299 : vector<8x128xf32>
    %c13_378 = arith.constant 13 : index
    %1301 = memref.load %arg2[%c13_378] : memref<108xf32, #tpu.memory_space<smem>>
    %1302 = vector.broadcast %1301 : f32 to vector<8x128xf32>
    %1303 = arith.mulf %1302, %1296 : vector<8x128xf32>
    %1304 = arith.addf %1266, %1303 : vector<8x128xf32>
    %c14_379 = arith.constant 14 : index
    %1305 = memref.load %arg2[%c14_379] : memref<108xf32, #tpu.memory_space<smem>>
    %1306 = vector.broadcast %1305 : f32 to vector<8x128xf32>
    %1307 = arith.mulf %1306, %1296 : vector<8x128xf32>
    %1308 = arith.addf %1270, %1307 : vector<8x128xf32>
    %c48_380 = arith.constant 48 : index
    %1309 = memref.load %arg2[%c48_380] : memref<108xf32, #tpu.memory_space<smem>>
    %1310 = vector.broadcast %1309 : f32 to vector<8x128xf32>
    %1311 = arith.mulf %1310, %1296 : vector<8x128xf32>
    %1312 = arith.addf %1274, %1311 : vector<8x128xf32>
    %c49_381 = arith.constant 49 : index
    %1313 = memref.load %arg2[%c49_381] : memref<108xf32, #tpu.memory_space<smem>>
    %1314 = vector.broadcast %1313 : f32 to vector<8x128xf32>
    %1315 = arith.mulf %1314, %1296 : vector<8x128xf32>
    %1316 = arith.addf %1278, %1315 : vector<8x128xf32>
    %c50_382 = arith.constant 50 : index
    %1317 = memref.load %arg2[%c50_382] : memref<108xf32, #tpu.memory_space<smem>>
    %1318 = vector.broadcast %1317 : f32 to vector<8x128xf32>
    %1319 = arith.mulf %1318, %1296 : vector<8x128xf32>
    %1320 = arith.addf %1282, %1319 : vector<8x128xf32>
    %c84_383 = arith.constant 84 : index
    %1321 = memref.load %arg2[%c84_383] : memref<108xf32, #tpu.memory_space<smem>>
    %1322 = vector.broadcast %1321 : f32 to vector<8x128xf32>
    %1323 = arith.mulf %1322, %1296 : vector<8x128xf32>
    %1324 = arith.addf %1286, %1323 : vector<8x128xf32>
    %c85_384 = arith.constant 85 : index
    %1325 = memref.load %arg2[%c85_384] : memref<108xf32, #tpu.memory_space<smem>>
    %1326 = vector.broadcast %1325 : f32 to vector<8x128xf32>
    %1327 = arith.mulf %1326, %1296 : vector<8x128xf32>
    %1328 = arith.addf %1290, %1327 : vector<8x128xf32>
    %c86_385 = arith.constant 86 : index
    %1329 = memref.load %arg2[%c86_385] : memref<108xf32, #tpu.memory_space<smem>>
    %1330 = vector.broadcast %1329 : f32 to vector<8x128xf32>
    %1331 = arith.mulf %1330, %1296 : vector<8x128xf32>
    %1332 = arith.addf %1294, %1331 : vector<8x128xf32>
    %c1_386 = arith.constant 1 : index
    %c25_387 = arith.constant 25 : index
    %c0_388 = arith.constant 0 : index
    %1333 = vector.load %arg7[%c1_386, %c25_387, %c0_388] : memref<3x41x128xf32, #tpu.memory_space<vmem>>, vector<1x8x128xf32>
    %1334 = vector.shape_cast %1333 : vector<1x8x128xf32> to vector<8x128xf32>
    %c15_389 = arith.constant 15 : index
    %1335 = memref.load %arg2[%c15_389] : memref<108xf32, #tpu.memory_space<smem>>
    %1336 = vector.broadcast %1335 : f32 to vector<8x128xf32>
    %1337 = arith.mulf %1336, %1334 : vector<8x128xf32>
    %1338 = arith.addf %1300, %1337 : vector<8x128xf32>
    %c16_390 = arith.constant 16 : index
    %1339 = memref.load %arg2[%c16_390] : memref<108xf32, #tpu.memory_space<smem>>
    %1340 = vector.broadcast %1339 : f32 to vector<8x128xf32>
    %1341 = arith.mulf %1340, %1334 : vector<8x128xf32>
    %1342 = arith.addf %1304, %1341 : vector<8x128xf32>
    %c17_391 = arith.constant 17 : index
    %1343 = memref.load %arg2[%c17_391] : memref<108xf32, #tpu.memory_space<smem>>
    %1344 = vector.broadcast %1343 : f32 to vector<8x128xf32>
    %1345 = arith.mulf %1344, %1334 : vector<8x128xf32>
    %1346 = arith.addf %1308, %1345 : vector<8x128xf32>
    %c51_392 = arith.constant 51 : index
    %1347 = memref.load %arg2[%c51_392] : memref<108xf32, #tpu.memory_space<smem>>
    %1348 = vector.broadcast %1347 : f32 to vector<8x128xf32>
    %1349 = arith.mulf %1348, %1334 : vector<8x128xf32>
    %1350 = arith.addf %1312, %1349 : vector<8x128xf32>
    %c52_393 = arith.constant 52 : index
    %1351 = memref.load %arg2[%c52_393] : memref<108xf32, #tpu.memory_space<smem>>
    %1352 = vector.broadcast %1351 : f32 to vector<8x128xf32>
    %1353 = arith.mulf %1352, %1334 : vector<8x128xf32>
    %1354 = arith.addf %1316, %1353 : vector<8x128xf32>
    %c53_394 = arith.constant 53 : index
    %1355 = memref.load %arg2[%c53_394] : memref<108xf32, #tpu.memory_space<smem>>
    %1356 = vector.broadcast %1355 : f32 to vector<8x128xf32>
    %1357 = arith.mulf %1356, %1334 : vector<8x128xf32>
    %1358 = arith.addf %1320, %1357 : vector<8x128xf32>
    %c87_395 = arith.constant 87 : index
    %1359 = memref.load %arg2[%c87_395] : memref<108xf32, #tpu.memory_space<smem>>
    %1360 = vector.broadcast %1359 : f32 to vector<8x128xf32>
    %1361 = arith.mulf %1360, %1334 : vector<8x128xf32>
    %1362 = arith.addf %1324, %1361 : vector<8x128xf32>
    %c88_396 = arith.constant 88 : index
    %1363 = memref.load %arg2[%c88_396] : memref<108xf32, #tpu.memory_space<smem>>
    %1364 = vector.broadcast %1363 : f32 to vector<8x128xf32>
    %1365 = arith.mulf %1364, %1334 : vector<8x128xf32>
    %1366 = arith.addf %1328, %1365 : vector<8x128xf32>
    %c89_397 = arith.constant 89 : index
    %1367 = memref.load %arg2[%c89_397] : memref<108xf32, #tpu.memory_space<smem>>
    %1368 = vector.broadcast %1367 : f32 to vector<8x128xf32>
    %1369 = arith.mulf %1368, %1334 : vector<8x128xf32>
    %1370 = arith.addf %1332, %1369 : vector<8x128xf32>
    %c2_398 = arith.constant 2 : index
    %c23_399 = arith.constant 23 : index
    %c0_400 = arith.constant 0 : index
    %1371 = vector.load %arg7[%c2_398, %c23_399, %c0_400] : memref<3x41x128xf32, #tpu.memory_space<vmem>>, vector<1x8x128xf32>
    %1372 = vector.shape_cast %1371 : vector<1x8x128xf32> to vector<8x128xf32>
    %c18_401 = arith.constant 18 : index
    %1373 = memref.load %arg2[%c18_401] : memref<108xf32, #tpu.memory_space<smem>>
    %1374 = vector.broadcast %1373 : f32 to vector<8x128xf32>
    %1375 = arith.mulf %1374, %1372 : vector<8x128xf32>
    %1376 = arith.addf %1338, %1375 : vector<8x128xf32>
    %c19_402 = arith.constant 19 : index
    %1377 = memref.load %arg2[%c19_402] : memref<108xf32, #tpu.memory_space<smem>>
    %1378 = vector.broadcast %1377 : f32 to vector<8x128xf32>
    %1379 = arith.mulf %1378, %1372 : vector<8x128xf32>
    %1380 = arith.addf %1342, %1379 : vector<8x128xf32>
    %c20_403 = arith.constant 20 : index
    %1381 = memref.load %arg2[%c20_403] : memref<108xf32, #tpu.memory_space<smem>>
    %1382 = vector.broadcast %1381 : f32 to vector<8x128xf32>
    %1383 = arith.mulf %1382, %1372 : vector<8x128xf32>
    %1384 = arith.addf %1346, %1383 : vector<8x128xf32>
    %c54_404 = arith.constant 54 : index
    %1385 = memref.load %arg2[%c54_404] : memref<108xf32, #tpu.memory_space<smem>>
    %1386 = vector.broadcast %1385 : f32 to vector<8x128xf32>
    %1387 = arith.mulf %1386, %1372 : vector<8x128xf32>
    %1388 = arith.addf %1350, %1387 : vector<8x128xf32>
    %c55_405 = arith.constant 55 : index
    %1389 = memref.load %arg2[%c55_405] : memref<108xf32, #tpu.memory_space<smem>>
    %1390 = vector.broadcast %1389 : f32 to vector<8x128xf32>
    %1391 = arith.mulf %1390, %1372 : vector<8x128xf32>
    %1392 = arith.addf %1354, %1391 : vector<8x128xf32>
    %c56_406 = arith.constant 56 : index
    %1393 = memref.load %arg2[%c56_406] : memref<108xf32, #tpu.memory_space<smem>>
    %1394 = vector.broadcast %1393 : f32 to vector<8x128xf32>
    %1395 = arith.mulf %1394, %1372 : vector<8x128xf32>
    %1396 = arith.addf %1358, %1395 : vector<8x128xf32>
    %c90_407 = arith.constant 90 : index
    %1397 = memref.load %arg2[%c90_407] : memref<108xf32, #tpu.memory_space<smem>>
    %1398 = vector.broadcast %1397 : f32 to vector<8x128xf32>
    %1399 = arith.mulf %1398, %1372 : vector<8x128xf32>
    %1400 = arith.addf %1362, %1399 : vector<8x128xf32>
    %c91_408 = arith.constant 91 : index
    %1401 = memref.load %arg2[%c91_408] : memref<108xf32, #tpu.memory_space<smem>>
    %1402 = vector.broadcast %1401 : f32 to vector<8x128xf32>
    %1403 = arith.mulf %1402, %1372 : vector<8x128xf32>
    %1404 = arith.addf %1366, %1403 : vector<8x128xf32>
    %c92_409 = arith.constant 92 : index
    %1405 = memref.load %arg2[%c92_409] : memref<108xf32, #tpu.memory_space<smem>>
    %1406 = vector.broadcast %1405 : f32 to vector<8x128xf32>
    %1407 = arith.mulf %1406, %1372 : vector<8x128xf32>
    %1408 = arith.addf %1370, %1407 : vector<8x128xf32>
    %c2_410 = arith.constant 2 : index
    %c24_411 = arith.constant 24 : index
    %c0_412 = arith.constant 0 : index
    %1409 = vector.load %arg7[%c2_410, %c24_411, %c0_412] : memref<3x41x128xf32, #tpu.memory_space<vmem>>, vector<1x8x128xf32>
    %1410 = vector.shape_cast %1409 : vector<1x8x128xf32> to vector<8x128xf32>
    %c21_413 = arith.constant 21 : index
    %1411 = memref.load %arg2[%c21_413] : memref<108xf32, #tpu.memory_space<smem>>
    %1412 = vector.broadcast %1411 : f32 to vector<8x128xf32>
    %1413 = arith.mulf %1412, %1410 : vector<8x128xf32>
    %1414 = arith.addf %1376, %1413 : vector<8x128xf32>
    %c22_414 = arith.constant 22 : index
    %1415 = memref.load %arg2[%c22_414] : memref<108xf32, #tpu.memory_space<smem>>
    %1416 = vector.broadcast %1415 : f32 to vector<8x128xf32>
    %1417 = arith.mulf %1416, %1410 : vector<8x128xf32>
    %1418 = arith.addf %1380, %1417 : vector<8x128xf32>
    %c23_415 = arith.constant 23 : index
    %1419 = memref.load %arg2[%c23_415] : memref<108xf32, #tpu.memory_space<smem>>
    %1420 = vector.broadcast %1419 : f32 to vector<8x128xf32>
    %1421 = arith.mulf %1420, %1410 : vector<8x128xf32>
    %1422 = arith.addf %1384, %1421 : vector<8x128xf32>
    %c57_416 = arith.constant 57 : index
    %1423 = memref.load %arg2[%c57_416] : memref<108xf32, #tpu.memory_space<smem>>
    %1424 = vector.broadcast %1423 : f32 to vector<8x128xf32>
    %1425 = arith.mulf %1424, %1410 : vector<8x128xf32>
    %1426 = arith.addf %1388, %1425 : vector<8x128xf32>
    %c58_417 = arith.constant 58 : index
    %1427 = memref.load %arg2[%c58_417] : memref<108xf32, #tpu.memory_space<smem>>
    %1428 = vector.broadcast %1427 : f32 to vector<8x128xf32>
    %1429 = arith.mulf %1428, %1410 : vector<8x128xf32>
    %1430 = arith.addf %1392, %1429 : vector<8x128xf32>
    %c59_418 = arith.constant 59 : index
    %1431 = memref.load %arg2[%c59_418] : memref<108xf32, #tpu.memory_space<smem>>
    %1432 = vector.broadcast %1431 : f32 to vector<8x128xf32>
    %1433 = arith.mulf %1432, %1410 : vector<8x128xf32>
    %1434 = arith.addf %1396, %1433 : vector<8x128xf32>
    %c93_419 = arith.constant 93 : index
    %1435 = memref.load %arg2[%c93_419] : memref<108xf32, #tpu.memory_space<smem>>
    %1436 = vector.broadcast %1435 : f32 to vector<8x128xf32>
    %1437 = arith.mulf %1436, %1410 : vector<8x128xf32>
    %1438 = arith.addf %1400, %1437 : vector<8x128xf32>
    %c94_420 = arith.constant 94 : index
    %1439 = memref.load %arg2[%c94_420] : memref<108xf32, #tpu.memory_space<smem>>
    %1440 = vector.broadcast %1439 : f32 to vector<8x128xf32>
    %1441 = arith.mulf %1440, %1410 : vector<8x128xf32>
    %1442 = arith.addf %1404, %1441 : vector<8x128xf32>
    %c95_421 = arith.constant 95 : index
    %1443 = memref.load %arg2[%c95_421] : memref<108xf32, #tpu.memory_space<smem>>
    %1444 = vector.broadcast %1443 : f32 to vector<8x128xf32>
    %1445 = arith.mulf %1444, %1410 : vector<8x128xf32>
    %1446 = arith.addf %1408, %1445 : vector<8x128xf32>
    %c2_422 = arith.constant 2 : index
    %c25_423 = arith.constant 25 : index
    %c0_424 = arith.constant 0 : index
    %1447 = vector.load %arg7[%c2_422, %c25_423, %c0_424] : memref<3x41x128xf32, #tpu.memory_space<vmem>>, vector<1x8x128xf32>
    %1448 = vector.shape_cast %1447 : vector<1x8x128xf32> to vector<8x128xf32>
    %c24_425 = arith.constant 24 : index
    %1449 = memref.load %arg2[%c24_425] : memref<108xf32, #tpu.memory_space<smem>>
    %1450 = vector.broadcast %1449 : f32 to vector<8x128xf32>
    %1451 = arith.mulf %1450, %1448 : vector<8x128xf32>
    %1452 = arith.addf %1414, %1451 : vector<8x128xf32>
    %c25_426 = arith.constant 25 : index
    %1453 = memref.load %arg2[%c25_426] : memref<108xf32, #tpu.memory_space<smem>>
    %1454 = vector.broadcast %1453 : f32 to vector<8x128xf32>
    %1455 = arith.mulf %1454, %1448 : vector<8x128xf32>
    %1456 = arith.addf %1418, %1455 : vector<8x128xf32>
    %c26_427 = arith.constant 26 : index
    %1457 = memref.load %arg2[%c26_427] : memref<108xf32, #tpu.memory_space<smem>>
    %1458 = vector.broadcast %1457 : f32 to vector<8x128xf32>
    %1459 = arith.mulf %1458, %1448 : vector<8x128xf32>
    %1460 = arith.addf %1422, %1459 : vector<8x128xf32>
    %c60_428 = arith.constant 60 : index
    %1461 = memref.load %arg2[%c60_428] : memref<108xf32, #tpu.memory_space<smem>>
    %1462 = vector.broadcast %1461 : f32 to vector<8x128xf32>
    %1463 = arith.mulf %1462, %1448 : vector<8x128xf32>
    %1464 = arith.addf %1426, %1463 : vector<8x128xf32>
    %c61_429 = arith.constant 61 : index
    %1465 = memref.load %arg2[%c61_429] : memref<108xf32, #tpu.memory_space<smem>>
    %1466 = vector.broadcast %1465 : f32 to vector<8x128xf32>
    %1467 = arith.mulf %1466, %1448 : vector<8x128xf32>
    %1468 = arith.addf %1430, %1467 : vector<8x128xf32>
    %c62_430 = arith.constant 62 : index
    %1469 = memref.load %arg2[%c62_430] : memref<108xf32, #tpu.memory_space<smem>>
    %1470 = vector.broadcast %1469 : f32 to vector<8x128xf32>
    %1471 = arith.mulf %1470, %1448 : vector<8x128xf32>
    %1472 = arith.addf %1434, %1471 : vector<8x128xf32>
    %c96_431 = arith.constant 96 : index
    %1473 = memref.load %arg2[%c96_431] : memref<108xf32, #tpu.memory_space<smem>>
    %1474 = vector.broadcast %1473 : f32 to vector<8x128xf32>
    %1475 = arith.mulf %1474, %1448 : vector<8x128xf32>
    %1476 = arith.addf %1438, %1475 : vector<8x128xf32>
    %c97_432 = arith.constant 97 : index
    %1477 = memref.load %arg2[%c97_432] : memref<108xf32, #tpu.memory_space<smem>>
    %1478 = vector.broadcast %1477 : f32 to vector<8x128xf32>
    %1479 = arith.mulf %1478, %1448 : vector<8x128xf32>
    %1480 = arith.addf %1442, %1479 : vector<8x128xf32>
    %c98_433 = arith.constant 98 : index
    %1481 = memref.load %arg2[%c98_433] : memref<108xf32, #tpu.memory_space<smem>>
    %1482 = vector.broadcast %1481 : f32 to vector<8x128xf32>
    %1483 = arith.mulf %1482, %1448 : vector<8x128xf32>
    %1484 = arith.addf %1446, %1483 : vector<8x128xf32>
    %c23_434 = arith.constant 23 : index
    %c0_435 = arith.constant 0 : index
    %1485 = vector.load %arg8[%c23_434, %c0_435] : memref<41x128xf32, #tpu.memory_space<vmem>>, vector<8x128xf32>
    %c27_436 = arith.constant 27 : index
    %1486 = memref.load %arg2[%c27_436] : memref<108xf32, #tpu.memory_space<smem>>
    %1487 = vector.broadcast %1486 : f32 to vector<8x128xf32>
    %1488 = arith.mulf %1487, %1485 : vector<8x128xf32>
    %1489 = arith.addf %1452, %1488 : vector<8x128xf32>
    %c28_437 = arith.constant 28 : index
    %1490 = memref.load %arg2[%c28_437] : memref<108xf32, #tpu.memory_space<smem>>
    %1491 = vector.broadcast %1490 : f32 to vector<8x128xf32>
    %1492 = arith.mulf %1491, %1485 : vector<8x128xf32>
    %1493 = arith.addf %1456, %1492 : vector<8x128xf32>
    %c29_438 = arith.constant 29 : index
    %1494 = memref.load %arg2[%c29_438] : memref<108xf32, #tpu.memory_space<smem>>
    %1495 = vector.broadcast %1494 : f32 to vector<8x128xf32>
    %1496 = arith.mulf %1495, %1485 : vector<8x128xf32>
    %1497 = arith.addf %1460, %1496 : vector<8x128xf32>
    %c63_439 = arith.constant 63 : index
    %1498 = memref.load %arg2[%c63_439] : memref<108xf32, #tpu.memory_space<smem>>
    %1499 = vector.broadcast %1498 : f32 to vector<8x128xf32>
    %1500 = arith.mulf %1499, %1485 : vector<8x128xf32>
    %1501 = arith.addf %1464, %1500 : vector<8x128xf32>
    %c64_440 = arith.constant 64 : index
    %1502 = memref.load %arg2[%c64_440] : memref<108xf32, #tpu.memory_space<smem>>
    %1503 = vector.broadcast %1502 : f32 to vector<8x128xf32>
    %1504 = arith.mulf %1503, %1485 : vector<8x128xf32>
    %1505 = arith.addf %1468, %1504 : vector<8x128xf32>
    %c65_441 = arith.constant 65 : index
    %1506 = memref.load %arg2[%c65_441] : memref<108xf32, #tpu.memory_space<smem>>
    %1507 = vector.broadcast %1506 : f32 to vector<8x128xf32>
    %1508 = arith.mulf %1507, %1485 : vector<8x128xf32>
    %1509 = arith.addf %1472, %1508 : vector<8x128xf32>
    %c99_442 = arith.constant 99 : index
    %1510 = memref.load %arg2[%c99_442] : memref<108xf32, #tpu.memory_space<smem>>
    %1511 = vector.broadcast %1510 : f32 to vector<8x128xf32>
    %1512 = arith.mulf %1511, %1485 : vector<8x128xf32>
    %1513 = arith.addf %1476, %1512 : vector<8x128xf32>
    %c100_443 = arith.constant 100 : index
    %1514 = memref.load %arg2[%c100_443] : memref<108xf32, #tpu.memory_space<smem>>
    %1515 = vector.broadcast %1514 : f32 to vector<8x128xf32>
    %1516 = arith.mulf %1515, %1485 : vector<8x128xf32>
    %1517 = arith.addf %1480, %1516 : vector<8x128xf32>
    %c101_444 = arith.constant 101 : index
    %1518 = memref.load %arg2[%c101_444] : memref<108xf32, #tpu.memory_space<smem>>
    %1519 = vector.broadcast %1518 : f32 to vector<8x128xf32>
    %1520 = arith.mulf %1519, %1485 : vector<8x128xf32>
    %1521 = arith.addf %1484, %1520 : vector<8x128xf32>
    %c24_445 = arith.constant 24 : index
    %c0_446 = arith.constant 0 : index
    %1522 = vector.load %arg8[%c24_445, %c0_446] : memref<41x128xf32, #tpu.memory_space<vmem>>, vector<8x128xf32>
    %c30_447 = arith.constant 30 : index
    %1523 = memref.load %arg2[%c30_447] : memref<108xf32, #tpu.memory_space<smem>>
    %1524 = vector.broadcast %1523 : f32 to vector<8x128xf32>
    %1525 = arith.mulf %1524, %1522 : vector<8x128xf32>
    %1526 = arith.addf %1489, %1525 : vector<8x128xf32>
    %c31_448 = arith.constant 31 : index
    %1527 = memref.load %arg2[%c31_448] : memref<108xf32, #tpu.memory_space<smem>>
    %1528 = vector.broadcast %1527 : f32 to vector<8x128xf32>
    %1529 = arith.mulf %1528, %1522 : vector<8x128xf32>
    %1530 = arith.addf %1493, %1529 : vector<8x128xf32>
    %c32_449 = arith.constant 32 : index
    %1531 = memref.load %arg2[%c32_449] : memref<108xf32, #tpu.memory_space<smem>>
    %1532 = vector.broadcast %1531 : f32 to vector<8x128xf32>
    %1533 = arith.mulf %1532, %1522 : vector<8x128xf32>
    %1534 = arith.addf %1497, %1533 : vector<8x128xf32>
    %c66_450 = arith.constant 66 : index
    %1535 = memref.load %arg2[%c66_450] : memref<108xf32, #tpu.memory_space<smem>>
    %1536 = vector.broadcast %1535 : f32 to vector<8x128xf32>
    %1537 = arith.mulf %1536, %1522 : vector<8x128xf32>
    %1538 = arith.addf %1501, %1537 : vector<8x128xf32>
    %c67_451 = arith.constant 67 : index
    %1539 = memref.load %arg2[%c67_451] : memref<108xf32, #tpu.memory_space<smem>>
    %1540 = vector.broadcast %1539 : f32 to vector<8x128xf32>
    %1541 = arith.mulf %1540, %1522 : vector<8x128xf32>
    %1542 = arith.addf %1505, %1541 : vector<8x128xf32>
    %c68_452 = arith.constant 68 : index
    %1543 = memref.load %arg2[%c68_452] : memref<108xf32, #tpu.memory_space<smem>>
    %1544 = vector.broadcast %1543 : f32 to vector<8x128xf32>
    %1545 = arith.mulf %1544, %1522 : vector<8x128xf32>
    %1546 = arith.addf %1509, %1545 : vector<8x128xf32>
    %c102_453 = arith.constant 102 : index
    %1547 = memref.load %arg2[%c102_453] : memref<108xf32, #tpu.memory_space<smem>>
    %1548 = vector.broadcast %1547 : f32 to vector<8x128xf32>
    %1549 = arith.mulf %1548, %1522 : vector<8x128xf32>
    %1550 = arith.addf %1513, %1549 : vector<8x128xf32>
    %c103_454 = arith.constant 103 : index
    %1551 = memref.load %arg2[%c103_454] : memref<108xf32, #tpu.memory_space<smem>>
    %1552 = vector.broadcast %1551 : f32 to vector<8x128xf32>
    %1553 = arith.mulf %1552, %1522 : vector<8x128xf32>
    %1554 = arith.addf %1517, %1553 : vector<8x128xf32>
    %c104_455 = arith.constant 104 : index
    %1555 = memref.load %arg2[%c104_455] : memref<108xf32, #tpu.memory_space<smem>>
    %1556 = vector.broadcast %1555 : f32 to vector<8x128xf32>
    %1557 = arith.mulf %1556, %1522 : vector<8x128xf32>
    %1558 = arith.addf %1521, %1557 : vector<8x128xf32>
    %c25_456 = arith.constant 25 : index
    %c0_457 = arith.constant 0 : index
    %1559 = vector.load %arg8[%c25_456, %c0_457] : memref<41x128xf32, #tpu.memory_space<vmem>>, vector<8x128xf32>
    %c33_458 = arith.constant 33 : index
    %1560 = memref.load %arg2[%c33_458] : memref<108xf32, #tpu.memory_space<smem>>
    %1561 = vector.broadcast %1560 : f32 to vector<8x128xf32>
    %1562 = arith.mulf %1561, %1559 : vector<8x128xf32>
    %1563 = arith.addf %1526, %1562 : vector<8x128xf32>
    %c34_459 = arith.constant 34 : index
    %1564 = memref.load %arg2[%c34_459] : memref<108xf32, #tpu.memory_space<smem>>
    %1565 = vector.broadcast %1564 : f32 to vector<8x128xf32>
    %1566 = arith.mulf %1565, %1559 : vector<8x128xf32>
    %1567 = arith.addf %1530, %1566 : vector<8x128xf32>
    %c35_460 = arith.constant 35 : index
    %1568 = memref.load %arg2[%c35_460] : memref<108xf32, #tpu.memory_space<smem>>
    %1569 = vector.broadcast %1568 : f32 to vector<8x128xf32>
    %1570 = arith.mulf %1569, %1559 : vector<8x128xf32>
    %1571 = arith.addf %1534, %1570 : vector<8x128xf32>
    %c69_461 = arith.constant 69 : index
    %1572 = memref.load %arg2[%c69_461] : memref<108xf32, #tpu.memory_space<smem>>
    %1573 = vector.broadcast %1572 : f32 to vector<8x128xf32>
    %1574 = arith.mulf %1573, %1559 : vector<8x128xf32>
    %1575 = arith.addf %1538, %1574 : vector<8x128xf32>
    %c70_462 = arith.constant 70 : index
    %1576 = memref.load %arg2[%c70_462] : memref<108xf32, #tpu.memory_space<smem>>
    %1577 = vector.broadcast %1576 : f32 to vector<8x128xf32>
    %1578 = arith.mulf %1577, %1559 : vector<8x128xf32>
    %1579 = arith.addf %1542, %1578 : vector<8x128xf32>
    %c71_463 = arith.constant 71 : index
    %1580 = memref.load %arg2[%c71_463] : memref<108xf32, #tpu.memory_space<smem>>
    %1581 = vector.broadcast %1580 : f32 to vector<8x128xf32>
    %1582 = arith.mulf %1581, %1559 : vector<8x128xf32>
    %1583 = arith.addf %1546, %1582 : vector<8x128xf32>
    %c105_464 = arith.constant 105 : index
    %1584 = memref.load %arg2[%c105_464] : memref<108xf32, #tpu.memory_space<smem>>
    %1585 = vector.broadcast %1584 : f32 to vector<8x128xf32>
    %1586 = arith.mulf %1585, %1559 : vector<8x128xf32>
    %1587 = arith.addf %1550, %1586 : vector<8x128xf32>
    %c106_465 = arith.constant 106 : index
    %1588 = memref.load %arg2[%c106_465] : memref<108xf32, #tpu.memory_space<smem>>
    %1589 = vector.broadcast %1588 : f32 to vector<8x128xf32>
    %1590 = arith.mulf %1589, %1559 : vector<8x128xf32>
    %1591 = arith.addf %1554, %1590 : vector<8x128xf32>
    %c107_466 = arith.constant 107 : index
    %1592 = memref.load %arg2[%c107_466] : memref<108xf32, #tpu.memory_space<smem>>
    %1593 = vector.broadcast %1592 : f32 to vector<8x128xf32>
    %1594 = arith.mulf %1593, %1559 : vector<8x128xf32>
    %1595 = arith.addf %1558, %1594 : vector<8x128xf32>
    %1596 = vector.extract_strided_slice %1563 {offsets = [0, 0], sizes = [8, 127], strides = [1, 1]} : vector<8x128xf32> to vector<8x127xf32>
    %1597 = tpu.concatenate %1130, %1596 in 1 : vector<8x1xf32>, vector<8x127xf32> -> vector<8x128xf32>
    %1598 = vector.extract_strided_slice %1571 {offsets = [0, 1], sizes = [8, 127], strides = [1, 1]} : vector<8x128xf32> to vector<8x127xf32>
    %1599 = tpu.concatenate %1598, %1130 in 1 : vector<8x127xf32>, vector<8x1xf32> -> vector<8x128xf32>
    %1600 = arith.addf %1567, %1597 : vector<8x128xf32>
    %1601 = arith.addf %1600, %1599 : vector<8x128xf32>
    %cst_467 = arith.constant 0.000000e+00 : f32
    %1602 = vector.broadcast %cst_467 : f32 to vector<8x128xf32>
    %1603 = arith.subf %1602, %1601 : vector<8x128xf32>
    %1604 = math.exp %1603 : vector<8x128xf32>
    %cst_468 = arith.constant 1.000000e+00 : f32
    %1605 = vector.broadcast %cst_468 : f32 to vector<8x128xf32>
    %1606 = arith.addf %1605, %1604 : vector<8x128xf32>
    %cst_469 = arith.constant 2.550000e+02 : f32
    %1607 = vector.broadcast %cst_469 : f32 to vector<8x128xf32>
    %1608 = arith.divf %1607, %1606 : vector<8x128xf32>
    %cst_470 = arith.constant 0.000000e+00 : f32
    %cst_471 = arith.constant 2.550000e+02 : f32
    %1609 = vector.broadcast %cst_470 : f32 to vector<8x128xf32>
    %1610 = arith.maximumf %1609, %1608 : vector<8x128xf32>
    %1611 = vector.broadcast %cst_471 : f32 to vector<8x128xf32>
    %1612 = arith.minimumf %1611, %1610 : vector<8x128xf32>
    %c0_472 = arith.constant 0 : index
    %c0_473 = arith.constant 0 : index
    %c16_474 = arith.constant 16 : index
    %c0_475 = arith.constant 0 : index
    %1613 = vector.load %arg6[%c0_472, %c0_473, %c16_474, %c0_475] : memref<1x3x32x128xf32, #tpu.memory_space<vmem>>, vector<1x1x8x128xf32>
    %1614 = vector.shape_cast %1613 : vector<1x1x8x128xf32> to vector<8x128xf32>
    %1615 = vector.shape_cast %1612 : vector<8x128xf32> to vector<1x1x8x128xf32>
    tpu.vector_store %arg6[%c0_472, %c0_473, %c16_474, %c0_475], %1615 {strides = array<i32>} : memref<1x3x32x128xf32, #tpu.memory_space<vmem>>, vector<1x1x8x128xf32>,
    %1616 = vector.extract_strided_slice %1575 {offsets = [0, 0], sizes = [8, 127], strides = [1, 1]} : vector<8x128xf32> to vector<8x127xf32>
    %1617 = tpu.concatenate %1130, %1616 in 1 : vector<8x1xf32>, vector<8x127xf32> -> vector<8x128xf32>
    %1618 = vector.extract_strided_slice %1583 {offsets = [0, 1], sizes = [8, 127], strides = [1, 1]} : vector<8x128xf32> to vector<8x127xf32>
    %1619 = tpu.concatenate %1618, %1130 in 1 : vector<8x127xf32>, vector<8x1xf32> -> vector<8x128xf32>
    %1620 = arith.addf %1579, %1617 : vector<8x128xf32>
    %1621 = arith.addf %1620, %1619 : vector<8x128xf32>
    %cst_476 = arith.constant 0.000000e+00 : f32
    %1622 = vector.broadcast %cst_476 : f32 to vector<8x128xf32>
    %1623 = arith.subf %1622, %1621 : vector<8x128xf32>
    %1624 = math.exp %1623 : vector<8x128xf32>
    %cst_477 = arith.constant 1.000000e+00 : f32
    %1625 = vector.broadcast %cst_477 : f32 to vector<8x128xf32>
    %1626 = arith.addf %1625, %1624 : vector<8x128xf32>
    %cst_478 = arith.constant 2.550000e+02 : f32
    %1627 = vector.broadcast %cst_478 : f32 to vector<8x128xf32>
    %1628 = arith.divf %1627, %1626 : vector<8x128xf32>
    %cst_479 = arith.constant 0.000000e+00 : f32
    %cst_480 = arith.constant 2.550000e+02 : f32
    %1629 = vector.broadcast %cst_479 : f32 to vector<8x128xf32>
    %1630 = arith.maximumf %1629, %1628 : vector<8x128xf32>
    %1631 = vector.broadcast %cst_480 : f32 to vector<8x128xf32>
    %1632 = arith.minimumf %1631, %1630 : vector<8x128xf32>
    %c0_481 = arith.constant 0 : index
    %c1_482 = arith.constant 1 : index
    %c16_483 = arith.constant 16 : index
    %c0_484 = arith.constant 0 : index
    %1633 = vector.load %arg6[%c0_481, %c1_482, %c16_483, %c0_484] : memref<1x3x32x128xf32, #tpu.memory_space<vmem>>, vector<1x1x8x128xf32>
    %1634 = vector.shape_cast %1633 : vector<1x1x8x128xf32> to vector<8x128xf32>
    %1635 = vector.shape_cast %1632 : vector<8x128xf32> to vector<1x1x8x128xf32>
    tpu.vector_store %arg6[%c0_481, %c1_482, %c16_483, %c0_484], %1635 {strides = array<i32>} : memref<1x3x32x128xf32, #tpu.memory_space<vmem>>, vector<1x1x8x128xf32>,
    %1636 = vector.extract_strided_slice %1587 {offsets = [0, 0], sizes = [8, 127], strides = [1, 1]} : vector<8x128xf32> to vector<8x127xf32>
    %1637 = tpu.concatenate %1130, %1636 in 1 : vector<8x1xf32>, vector<8x127xf32> -> vector<8x128xf32>
    %1638 = vector.extract_strided_slice %1595 {offsets = [0, 1], sizes = [8, 127], strides = [1, 1]} : vector<8x128xf32> to vector<8x127xf32>
    %1639 = tpu.concatenate %1638, %1130 in 1 : vector<8x127xf32>, vector<8x1xf32> -> vector<8x128xf32>
    %1640 = arith.addf %1591, %1637 : vector<8x128xf32>
    %1641 = arith.addf %1640, %1639 : vector<8x128xf32>
    %cst_485 = arith.constant 0.000000e+00 : f32
    %1642 = vector.broadcast %cst_485 : f32 to vector<8x128xf32>
    %1643 = arith.subf %1642, %1641 : vector<8x128xf32>
    %1644 = math.exp %1643 : vector<8x128xf32>
    %cst_486 = arith.constant 1.000000e+00 : f32
    %1645 = vector.broadcast %cst_486 : f32 to vector<8x128xf32>
    %1646 = arith.addf %1645, %1644 : vector<8x128xf32>
    %cst_487 = arith.constant 2.550000e+02 : f32
    %1647 = vector.broadcast %cst_487 : f32 to vector<8x128xf32>
    %1648 = arith.divf %1647, %1646 : vector<8x128xf32>
    %cst_488 = arith.constant 0.000000e+00 : f32
    %cst_489 = arith.constant 2.550000e+02 : f32
    %1649 = vector.broadcast %cst_488 : f32 to vector<8x128xf32>
    %1650 = arith.maximumf %1649, %1648 : vector<8x128xf32>
    %1651 = vector.broadcast %cst_489 : f32 to vector<8x128xf32>
    %1652 = arith.minimumf %1651, %1650 : vector<8x128xf32>
    %c0_490 = arith.constant 0 : index
    %c2_491 = arith.constant 2 : index
    %c16_492 = arith.constant 16 : index
    %c0_493 = arith.constant 0 : index
    %1653 = vector.load %arg6[%c0_490, %c2_491, %c16_492, %c0_493] : memref<1x3x32x128xf32, #tpu.memory_space<vmem>>, vector<1x1x8x128xf32>
    %1654 = vector.shape_cast %1653 : vector<1x1x8x128xf32> to vector<8x128xf32>
    %1655 = vector.shape_cast %1652 : vector<8x128xf32> to vector<1x1x8x128xf32>
    tpu.vector_store %arg6[%c0_490, %c2_491, %c16_492, %c0_493], %1655 {strides = array<i32>} : memref<1x3x32x128xf32, #tpu.memory_space<vmem>>, vector<1x1x8x128xf32>,
    %cst_494 = arith.constant 0.000000e+00 : f32
    %1656 = vector.broadcast %cst_494 : f32 to vector<8x1xf32>
    %cst_495 = arith.constant 0.000000e+00 : f32
    %1657 = vector.broadcast %cst_495 : f32 to vector<8x128xf32>
    %cst_496 = arith.constant 0.000000e+00 : f32
    %1658 = vector.broadcast %cst_496 : f32 to vector<8x128xf32>
    %cst_497 = arith.constant 0.000000e+00 : f32
    %1659 = vector.broadcast %cst_497 : f32 to vector<8x128xf32>
    %c0_498 = arith.constant 0 : index
    %1660 = memref.load %arg3[%c0_498] : memref<3xf32, #tpu.memory_space<smem>>
    %1661 = vector.broadcast %1660 : f32 to vector<8x128xf32>
    %c1_499 = arith.constant 1 : index
    %1662 = memref.load %arg3[%c1_499] : memref<3xf32, #tpu.memory_space<smem>>
    %1663 = vector.broadcast %1662 : f32 to vector<8x128xf32>
    %c2_500 = arith.constant 2 : index
    %1664 = memref.load %arg3[%c2_500] : memref<3xf32, #tpu.memory_space<smem>>
    %1665 = vector.broadcast %1664 : f32 to vector<8x128xf32>
    %cst_501 = arith.constant 0.000000e+00 : f32
    %1666 = vector.broadcast %cst_501 : f32 to vector<8x128xf32>
    %cst_502 = arith.constant 0.000000e+00 : f32
    %1667 = vector.broadcast %cst_502 : f32 to vector<8x128xf32>
    %cst_503 = arith.constant 0.000000e+00 : f32
    %1668 = vector.broadcast %cst_503 : f32 to vector<8x128xf32>
    %c0_504 = arith.constant 0 : index
    %c31_505 = arith.constant 31 : index
    %c0_506 = arith.constant 0 : index
    %1669 = vector.load %arg7[%c0_504, %c31_505, %c0_506] : memref<3x41x128xf32, #tpu.memory_space<vmem>>, vector<1x8x128xf32>
    %1670 = vector.shape_cast %1669 : vector<1x8x128xf32> to vector<8x128xf32>
    %c0_507 = arith.constant 0 : index
    %1671 = memref.load %arg2[%c0_507] : memref<108xf32, #tpu.memory_space<smem>>
    %1672 = vector.broadcast %1671 : f32 to vector<8x128xf32>
    %1673 = arith.mulf %1672, %1670 : vector<8x128xf32>
    %1674 = arith.addf %1657, %1673 : vector<8x128xf32>
    %c1_508 = arith.constant 1 : index
    %1675 = memref.load %arg2[%c1_508] : memref<108xf32, #tpu.memory_space<smem>>
    %1676 = vector.broadcast %1675 : f32 to vector<8x128xf32>
    %1677 = arith.mulf %1676, %1670 : vector<8x128xf32>
    %1678 = arith.addf %1661, %1677 : vector<8x128xf32>
    %c2_509 = arith.constant 2 : index
    %1679 = memref.load %arg2[%c2_509] : memref<108xf32, #tpu.memory_space<smem>>
    %1680 = vector.broadcast %1679 : f32 to vector<8x128xf32>
    %1681 = arith.mulf %1680, %1670 : vector<8x128xf32>
    %1682 = arith.addf %1666, %1681 : vector<8x128xf32>
    %c36_510 = arith.constant 36 : index
    %1683 = memref.load %arg2[%c36_510] : memref<108xf32, #tpu.memory_space<smem>>
    %1684 = vector.broadcast %1683 : f32 to vector<8x128xf32>
    %1685 = arith.mulf %1684, %1670 : vector<8x128xf32>
    %1686 = arith.addf %1658, %1685 : vector<8x128xf32>
    %c37_511 = arith.constant 37 : index
    %1687 = memref.load %arg2[%c37_511] : memref<108xf32, #tpu.memory_space<smem>>
    %1688 = vector.broadcast %1687 : f32 to vector<8x128xf32>
    %1689 = arith.mulf %1688, %1670 : vector<8x128xf32>
    %1690 = arith.addf %1663, %1689 : vector<8x128xf32>
    %c38_512 = arith.constant 38 : index
    %1691 = memref.load %arg2[%c38_512] : memref<108xf32, #tpu.memory_space<smem>>
    %1692 = vector.broadcast %1691 : f32 to vector<8x128xf32>
    %1693 = arith.mulf %1692, %1670 : vector<8x128xf32>
    %1694 = arith.addf %1667, %1693 : vector<8x128xf32>
    %c72_513 = arith.constant 72 : index
    %1695 = memref.load %arg2[%c72_513] : memref<108xf32, #tpu.memory_space<smem>>
    %1696 = vector.broadcast %1695 : f32 to vector<8x128xf32>
    %1697 = arith.mulf %1696, %1670 : vector<8x128xf32>
    %1698 = arith.addf %1659, %1697 : vector<8x128xf32>
    %c73_514 = arith.constant 73 : index
    %1699 = memref.load %arg2[%c73_514] : memref<108xf32, #tpu.memory_space<smem>>
    %1700 = vector.broadcast %1699 : f32 to vector<8x128xf32>
    %1701 = arith.mulf %1700, %1670 : vector<8x128xf32>
    %1702 = arith.addf %1665, %1701 : vector<8x128xf32>
    %c74_515 = arith.constant 74 : index
    %1703 = memref.load %arg2[%c74_515] : memref<108xf32, #tpu.memory_space<smem>>
    %1704 = vector.broadcast %1703 : f32 to vector<8x128xf32>
    %1705 = arith.mulf %1704, %1670 : vector<8x128xf32>
    %1706 = arith.addf %1668, %1705 : vector<8x128xf32>
    %c0_516 = arith.constant 0 : index
    %c32_517 = arith.constant 32 : index
    %c0_518 = arith.constant 0 : index
    %1707 = vector.load %arg7[%c0_516, %c32_517, %c0_518] : memref<3x41x128xf32, #tpu.memory_space<vmem>>, vector<1x8x128xf32>
    %1708 = vector.shape_cast %1707 : vector<1x8x128xf32> to vector<8x128xf32>
    %c3_519 = arith.constant 3 : index
    %1709 = memref.load %arg2[%c3_519] : memref<108xf32, #tpu.memory_space<smem>>
    %1710 = vector.broadcast %1709 : f32 to vector<8x128xf32>
    %1711 = arith.mulf %1710, %1708 : vector<8x128xf32>
    %1712 = arith.addf %1674, %1711 : vector<8x128xf32>
    %c4_520 = arith.constant 4 : index
    %1713 = memref.load %arg2[%c4_520] : memref<108xf32, #tpu.memory_space<smem>>
    %1714 = vector.broadcast %1713 : f32 to vector<8x128xf32>
    %1715 = arith.mulf %1714, %1708 : vector<8x128xf32>
    %1716 = arith.addf %1678, %1715 : vector<8x128xf32>
    %c5_521 = arith.constant 5 : index
    %1717 = memref.load %arg2[%c5_521] : memref<108xf32, #tpu.memory_space<smem>>
    %1718 = vector.broadcast %1717 : f32 to vector<8x128xf32>
    %1719 = arith.mulf %1718, %1708 : vector<8x128xf32>
    %1720 = arith.addf %1682, %1719 : vector<8x128xf32>
    %c39_522 = arith.constant 39 : index
    %1721 = memref.load %arg2[%c39_522] : memref<108xf32, #tpu.memory_space<smem>>
    %1722 = vector.broadcast %1721 : f32 to vector<8x128xf32>
    %1723 = arith.mulf %1722, %1708 : vector<8x128xf32>
    %1724 = arith.addf %1686, %1723 : vector<8x128xf32>
    %c40_523 = arith.constant 40 : index
    %1725 = memref.load %arg2[%c40_523] : memref<108xf32, #tpu.memory_space<smem>>
    %1726 = vector.broadcast %1725 : f32 to vector<8x128xf32>
    %1727 = arith.mulf %1726, %1708 : vector<8x128xf32>
    %1728 = arith.addf %1690, %1727 : vector<8x128xf32>
    %c41_524 = arith.constant 41 : index
    %1729 = memref.load %arg2[%c41_524] : memref<108xf32, #tpu.memory_space<smem>>
    %1730 = vector.broadcast %1729 : f32 to vector<8x128xf32>
    %1731 = arith.mulf %1730, %1708 : vector<8x128xf32>
    %1732 = arith.addf %1694, %1731 : vector<8x128xf32>
    %c75_525 = arith.constant 75 : index
    %1733 = memref.load %arg2[%c75_525] : memref<108xf32, #tpu.memory_space<smem>>
    %1734 = vector.broadcast %1733 : f32 to vector<8x128xf32>
    %1735 = arith.mulf %1734, %1708 : vector<8x128xf32>
    %1736 = arith.addf %1698, %1735 : vector<8x128xf32>
    %c76_526 = arith.constant 76 : index
    %1737 = memref.load %arg2[%c76_526] : memref<108xf32, #tpu.memory_space<smem>>
    %1738 = vector.broadcast %1737 : f32 to vector<8x128xf32>
    %1739 = arith.mulf %1738, %1708 : vector<8x128xf32>
    %1740 = arith.addf %1702, %1739 : vector<8x128xf32>
    %c77_527 = arith.constant 77 : index
    %1741 = memref.load %arg2[%c77_527] : memref<108xf32, #tpu.memory_space<smem>>
    %1742 = vector.broadcast %1741 : f32 to vector<8x128xf32>
    %1743 = arith.mulf %1742, %1708 : vector<8x128xf32>
    %1744 = arith.addf %1706, %1743 : vector<8x128xf32>
    %c0_528 = arith.constant 0 : index
    %c33_529 = arith.constant 33 : index
    %c0_530 = arith.constant 0 : index
    %1745 = vector.load %arg7[%c0_528, %c33_529, %c0_530] : memref<3x41x128xf32, #tpu.memory_space<vmem>>, vector<1x8x128xf32>
    %1746 = vector.shape_cast %1745 : vector<1x8x128xf32> to vector<8x128xf32>
    %c6_531 = arith.constant 6 : index
    %1747 = memref.load %arg2[%c6_531] : memref<108xf32, #tpu.memory_space<smem>>
    %1748 = vector.broadcast %1747 : f32 to vector<8x128xf32>
    %1749 = arith.mulf %1748, %1746 : vector<8x128xf32>
    %1750 = arith.addf %1712, %1749 : vector<8x128xf32>
    %c7_532 = arith.constant 7 : index
    %1751 = memref.load %arg2[%c7_532] : memref<108xf32, #tpu.memory_space<smem>>
    %1752 = vector.broadcast %1751 : f32 to vector<8x128xf32>
    %1753 = arith.mulf %1752, %1746 : vector<8x128xf32>
    %1754 = arith.addf %1716, %1753 : vector<8x128xf32>
    %c8_533 = arith.constant 8 : index
    %1755 = memref.load %arg2[%c8_533] : memref<108xf32, #tpu.memory_space<smem>>
    %1756 = vector.broadcast %1755 : f32 to vector<8x128xf32>
    %1757 = arith.mulf %1756, %1746 : vector<8x128xf32>
    %1758 = arith.addf %1720, %1757 : vector<8x128xf32>
    %c42_534 = arith.constant 42 : index
    %1759 = memref.load %arg2[%c42_534] : memref<108xf32, #tpu.memory_space<smem>>
    %1760 = vector.broadcast %1759 : f32 to vector<8x128xf32>
    %1761 = arith.mulf %1760, %1746 : vector<8x128xf32>
    %1762 = arith.addf %1724, %1761 : vector<8x128xf32>
    %c43_535 = arith.constant 43 : index
    %1763 = memref.load %arg2[%c43_535] : memref<108xf32, #tpu.memory_space<smem>>
    %1764 = vector.broadcast %1763 : f32 to vector<8x128xf32>
    %1765 = arith.mulf %1764, %1746 : vector<8x128xf32>
    %1766 = arith.addf %1728, %1765 : vector<8x128xf32>
    %c44_536 = arith.constant 44 : index
    %1767 = memref.load %arg2[%c44_536] : memref<108xf32, #tpu.memory_space<smem>>
    %1768 = vector.broadcast %1767 : f32 to vector<8x128xf32>
    %1769 = arith.mulf %1768, %1746 : vector<8x128xf32>
    %1770 = arith.addf %1732, %1769 : vector<8x128xf32>
    %c78_537 = arith.constant 78 : index
    %1771 = memref.load %arg2[%c78_537] : memref<108xf32, #tpu.memory_space<smem>>
    %1772 = vector.broadcast %1771 : f32 to vector<8x128xf32>
    %1773 = arith.mulf %1772, %1746 : vector<8x128xf32>
    %1774 = arith.addf %1736, %1773 : vector<8x128xf32>
    %c79_538 = arith.constant 79 : index
    %1775 = memref.load %arg2[%c79_538] : memref<108xf32, #tpu.memory_space<smem>>
    %1776 = vector.broadcast %1775 : f32 to vector<8x128xf32>
    %1777 = arith.mulf %1776, %1746 : vector<8x128xf32>
    %1778 = arith.addf %1740, %1777 : vector<8x128xf32>
    %c80_539 = arith.constant 80 : index
    %1779 = memref.load %arg2[%c80_539] : memref<108xf32, #tpu.memory_space<smem>>
    %1780 = vector.broadcast %1779 : f32 to vector<8x128xf32>
    %1781 = arith.mulf %1780, %1746 : vector<8x128xf32>
    %1782 = arith.addf %1744, %1781 : vector<8x128xf32>
    %c1_540 = arith.constant 1 : index
    %c31_541 = arith.constant 31 : index
    %c0_542 = arith.constant 0 : index
    %1783 = vector.load %arg7[%c1_540, %c31_541, %c0_542] : memref<3x41x128xf32, #tpu.memory_space<vmem>>, vector<1x8x128xf32>
    %1784 = vector.shape_cast %1783 : vector<1x8x128xf32> to vector<8x128xf32>
    %c9_543 = arith.constant 9 : index
    %1785 = memref.load %arg2[%c9_543] : memref<108xf32, #tpu.memory_space<smem>>
    %1786 = vector.broadcast %1785 : f32 to vector<8x128xf32>
    %1787 = arith.mulf %1786, %1784 : vector<8x128xf32>
    %1788 = arith.addf %1750, %1787 : vector<8x128xf32>
    %c10_544 = arith.constant 10 : index
    %1789 = memref.load %arg2[%c10_544] : memref<108xf32, #tpu.memory_space<smem>>
    %1790 = vector.broadcast %1789 : f32 to vector<8x128xf32>
    %1791 = arith.mulf %1790, %1784 : vector<8x128xf32>
    %1792 = arith.addf %1754, %1791 : vector<8x128xf32>
    %c11_545 = arith.constant 11 : index
    %1793 = memref.load %arg2[%c11_545] : memref<108xf32, #tpu.memory_space<smem>>
    %1794 = vector.broadcast %1793 : f32 to vector<8x128xf32>
    %1795 = arith.mulf %1794, %1784 : vector<8x128xf32>
    %1796 = arith.addf %1758, %1795 : vector<8x128xf32>
    %c45_546 = arith.constant 45 : index
    %1797 = memref.load %arg2[%c45_546] : memref<108xf32, #tpu.memory_space<smem>>
    %1798 = vector.broadcast %1797 : f32 to vector<8x128xf32>
    %1799 = arith.mulf %1798, %1784 : vector<8x128xf32>
    %1800 = arith.addf %1762, %1799 : vector<8x128xf32>
    %c46_547 = arith.constant 46 : index
    %1801 = memref.load %arg2[%c46_547] : memref<108xf32, #tpu.memory_space<smem>>
    %1802 = vector.broadcast %1801 : f32 to vector<8x128xf32>
    %1803 = arith.mulf %1802, %1784 : vector<8x128xf32>
    %1804 = arith.addf %1766, %1803 : vector<8x128xf32>
    %c47_548 = arith.constant 47 : index
    %1805 = memref.load %arg2[%c47_548] : memref<108xf32, #tpu.memory_space<smem>>
    %1806 = vector.broadcast %1805 : f32 to vector<8x128xf32>
    %1807 = arith.mulf %1806, %1784 : vector<8x128xf32>
    %1808 = arith.addf %1770, %1807 : vector<8x128xf32>
    %c81_549 = arith.constant 81 : index
    %1809 = memref.load %arg2[%c81_549] : memref<108xf32, #tpu.memory_space<smem>>
    %1810 = vector.broadcast %1809 : f32 to vector<8x128xf32>
    %1811 = arith.mulf %1810, %1784 : vector<8x128xf32>
    %1812 = arith.addf %1774, %1811 : vector<8x128xf32>
    %c82_550 = arith.constant 82 : index
    %1813 = memref.load %arg2[%c82_550] : memref<108xf32, #tpu.memory_space<smem>>
    %1814 = vector.broadcast %1813 : f32 to vector<8x128xf32>
    %1815 = arith.mulf %1814, %1784 : vector<8x128xf32>
    %1816 = arith.addf %1778, %1815 : vector<8x128xf32>
    %c83_551 = arith.constant 83 : index
    %1817 = memref.load %arg2[%c83_551] : memref<108xf32, #tpu.memory_space<smem>>
    %1818 = vector.broadcast %1817 : f32 to vector<8x128xf32>
    %1819 = arith.mulf %1818, %1784 : vector<8x128xf32>
    %1820 = arith.addf %1782, %1819 : vector<8x128xf32>
    %c1_552 = arith.constant 1 : index
    %c32_553 = arith.constant 32 : index
    %c0_554 = arith.constant 0 : index
    %1821 = vector.load %arg7[%c1_552, %c32_553, %c0_554] : memref<3x41x128xf32, #tpu.memory_space<vmem>>, vector<1x8x128xf32>
    %1822 = vector.shape_cast %1821 : vector<1x8x128xf32> to vector<8x128xf32>
    %c12_555 = arith.constant 12 : index
    %1823 = memref.load %arg2[%c12_555] : memref<108xf32, #tpu.memory_space<smem>>
    %1824 = vector.broadcast %1823 : f32 to vector<8x128xf32>
    %1825 = arith.mulf %1824, %1822 : vector<8x128xf32>
    %1826 = arith.addf %1788, %1825 : vector<8x128xf32>
    %c13_556 = arith.constant 13 : index
    %1827 = memref.load %arg2[%c13_556] : memref<108xf32, #tpu.memory_space<smem>>
    %1828 = vector.broadcast %1827 : f32 to vector<8x128xf32>
    %1829 = arith.mulf %1828, %1822 : vector<8x128xf32>
    %1830 = arith.addf %1792, %1829 : vector<8x128xf32>
    %c14_557 = arith.constant 14 : index
    %1831 = memref.load %arg2[%c14_557] : memref<108xf32, #tpu.memory_space<smem>>
    %1832 = vector.broadcast %1831 : f32 to vector<8x128xf32>
    %1833 = arith.mulf %1832, %1822 : vector<8x128xf32>
    %1834 = arith.addf %1796, %1833 : vector<8x128xf32>
    %c48_558 = arith.constant 48 : index
    %1835 = memref.load %arg2[%c48_558] : memref<108xf32, #tpu.memory_space<smem>>
    %1836 = vector.broadcast %1835 : f32 to vector<8x128xf32>
    %1837 = arith.mulf %1836, %1822 : vector<8x128xf32>
    %1838 = arith.addf %1800, %1837 : vector<8x128xf32>
    %c49_559 = arith.constant 49 : index
    %1839 = memref.load %arg2[%c49_559] : memref<108xf32, #tpu.memory_space<smem>>
    %1840 = vector.broadcast %1839 : f32 to vector<8x128xf32>
    %1841 = arith.mulf %1840, %1822 : vector<8x128xf32>
    %1842 = arith.addf %1804, %1841 : vector<8x128xf32>
    %c50_560 = arith.constant 50 : index
    %1843 = memref.load %arg2[%c50_560] : memref<108xf32, #tpu.memory_space<smem>>
    %1844 = vector.broadcast %1843 : f32 to vector<8x128xf32>
    %1845 = arith.mulf %1844, %1822 : vector<8x128xf32>
    %1846 = arith.addf %1808, %1845 : vector<8x128xf32>
    %c84_561 = arith.constant 84 : index
    %1847 = memref.load %arg2[%c84_561] : memref<108xf32, #tpu.memory_space<smem>>
    %1848 = vector.broadcast %1847 : f32 to vector<8x128xf32>
    %1849 = arith.mulf %1848, %1822 : vector<8x128xf32>
    %1850 = arith.addf %1812, %1849 : vector<8x128xf32>
    %c85_562 = arith.constant 85 : index
    %1851 = memref.load %arg2[%c85_562] : memref<108xf32, #tpu.memory_space<smem>>
    %1852 = vector.broadcast %1851 : f32 to vector<8x128xf32>
    %1853 = arith.mulf %1852, %1822 : vector<8x128xf32>
    %1854 = arith.addf %1816, %1853 : vector<8x128xf32>
    %c86_563 = arith.constant 86 : index
    %1855 = memref.load %arg2[%c86_563] : memref<108xf32, #tpu.memory_space<smem>>
    %1856 = vector.broadcast %1855 : f32 to vector<8x128xf32>
    %1857 = arith.mulf %1856, %1822 : vector<8x128xf32>
    %1858 = arith.addf %1820, %1857 : vector<8x128xf32>
    %c1_564 = arith.constant 1 : index
    %c33_565 = arith.constant 33 : index
    %c0_566 = arith.constant 0 : index
    %1859 = vector.load %arg7[%c1_564, %c33_565, %c0_566] : memref<3x41x128xf32, #tpu.memory_space<vmem>>, vector<1x8x128xf32>
    %1860 = vector.shape_cast %1859 : vector<1x8x128xf32> to vector<8x128xf32>
    %c15_567 = arith.constant 15 : index
    %1861 = memref.load %arg2[%c15_567] : memref<108xf32, #tpu.memory_space<smem>>
    %1862 = vector.broadcast %1861 : f32 to vector<8x128xf32>
    %1863 = arith.mulf %1862, %1860 : vector<8x128xf32>
    %1864 = arith.addf %1826, %1863 : vector<8x128xf32>
    %c16_568 = arith.constant 16 : index
    %1865 = memref.load %arg2[%c16_568] : memref<108xf32, #tpu.memory_space<smem>>
    %1866 = vector.broadcast %1865 : f32 to vector<8x128xf32>
    %1867 = arith.mulf %1866, %1860 : vector<8x128xf32>
    %1868 = arith.addf %1830, %1867 : vector<8x128xf32>
    %c17_569 = arith.constant 17 : index
    %1869 = memref.load %arg2[%c17_569] : memref<108xf32, #tpu.memory_space<smem>>
    %1870 = vector.broadcast %1869 : f32 to vector<8x128xf32>
    %1871 = arith.mulf %1870, %1860 : vector<8x128xf32>
    %1872 = arith.addf %1834, %1871 : vector<8x128xf32>
    %c51_570 = arith.constant 51 : index
    %1873 = memref.load %arg2[%c51_570] : memref<108xf32, #tpu.memory_space<smem>>
    %1874 = vector.broadcast %1873 : f32 to vector<8x128xf32>
    %1875 = arith.mulf %1874, %1860 : vector<8x128xf32>
    %1876 = arith.addf %1838, %1875 : vector<8x128xf32>
    %c52_571 = arith.constant 52 : index
    %1877 = memref.load %arg2[%c52_571] : memref<108xf32, #tpu.memory_space<smem>>
    %1878 = vector.broadcast %1877 : f32 to vector<8x128xf32>
    %1879 = arith.mulf %1878, %1860 : vector<8x128xf32>
    %1880 = arith.addf %1842, %1879 : vector<8x128xf32>
    %c53_572 = arith.constant 53 : index
    %1881 = memref.load %arg2[%c53_572] : memref<108xf32, #tpu.memory_space<smem>>
    %1882 = vector.broadcast %1881 : f32 to vector<8x128xf32>
    %1883 = arith.mulf %1882, %1860 : vector<8x128xf32>
    %1884 = arith.addf %1846, %1883 : vector<8x128xf32>
    %c87_573 = arith.constant 87 : index
    %1885 = memref.load %arg2[%c87_573] : memref<108xf32, #tpu.memory_space<smem>>
    %1886 = vector.broadcast %1885 : f32 to vector<8x128xf32>
    %1887 = arith.mulf %1886, %1860 : vector<8x128xf32>
    %1888 = arith.addf %1850, %1887 : vector<8x128xf32>
    %c88_574 = arith.constant 88 : index
    %1889 = memref.load %arg2[%c88_574] : memref<108xf32, #tpu.memory_space<smem>>
    %1890 = vector.broadcast %1889 : f32 to vector<8x128xf32>
    %1891 = arith.mulf %1890, %1860 : vector<8x128xf32>
    %1892 = arith.addf %1854, %1891 : vector<8x128xf32>
    %c89_575 = arith.constant 89 : index
    %1893 = memref.load %arg2[%c89_575] : memref<108xf32, #tpu.memory_space<smem>>
    %1894 = vector.broadcast %1893 : f32 to vector<8x128xf32>
    %1895 = arith.mulf %1894, %1860 : vector<8x128xf32>
    %1896 = arith.addf %1858, %1895 : vector<8x128xf32>
    %c2_576 = arith.constant 2 : index
    %c31_577 = arith.constant 31 : index
    %c0_578 = arith.constant 0 : index
    %1897 = vector.load %arg7[%c2_576, %c31_577, %c0_578] : memref<3x41x128xf32, #tpu.memory_space<vmem>>, vector<1x8x128xf32>
    %1898 = vector.shape_cast %1897 : vector<1x8x128xf32> to vector<8x128xf32>
    %c18_579 = arith.constant 18 : index
    %1899 = memref.load %arg2[%c18_579] : memref<108xf32, #tpu.memory_space<smem>>
    %1900 = vector.broadcast %1899 : f32 to vector<8x128xf32>
    %1901 = arith.mulf %1900, %1898 : vector<8x128xf32>
    %1902 = arith.addf %1864, %1901 : vector<8x128xf32>
    %c19_580 = arith.constant 19 : index
    %1903 = memref.load %arg2[%c19_580] : memref<108xf32, #tpu.memory_space<smem>>
    %1904 = vector.broadcast %1903 : f32 to vector<8x128xf32>
    %1905 = arith.mulf %1904, %1898 : vector<8x128xf32>
    %1906 = arith.addf %1868, %1905 : vector<8x128xf32>
    %c20_581 = arith.constant 20 : index
    %1907 = memref.load %arg2[%c20_581] : memref<108xf32, #tpu.memory_space<smem>>
    %1908 = vector.broadcast %1907 : f32 to vector<8x128xf32>
    %1909 = arith.mulf %1908, %1898 : vector<8x128xf32>
    %1910 = arith.addf %1872, %1909 : vector<8x128xf32>
    %c54_582 = arith.constant 54 : index
    %1911 = memref.load %arg2[%c54_582] : memref<108xf32, #tpu.memory_space<smem>>
    %1912 = vector.broadcast %1911 : f32 to vector<8x128xf32>
    %1913 = arith.mulf %1912, %1898 : vector<8x128xf32>
    %1914 = arith.addf %1876, %1913 : vector<8x128xf32>
    %c55_583 = arith.constant 55 : index
    %1915 = memref.load %arg2[%c55_583] : memref<108xf32, #tpu.memory_space<smem>>
    %1916 = vector.broadcast %1915 : f32 to vector<8x128xf32>
    %1917 = arith.mulf %1916, %1898 : vector<8x128xf32>
    %1918 = arith.addf %1880, %1917 : vector<8x128xf32>
    %c56_584 = arith.constant 56 : index
    %1919 = memref.load %arg2[%c56_584] : memref<108xf32, #tpu.memory_space<smem>>
    %1920 = vector.broadcast %1919 : f32 to vector<8x128xf32>
    %1921 = arith.mulf %1920, %1898 : vector<8x128xf32>
    %1922 = arith.addf %1884, %1921 : vector<8x128xf32>
    %c90_585 = arith.constant 90 : index
    %1923 = memref.load %arg2[%c90_585] : memref<108xf32, #tpu.memory_space<smem>>
    %1924 = vector.broadcast %1923 : f32 to vector<8x128xf32>
    %1925 = arith.mulf %1924, %1898 : vector<8x128xf32>
    %1926 = arith.addf %1888, %1925 : vector<8x128xf32>
    %c91_586 = arith.constant 91 : index
    %1927 = memref.load %arg2[%c91_586] : memref<108xf32, #tpu.memory_space<smem>>
    %1928 = vector.broadcast %1927 : f32 to vector<8x128xf32>
    %1929 = arith.mulf %1928, %1898 : vector<8x128xf32>
    %1930 = arith.addf %1892, %1929 : vector<8x128xf32>
    %c92_587 = arith.constant 92 : index
    %1931 = memref.load %arg2[%c92_587] : memref<108xf32, #tpu.memory_space<smem>>
    %1932 = vector.broadcast %1931 : f32 to vector<8x128xf32>
    %1933 = arith.mulf %1932, %1898 : vector<8x128xf32>
    %1934 = arith.addf %1896, %1933 : vector<8x128xf32>
    %c2_588 = arith.constant 2 : index
    %c32_589 = arith.constant 32 : index
    %c0_590 = arith.constant 0 : index
    %1935 = vector.load %arg7[%c2_588, %c32_589, %c0_590] : memref<3x41x128xf32, #tpu.memory_space<vmem>>, vector<1x8x128xf32>
    %1936 = vector.shape_cast %1935 : vector<1x8x128xf32> to vector<8x128xf32>
    %c21_591 = arith.constant 21 : index
    %1937 = memref.load %arg2[%c21_591] : memref<108xf32, #tpu.memory_space<smem>>
    %1938 = vector.broadcast %1937 : f32 to vector<8x128xf32>
    %1939 = arith.mulf %1938, %1936 : vector<8x128xf32>
    %1940 = arith.addf %1902, %1939 : vector<8x128xf32>
    %c22_592 = arith.constant 22 : index
    %1941 = memref.load %arg2[%c22_592] : memref<108xf32, #tpu.memory_space<smem>>
    %1942 = vector.broadcast %1941 : f32 to vector<8x128xf32>
    %1943 = arith.mulf %1942, %1936 : vector<8x128xf32>
    %1944 = arith.addf %1906, %1943 : vector<8x128xf32>
    %c23_593 = arith.constant 23 : index
    %1945 = memref.load %arg2[%c23_593] : memref<108xf32, #tpu.memory_space<smem>>
    %1946 = vector.broadcast %1945 : f32 to vector<8x128xf32>
    %1947 = arith.mulf %1946, %1936 : vector<8x128xf32>
    %1948 = arith.addf %1910, %1947 : vector<8x128xf32>
    %c57_594 = arith.constant 57 : index
    %1949 = memref.load %arg2[%c57_594] : memref<108xf32, #tpu.memory_space<smem>>
    %1950 = vector.broadcast %1949 : f32 to vector<8x128xf32>
    %1951 = arith.mulf %1950, %1936 : vector<8x128xf32>
    %1952 = arith.addf %1914, %1951 : vector<8x128xf32>
    %c58_595 = arith.constant 58 : index
    %1953 = memref.load %arg2[%c58_595] : memref<108xf32, #tpu.memory_space<smem>>
    %1954 = vector.broadcast %1953 : f32 to vector<8x128xf32>
    %1955 = arith.mulf %1954, %1936 : vector<8x128xf32>
    %1956 = arith.addf %1918, %1955 : vector<8x128xf32>
    %c59_596 = arith.constant 59 : index
    %1957 = memref.load %arg2[%c59_596] : memref<108xf32, #tpu.memory_space<smem>>
    %1958 = vector.broadcast %1957 : f32 to vector<8x128xf32>
    %1959 = arith.mulf %1958, %1936 : vector<8x128xf32>
    %1960 = arith.addf %1922, %1959 : vector<8x128xf32>
    %c93_597 = arith.constant 93 : index
    %1961 = memref.load %arg2[%c93_597] : memref<108xf32, #tpu.memory_space<smem>>
    %1962 = vector.broadcast %1961 : f32 to vector<8x128xf32>
    %1963 = arith.mulf %1962, %1936 : vector<8x128xf32>
    %1964 = arith.addf %1926, %1963 : vector<8x128xf32>
    %c94_598 = arith.constant 94 : index
    %1965 = memref.load %arg2[%c94_598] : memref<108xf32, #tpu.memory_space<smem>>
    %1966 = vector.broadcast %1965 : f32 to vector<8x128xf32>
    %1967 = arith.mulf %1966, %1936 : vector<8x128xf32>
    %1968 = arith.addf %1930, %1967 : vector<8x128xf32>
    %c95_599 = arith.constant 95 : index
    %1969 = memref.load %arg2[%c95_599] : memref<108xf32, #tpu.memory_space<smem>>
    %1970 = vector.broadcast %1969 : f32 to vector<8x128xf32>
    %1971 = arith.mulf %1970, %1936 : vector<8x128xf32>
    %1972 = arith.addf %1934, %1971 : vector<8x128xf32>
    %c2_600 = arith.constant 2 : index
    %c33_601 = arith.constant 33 : index
    %c0_602 = arith.constant 0 : index
    %1973 = vector.load %arg7[%c2_600, %c33_601, %c0_602] : memref<3x41x128xf32, #tpu.memory_space<vmem>>, vector<1x8x128xf32>
    %1974 = vector.shape_cast %1973 : vector<1x8x128xf32> to vector<8x128xf32>
    %c24_603 = arith.constant 24 : index
    %1975 = memref.load %arg2[%c24_603] : memref<108xf32, #tpu.memory_space<smem>>
    %1976 = vector.broadcast %1975 : f32 to vector<8x128xf32>
    %1977 = arith.mulf %1976, %1974 : vector<8x128xf32>
    %1978 = arith.addf %1940, %1977 : vector<8x128xf32>
    %c25_604 = arith.constant 25 : index
    %1979 = memref.load %arg2[%c25_604] : memref<108xf32, #tpu.memory_space<smem>>
    %1980 = vector.broadcast %1979 : f32 to vector<8x128xf32>
    %1981 = arith.mulf %1980, %1974 : vector<8x128xf32>
    %1982 = arith.addf %1944, %1981 : vector<8x128xf32>
    %c26_605 = arith.constant 26 : index
    %1983 = memref.load %arg2[%c26_605] : memref<108xf32, #tpu.memory_space<smem>>
    %1984 = vector.broadcast %1983 : f32 to vector<8x128xf32>
    %1985 = arith.mulf %1984, %1974 : vector<8x128xf32>
    %1986 = arith.addf %1948, %1985 : vector<8x128xf32>
    %c60_606 = arith.constant 60 : index
    %1987 = memref.load %arg2[%c60_606] : memref<108xf32, #tpu.memory_space<smem>>
    %1988 = vector.broadcast %1987 : f32 to vector<8x128xf32>
    %1989 = arith.mulf %1988, %1974 : vector<8x128xf32>
    %1990 = arith.addf %1952, %1989 : vector<8x128xf32>
    %c61_607 = arith.constant 61 : index
    %1991 = memref.load %arg2[%c61_607] : memref<108xf32, #tpu.memory_space<smem>>
    %1992 = vector.broadcast %1991 : f32 to vector<8x128xf32>
    %1993 = arith.mulf %1992, %1974 : vector<8x128xf32>
    %1994 = arith.addf %1956, %1993 : vector<8x128xf32>
    %c62_608 = arith.constant 62 : index
    %1995 = memref.load %arg2[%c62_608] : memref<108xf32, #tpu.memory_space<smem>>
    %1996 = vector.broadcast %1995 : f32 to vector<8x128xf32>
    %1997 = arith.mulf %1996, %1974 : vector<8x128xf32>
    %1998 = arith.addf %1960, %1997 : vector<8x128xf32>
    %c96_609 = arith.constant 96 : index
    %1999 = memref.load %arg2[%c96_609] : memref<108xf32, #tpu.memory_space<smem>>
    %2000 = vector.broadcast %1999 : f32 to vector<8x128xf32>
    %2001 = arith.mulf %2000, %1974 : vector<8x128xf32>
    %2002 = arith.addf %1964, %2001 : vector<8x128xf32>
    %c97_610 = arith.constant 97 : index
    %2003 = memref.load %arg2[%c97_610] : memref<108xf32, #tpu.memory_space<smem>>
    %2004 = vector.broadcast %2003 : f32 to vector<8x128xf32>
    %2005 = arith.mulf %2004, %1974 : vector<8x128xf32>
    %2006 = arith.addf %1968, %2005 : vector<8x128xf32>
    %c98_611 = arith.constant 98 : index
    %2007 = memref.load %arg2[%c98_611] : memref<108xf32, #tpu.memory_space<smem>>
    %2008 = vector.broadcast %2007 : f32 to vector<8x128xf32>
    %2009 = arith.mulf %2008, %1974 : vector<8x128xf32>
    %2010 = arith.addf %1972, %2009 : vector<8x128xf32>
    %c31_612 = arith.constant 31 : index
    %c0_613 = arith.constant 0 : index
    %2011 = vector.load %arg8[%c31_612, %c0_613] : memref<41x128xf32, #tpu.memory_space<vmem>>, vector<8x128xf32>
    %c27_614 = arith.constant 27 : index
    %2012 = memref.load %arg2[%c27_614] : memref<108xf32, #tpu.memory_space<smem>>
    %2013 = vector.broadcast %2012 : f32 to vector<8x128xf32>
    %2014 = arith.mulf %2013, %2011 : vector<8x128xf32>
    %2015 = arith.addf %1978, %2014 : vector<8x128xf32>
    %c28_615 = arith.constant 28 : index
    %2016 = memref.load %arg2[%c28_615] : memref<108xf32, #tpu.memory_space<smem>>
    %2017 = vector.broadcast %2016 : f32 to vector<8x128xf32>
    %2018 = arith.mulf %2017, %2011 : vector<8x128xf32>
    %2019 = arith.addf %1982, %2018 : vector<8x128xf32>
    %c29_616 = arith.constant 29 : index
    %2020 = memref.load %arg2[%c29_616] : memref<108xf32, #tpu.memory_space<smem>>
    %2021 = vector.broadcast %2020 : f32 to vector<8x128xf32>
    %2022 = arith.mulf %2021, %2011 : vector<8x128xf32>
    %2023 = arith.addf %1986, %2022 : vector<8x128xf32>
    %c63_617 = arith.constant 63 : index
    %2024 = memref.load %arg2[%c63_617] : memref<108xf32, #tpu.memory_space<smem>>
    %2025 = vector.broadcast %2024 : f32 to vector<8x128xf32>
    %2026 = arith.mulf %2025, %2011 : vector<8x128xf32>
    %2027 = arith.addf %1990, %2026 : vector<8x128xf32>
    %c64_618 = arith.constant 64 : index
    %2028 = memref.load %arg2[%c64_618] : memref<108xf32, #tpu.memory_space<smem>>
    %2029 = vector.broadcast %2028 : f32 to vector<8x128xf32>
    %2030 = arith.mulf %2029, %2011 : vector<8x128xf32>
    %2031 = arith.addf %1994, %2030 : vector<8x128xf32>
    %c65_619 = arith.constant 65 : index
    %2032 = memref.load %arg2[%c65_619] : memref<108xf32, #tpu.memory_space<smem>>
    %2033 = vector.broadcast %2032 : f32 to vector<8x128xf32>
    %2034 = arith.mulf %2033, %2011 : vector<8x128xf32>
    %2035 = arith.addf %1998, %2034 : vector<8x128xf32>
    %c99_620 = arith.constant 99 : index
    %2036 = memref.load %arg2[%c99_620] : memref<108xf32, #tpu.memory_space<smem>>
    %2037 = vector.broadcast %2036 : f32 to vector<8x128xf32>
    %2038 = arith.mulf %2037, %2011 : vector<8x128xf32>
    %2039 = arith.addf %2002, %2038 : vector<8x128xf32>
    %c100_621 = arith.constant 100 : index
    %2040 = memref.load %arg2[%c100_621] : memref<108xf32, #tpu.memory_space<smem>>
    %2041 = vector.broadcast %2040 : f32 to vector<8x128xf32>
    %2042 = arith.mulf %2041, %2011 : vector<8x128xf32>
    %2043 = arith.addf %2006, %2042 : vector<8x128xf32>
    %c101_622 = arith.constant 101 : index
    %2044 = memref.load %arg2[%c101_622] : memref<108xf32, #tpu.memory_space<smem>>
    %2045 = vector.broadcast %2044 : f32 to vector<8x128xf32>
    %2046 = arith.mulf %2045, %2011 : vector<8x128xf32>
    %2047 = arith.addf %2010, %2046 : vector<8x128xf32>
    %c32_623 = arith.constant 32 : index
    %c0_624 = arith.constant 0 : index
    %2048 = vector.load %arg8[%c32_623, %c0_624] : memref<41x128xf32, #tpu.memory_space<vmem>>, vector<8x128xf32>
    %c30_625 = arith.constant 30 : index
    %2049 = memref.load %arg2[%c30_625] : memref<108xf32, #tpu.memory_space<smem>>
    %2050 = vector.broadcast %2049 : f32 to vector<8x128xf32>
    %2051 = arith.mulf %2050, %2048 : vector<8x128xf32>
    %2052 = arith.addf %2015, %2051 : vector<8x128xf32>
    %c31_626 = arith.constant 31 : index
    %2053 = memref.load %arg2[%c31_626] : memref<108xf32, #tpu.memory_space<smem>>
    %2054 = vector.broadcast %2053 : f32 to vector<8x128xf32>
    %2055 = arith.mulf %2054, %2048 : vector<8x128xf32>
    %2056 = arith.addf %2019, %2055 : vector<8x128xf32>
    %c32_627 = arith.constant 32 : index
    %2057 = memref.load %arg2[%c32_627] : memref<108xf32, #tpu.memory_space<smem>>
    %2058 = vector.broadcast %2057 : f32 to vector<8x128xf32>
    %2059 = arith.mulf %2058, %2048 : vector<8x128xf32>
    %2060 = arith.addf %2023, %2059 : vector<8x128xf32>
    %c66_628 = arith.constant 66 : index
    %2061 = memref.load %arg2[%c66_628] : memref<108xf32, #tpu.memory_space<smem>>
    %2062 = vector.broadcast %2061 : f32 to vector<8x128xf32>
    %2063 = arith.mulf %2062, %2048 : vector<8x128xf32>
    %2064 = arith.addf %2027, %2063 : vector<8x128xf32>
    %c67_629 = arith.constant 67 : index
    %2065 = memref.load %arg2[%c67_629] : memref<108xf32, #tpu.memory_space<smem>>
    %2066 = vector.broadcast %2065 : f32 to vector<8x128xf32>
    %2067 = arith.mulf %2066, %2048 : vector<8x128xf32>
    %2068 = arith.addf %2031, %2067 : vector<8x128xf32>
    %c68_630 = arith.constant 68 : index
    %2069 = memref.load %arg2[%c68_630] : memref<108xf32, #tpu.memory_space<smem>>
    %2070 = vector.broadcast %2069 : f32 to vector<8x128xf32>
    %2071 = arith.mulf %2070, %2048 : vector<8x128xf32>
    %2072 = arith.addf %2035, %2071 : vector<8x128xf32>
    %c102_631 = arith.constant 102 : index
    %2073 = memref.load %arg2[%c102_631] : memref<108xf32, #tpu.memory_space<smem>>
    %2074 = vector.broadcast %2073 : f32 to vector<8x128xf32>
    %2075 = arith.mulf %2074, %2048 : vector<8x128xf32>
    %2076 = arith.addf %2039, %2075 : vector<8x128xf32>
    %c103_632 = arith.constant 103 : index
    %2077 = memref.load %arg2[%c103_632] : memref<108xf32, #tpu.memory_space<smem>>
    %2078 = vector.broadcast %2077 : f32 to vector<8x128xf32>
    %2079 = arith.mulf %2078, %2048 : vector<8x128xf32>
    %2080 = arith.addf %2043, %2079 : vector<8x128xf32>
    %c104_633 = arith.constant 104 : index
    %2081 = memref.load %arg2[%c104_633] : memref<108xf32, #tpu.memory_space<smem>>
    %2082 = vector.broadcast %2081 : f32 to vector<8x128xf32>
    %2083 = arith.mulf %2082, %2048 : vector<8x128xf32>
    %2084 = arith.addf %2047, %2083 : vector<8x128xf32>
    %c33_634 = arith.constant 33 : index
    %c0_635 = arith.constant 0 : index
    %2085 = vector.load %arg8[%c33_634, %c0_635] : memref<41x128xf32, #tpu.memory_space<vmem>>, vector<8x128xf32>
    %c33_636 = arith.constant 33 : index
    %2086 = memref.load %arg2[%c33_636] : memref<108xf32, #tpu.memory_space<smem>>
    %2087 = vector.broadcast %2086 : f32 to vector<8x128xf32>
    %2088 = arith.mulf %2087, %2085 : vector<8x128xf32>
    %2089 = arith.addf %2052, %2088 : vector<8x128xf32>
    %c34_637 = arith.constant 34 : index
    %2090 = memref.load %arg2[%c34_637] : memref<108xf32, #tpu.memory_space<smem>>
    %2091 = vector.broadcast %2090 : f32 to vector<8x128xf32>
    %2092 = arith.mulf %2091, %2085 : vector<8x128xf32>
    %2093 = arith.addf %2056, %2092 : vector<8x128xf32>
    %c35_638 = arith.constant 35 : index
    %2094 = memref.load %arg2[%c35_638] : memref<108xf32, #tpu.memory_space<smem>>
    %2095 = vector.broadcast %2094 : f32 to vector<8x128xf32>
    %2096 = arith.mulf %2095, %2085 : vector<8x128xf32>
    %2097 = arith.addf %2060, %2096 : vector<8x128xf32>
    %c69_639 = arith.constant 69 : index
    %2098 = memref.load %arg2[%c69_639] : memref<108xf32, #tpu.memory_space<smem>>
    %2099 = vector.broadcast %2098 : f32 to vector<8x128xf32>
    %2100 = arith.mulf %2099, %2085 : vector<8x128xf32>
    %2101 = arith.addf %2064, %2100 : vector<8x128xf32>
    %c70_640 = arith.constant 70 : index
    %2102 = memref.load %arg2[%c70_640] : memref<108xf32, #tpu.memory_space<smem>>
    %2103 = vector.broadcast %2102 : f32 to vector<8x128xf32>
    %2104 = arith.mulf %2103, %2085 : vector<8x128xf32>
    %2105 = arith.addf %2068, %2104 : vector<8x128xf32>
    %c71_641 = arith.constant 71 : index
    %2106 = memref.load %arg2[%c71_641] : memref<108xf32, #tpu.memory_space<smem>>
    %2107 = vector.broadcast %2106 : f32 to vector<8x128xf32>
    %2108 = arith.mulf %2107, %2085 : vector<8x128xf32>
    %2109 = arith.addf %2072, %2108 : vector<8x128xf32>
    %c105_642 = arith.constant 105 : index
    %2110 = memref.load %arg2[%c105_642] : memref<108xf32, #tpu.memory_space<smem>>
    %2111 = vector.broadcast %2110 : f32 to vector<8x128xf32>
    %2112 = arith.mulf %2111, %2085 : vector<8x128xf32>
    %2113 = arith.addf %2076, %2112 : vector<8x128xf32>
    %c106_643 = arith.constant 106 : index
    %2114 = memref.load %arg2[%c106_643] : memref<108xf32, #tpu.memory_space<smem>>
    %2115 = vector.broadcast %2114 : f32 to vector<8x128xf32>
    %2116 = arith.mulf %2115, %2085 : vector<8x128xf32>
    %2117 = arith.addf %2080, %2116 : vector<8x128xf32>
    %c107_644 = arith.constant 107 : index
    %2118 = memref.load %arg2[%c107_644] : memref<108xf32, #tpu.memory_space<smem>>
    %2119 = vector.broadcast %2118 : f32 to vector<8x128xf32>
    %2120 = arith.mulf %2119, %2085 : vector<8x128xf32>
    %2121 = arith.addf %2084, %2120 : vector<8x128xf32>
    %2122 = vector.extract_strided_slice %2089 {offsets = [0, 0], sizes = [8, 127], strides = [1, 1]} : vector<8x128xf32> to vector<8x127xf32>
    %2123 = tpu.concatenate %1656, %2122 in 1 : vector<8x1xf32>, vector<8x127xf32> -> vector<8x128xf32>
    %2124 = vector.extract_strided_slice %2097 {offsets = [0, 1], sizes = [8, 127], strides = [1, 1]} : vector<8x128xf32> to vector<8x127xf32>
    %2125 = tpu.concatenate %2124, %1656 in 1 : vector<8x127xf32>, vector<8x1xf32> -> vector<8x128xf32>
    %2126 = arith.addf %2093, %2123 : vector<8x128xf32>
    %2127 = arith.addf %2126, %2125 : vector<8x128xf32>
    %cst_645 = arith.constant 0.000000e+00 : f32
    %2128 = vector.broadcast %cst_645 : f32 to vector<8x128xf32>
    %2129 = arith.subf %2128, %2127 : vector<8x128xf32>
    %2130 = math.exp %2129 : vector<8x128xf32>
    %cst_646 = arith.constant 1.000000e+00 : f32
    %2131 = vector.broadcast %cst_646 : f32 to vector<8x128xf32>
    %2132 = arith.addf %2131, %2130 : vector<8x128xf32>
    %cst_647 = arith.constant 2.550000e+02 : f32
    %2133 = vector.broadcast %cst_647 : f32 to vector<8x128xf32>
    %2134 = arith.divf %2133, %2132 : vector<8x128xf32>
    %cst_648 = arith.constant 0.000000e+00 : f32
    %cst_649 = arith.constant 2.550000e+02 : f32
    %2135 = vector.broadcast %cst_648 : f32 to vector<8x128xf32>
    %2136 = arith.maximumf %2135, %2134 : vector<8x128xf32>
    %2137 = vector.broadcast %cst_649 : f32 to vector<8x128xf32>
    %2138 = arith.minimumf %2137, %2136 : vector<8x128xf32>
    %c0_650 = arith.constant 0 : index
    %c0_651 = arith.constant 0 : index
    %c24_652 = arith.constant 24 : index
    %c0_653 = arith.constant 0 : index
    %2139 = vector.load %arg6[%c0_650, %c0_651, %c24_652, %c0_653] : memref<1x3x32x128xf32, #tpu.memory_space<vmem>>, vector<1x1x8x128xf32>
    %2140 = vector.shape_cast %2139 : vector<1x1x8x128xf32> to vector<8x128xf32>
    %2141 = vector.shape_cast %2138 : vector<8x128xf32> to vector<1x1x8x128xf32>
    tpu.vector_store %arg6[%c0_650, %c0_651, %c24_652, %c0_653], %2141 {strides = array<i32>} : memref<1x3x32x128xf32, #tpu.memory_space<vmem>>, vector<1x1x8x128xf32>,
    %2142 = vector.extract_strided_slice %2101 {offsets = [0, 0], sizes = [8, 127], strides = [1, 1]} : vector<8x128xf32> to vector<8x127xf32>
    %2143 = tpu.concatenate %1656, %2142 in 1 : vector<8x1xf32>, vector<8x127xf32> -> vector<8x128xf32>
    %2144 = vector.extract_strided_slice %2109 {offsets = [0, 1], sizes = [8, 127], strides = [1, 1]} : vector<8x128xf32> to vector<8x127xf32>
    %2145 = tpu.concatenate %2144, %1656 in 1 : vector<8x127xf32>, vector<8x1xf32> -> vector<8x128xf32>
    %2146 = arith.addf %2105, %2143 : vector<8x128xf32>
    %2147 = arith.addf %2146, %2145 : vector<8x128xf32>
    %cst_654 = arith.constant 0.000000e+00 : f32
    %2148 = vector.broadcast %cst_654 : f32 to vector<8x128xf32>
    %2149 = arith.subf %2148, %2147 : vector<8x128xf32>
    %2150 = math.exp %2149 : vector<8x128xf32>
    %cst_655 = arith.constant 1.000000e+00 : f32
    %2151 = vector.broadcast %cst_655 : f32 to vector<8x128xf32>
    %2152 = arith.addf %2151, %2150 : vector<8x128xf32>
    %cst_656 = arith.constant 2.550000e+02 : f32
    %2153 = vector.broadcast %cst_656 : f32 to vector<8x128xf32>
    %2154 = arith.divf %2153, %2152 : vector<8x128xf32>
    %cst_657 = arith.constant 0.000000e+00 : f32
    %cst_658 = arith.constant 2.550000e+02 : f32
    %2155 = vector.broadcast %cst_657 : f32 to vector<8x128xf32>
    %2156 = arith.maximumf %2155, %2154 : vector<8x128xf32>
    %2157 = vector.broadcast %cst_658 : f32 to vector<8x128xf32>
    %2158 = arith.minimumf %2157, %2156 : vector<8x128xf32>
    %c0_659 = arith.constant 0 : index
    %c1_660 = arith.constant 1 : index
    %c24_661 = arith.constant 24 : index
    %c0_662 = arith.constant 0 : index
    %2159 = vector.load %arg6[%c0_659, %c1_660, %c24_661, %c0_662] : memref<1x3x32x128xf32, #tpu.memory_space<vmem>>, vector<1x1x8x128xf32>
    %2160 = vector.shape_cast %2159 : vector<1x1x8x128xf32> to vector<8x128xf32>
    %2161 = vector.shape_cast %2158 : vector<8x128xf32> to vector<1x1x8x128xf32>
    tpu.vector_store %arg6[%c0_659, %c1_660, %c24_661, %c0_662], %2161 {strides = array<i32>} : memref<1x3x32x128xf32, #tpu.memory_space<vmem>>, vector<1x1x8x128xf32>,
    %2162 = vector.extract_strided_slice %2113 {offsets = [0, 0], sizes = [8, 127], strides = [1, 1]} : vector<8x128xf32> to vector<8x127xf32>
    %2163 = tpu.concatenate %1656, %2162 in 1 : vector<8x1xf32>, vector<8x127xf32> -> vector<8x128xf32>
    %2164 = vector.extract_strided_slice %2121 {offsets = [0, 1], sizes = [8, 127], strides = [1, 1]} : vector<8x128xf32> to vector<8x127xf32>
    %2165 = tpu.concatenate %2164, %1656 in 1 : vector<8x127xf32>, vector<8x1xf32> -> vector<8x128xf32>
    %2166 = arith.addf %2117, %2163 : vector<8x128xf32>
    %2167 = arith.addf %2166, %2165 : vector<8x128xf32>
    %cst_663 = arith.constant 0.000000e+00 : f32
    %2168 = vector.broadcast %cst_663 : f32 to vector<8x128xf32>
    %2169 = arith.subf %2168, %2167 : vector<8x128xf32>
    %2170 = math.exp %2169 : vector<8x128xf32>
    %cst_664 = arith.constant 1.000000e+00 : f32
    %2171 = vector.broadcast %cst_664 : f32 to vector<8x128xf32>
    %2172 = arith.addf %2171, %2170 : vector<8x128xf32>
    %cst_665 = arith.constant 2.550000e+02 : f32
    %2173 = vector.broadcast %cst_665 : f32 to vector<8x128xf32>
    %2174 = arith.divf %2173, %2172 : vector<8x128xf32>
    %cst_666 = arith.constant 0.000000e+00 : f32
    %cst_667 = arith.constant 2.550000e+02 : f32
    %2175 = vector.broadcast %cst_666 : f32 to vector<8x128xf32>
    %2176 = arith.maximumf %2175, %2174 : vector<8x128xf32>
    %2177 = vector.broadcast %cst_667 : f32 to vector<8x128xf32>
    %2178 = arith.minimumf %2177, %2176 : vector<8x128xf32>
    %c0_668 = arith.constant 0 : index
    %c2_669 = arith.constant 2 : index
    %c24_670 = arith.constant 24 : index
    %c0_671 = arith.constant 0 : index
    %2179 = vector.load %arg6[%c0_668, %c2_669, %c24_670, %c0_671] : memref<1x3x32x128xf32, #tpu.memory_space<vmem>>, vector<1x1x8x128xf32>
    %2180 = vector.shape_cast %2179 : vector<1x1x8x128xf32> to vector<8x128xf32>
    %2181 = vector.shape_cast %2178 : vector<8x128xf32> to vector<1x1x8x128xf32>
    tpu.vector_store %arg6[%c0_668, %c2_669, %c24_670, %c0_671], %2181 {strides = array<i32>} : memref<1x3x32x128xf32, #tpu.memory_space<vmem>>, vector<1x1x8x128xf32>,
    return
  }
  func.func @transform_0(%arg0: i32, %arg1: i32) -> i32 {
    %c0_i32 = arith.constant 0 : i32
    %c0_i32_0 = arith.constant 0 : i32
    return %c0_i32 : i32
  }
  func.func @transform_1(%arg0: i32, %arg1: i32) -> i32 {
    %c0_i32 = arith.constant 0 : i32
    %c0_i32_0 = arith.constant 0 : i32
    return %c0_i32 : i32
  }
  func.func @transform_4(%arg0: i32, %arg1: i32) -> (i32, i32, i32, i32) {
    %c0_i32 = arith.constant 0 : i32
    %c0_i32_0 = arith.constant 0 : i32
    %c0_i32_1 = arith.constant 0 : i32
    return %arg0, %c0_i32, %arg1, %c0_i32_0 : i32, i32, i32, i32
  }
}

</mosaic_0001>

<llo_original>
// kernel: tpu_custom_call.1
$region0: #{tpu_custom_call.1}
  #allocation0 [shape = 'u32[]', space=smem, size = 0x4, offset = 0x4, fixed_abs, tag = 'smem constant byte address 0x4 - core index']
  #allocation1 [shape = 'u32[144,128]{1,0:T(1,128)}', space=vmem, size = 0x12000, scoped, tag = 'internal scratch']
  #allocation2 [shape = 'f32[3,41,128]{2,1,0:T(8,128)}', space=vmem, size = 0x12000, scoped, tag = 'scratch operand']
  #allocation3 [shape = 'f32[41,128]{1,0:T(8,128)}', space=vmem, size = 0x6000, scoped, tag = 'scratch operand']
  #allocation4 [shape = 's32[6]{0}', space=sflag, size = 0x18, scoped, tag = 'scratch operand']
  #allocation11 [shape = 's32[]', space=sflag, size = 0x4, offset = 0, fixed_abs, tag = 'sflag constant byte address 0x0 - dummy sync flag']
  #allocation12 [shape = 's32[]', space=sflag, size = 0x4, offset = 0, fixed_abs, tag = 'sflag constant byte address 0x0 - dummy sync flag']
  #allocation13 [shape = 's32[]', space=sflag, size = 0x4, offset = 0, fixed_abs, tag = 'sflag constant byte address 0x0 - dummy sync flag']
  #allocation14 [shape = 's32[]', space=sflag, size = 0x4, offset = 0, fixed_abs, tag = 'sflag constant byte address 0x0 - dummy sync flag']
  #allocation15 [shape = 's32[]', space=sflag, size = 0x4, offset = 0, fixed_abs, tag = 'sflag constant byte address 0x0 - dummy sync flag']
  #allocation16 [shape = 'u32[]', space=smem, size = 0x4, offset = 0x44, fixed_abs, tag = 'smem constant byte address 0x44 - assertion arg 0']
  #allocation17 [shape = 'u32[]', space=smem, size = 0x4, offset = 0x48, fixed_abs, tag = 'smem constant byte address 0x48 - assertion arg 1']
  #allocation18 [shape = 's32[]', space=sflag, size = 0x4, offset = 0, fixed_abs, tag = 'sflag constant byte address 0x0 - dummy sync flag']
  #allocation19 [shape = 's32[]', space=sflag, size = 0x4, offset = 0, fixed_abs, tag = 'sflag constant byte address 0x0 - dummy sync flag']
  #allocation20 [shape = 's32[]', space=sflag, size = 0x4, offset = 0, fixed_abs, tag = 'sflag constant byte address 0x0 - dummy sync flag']
  #allocation21 [shape = 's32[]', space=sflag, size = 0x4, offset = 0, fixed_abs, tag = 'sflag constant byte address 0x0 - dummy sync flag']
  #allocation22 [shape = 's32[]', space=sflag, size = 0x4, offset = 0, fixed_abs, tag = 'sflag constant byte address 0x0 - dummy sync flag']
  %s0 = inlined_call_operand.hbm [shape: f32[108], index: 0, kind: input, shape index: {}]
  %s1 = inlined_call_operand.vmem [shape: f32[3], index: 1, kind: input, shape index: {}]
  %s2 = inlined_call_operand.hbm [shape: f32[2,3,64,128], index: 2, kind: input, shape index: {}]
  %s3 = inlined_call_operand.hbm [shape: f32[2,1,64,128], index: 3, kind: input, shape index: {}]
  %s4 = inlined_call_operand.hbm [shape: f32[2,3,64,128], index: 4, kind: output, shape index: {}]
  %s5 = sld [smem:[#allocation0]]
  $region69: #{tpu_custom_call.1} parent=0
    _
  %s7 = ssub.s32 1, %s5
  %s8 = scalar_select 0, %s7, %s5
  $region1: #{tpu_custom_call.1} parent=0
    #allocation5 [shape = 'u8[512]{0}', space=smem, size = 0x200, scoped, tag = 'input window, operand 0, single buffered']
    #allocation6 [shape = 's32[2]{0}', space=sflag, size = 0x8, scoped, tag = 'scoped memory for tpu_custom_call.1']
    #allocation7 [shape = 's32[2]{0}', space=sflag, size = 0x8, scoped, tag = 'scoped memory for tpu_custom_call.1']
    #allocation8 [shape = 's32[2]{0}', space=sflag, size = 0x8, scoped, tag = 'scoped memory for tpu_custom_call.1']
    #allocation9 [shape = 'u8[512]{0}', space=smem, size = 0x200, scoped, tag = 'input window, operand 1, single buffered']
    #allocation10 [shape = 'u8[98304]{0}', space=vmem, size = 0x18000, scoped, tag = 'output window, operand 0']
    %9 = vsyncpa [#allocation7], 0
    %10 = vsyncpa [#allocation8], 0
    %11 = vsyncpa [#allocation6], 0
    %s12 = scalar_lea.sflag [#allocation6], 1
    %13 = vsyncpa %s12, 0
    loop: start=0, step=1, limit=6
    $region2: #{tpu_custom_call.1} parent=1 // loop_pre_header
      _
    $region3: #{tpu_custom_call.1} parent=1 // loop_header
      %s15 = sphi 0, %s19
      %p16 = scmp.ge.s32.totalorder %s15, 6
      %s22 = sphi 0, %s34
      %s23 = sphi 0, %s30
      %s24 = sphi 0, %s22
      %s25 = sphi 0, %s23
      %s26 = sphi 0, %s24
      %s27 = sphi 0, %s25
      %s35 = sphi 0, %s35
      %s37 = sphi 0, %s35
      %s38 = sphi 0, %s37
      %s52 = sphi 0, %s38
      %s56 = sphi 0, %s56
      %s58 = sphi 0, %s56
      %s59 = sphi 0, %s58
      %s73 = sphi 0, %s59
      %s81 = sphi 0, %s83
      %s84 = sphi 0, %s81
      %s85 = sphi 0, %s84
      %s101 = sphi 0, %s85
    $region4: #{tpu_custom_call.1} parent=1 // loop_header_branch
      %18 = sbr.rel (%p16) target = $region8
    $region5: #{tpu_custom_call.1} parent=1 // loop_body
      %s20 = ssub.s32 %s15, 1
      %s21 = ssub.s32 %s15, 2
      %s28 = sadd.s32 1, %s23
      %p29 = scmp.ge.s32.totalorder %s28, 2
      %s30 = scalar_select %p29, 0, %s28
      %s31 = sadd.s32 1, %s22
      %s32 = scalar_select %p29, %s31, %s22
      %p33 = scmp.ge.s32.totalorder %s32, 2
      %s34 = scalar_select %p33, 0, %s32
      %s36 = sadd.s32 %s35, 1
      %p39 = scmp.eq.s32.totalorder %s15, 3
      %p40 = scmp.ne.s32.totalorder %s35, %s37
      %p41 = scmp.eq.s32.totalorder %s15, 0
      %p42 = por %p40, %p41
      %p43 = scmp.ne.s32.totalorder %s35, %s37
      %p44 = scmp.eq.s32.totalorder %s20, 3
      %p45 = por %p43, %p44
      %p46 = scmp.ne.s32.totalorder %s37, %s38
      %p47 = scmp.eq.s32.totalorder %s20, 0
      %p48 = por %p46, %p47
      %p49 = scmp.ne.s32.totalorder %s37, %s38
      %p50 = scmp.eq.s32.totalorder %s21, 3
      %p51 = por %p49, %p50
      %p53 = scmp.ne.s32.totalorder %s38, %s52
      %p54 = scmp.eq.s32.totalorder %s21, 0
      %p55 = por %p53, %p54
      %s57 = sadd.s32 %s56, 1
      %p60 = scmp.eq.s32.totalorder %s15, 3
      %p61 = scmp.ne.s32.totalorder %s56, %s58
      %p62 = scmp.eq.s32.totalorder %s15, 0
      %p63 = por %p61, %p62
      %p64 = scmp.ne.s32.totalorder %s56, %s58
      %p65 = scmp.eq.s32.totalorder %s20, 3
      %p66 = por %p64, %p65
      %p67 = scmp.ne.s32.totalorder %s58, %s59
      %p68 = scmp.eq.s32.totalorder %s20, 0
      %p69 = por %p67, %p68
      %p70 = scmp.ne.s32.totalorder %s58, %s59
      %p71 = scmp.eq.s32.totalorder %s21, 3
      %p72 = por %p70, %p71
      %p74 = scmp.ne.s32.totalorder %s59, %s73
      %p75 = scmp.eq.s32.totalorder %s21, 0
      %p76 = por %p74, %p75
      %s77 = ssub.s32 %s22, %s34
      %s78 = ssub.s32 %s23, %s30
      %s79 = sor.u32 %s77, %s78
      %p80 = scmp.eq.s32.totalorder %s79, 0
      %s82 = sadd.s32 %s81, 1
      %s83 = scalar_select %p80, %s81, %s82
      %p86 = pneg %p80
      %p87 = scmp.eq.s32.totalorder %s15, 3
      %p88 = por %p86, %p87
      %p89 = scmp.ne.s32.totalorder %s81, %s84
      %p90 = scmp.eq.s32.totalorder %s15, 0
      %p91 = por %p89, %p90
      %p92 = scmp.ne.s32.totalorder %s81, %s84
      %p93 = scmp.eq.s32.totalorder %s20, 3
      %p94 = por %p92, %p93
      %p95 = scmp.ne.s32.totalorder %s84, %s85
      %p96 = scmp.eq.s32.totalorder %s20, 0
      %p97 = por %p95, %p96
      %p98 = scmp.ne.s32.totalorder %s84, %s85
      %p99 = scmp.eq.s32.totalorder %s21, 3
      %p100 = por %p98, %p99
      %p102 = scmp.ne.s32.totalorder %s85, %s101
      %p103 = scmp.eq.s32.totalorder %s21, 0
      %p104 = por %p102, %p103
      %p105 = scmp.le.s32.totalorder 1, %s15
      %p106 = scmp.lt.s32.totalorder %s15, 5
      %p107 = pnand %p105, %p106
      %p108 = pneg %p107
      // Predicated region
      $region9: #{tpu_custom_call.1} parent=5 // pred_check
        _
      $region10: #{tpu_custom_call.1} parent=5 // pred_check_branch
        %110 = sbr.rel (%p107) target = $region12
      $region11: #{tpu_custom_call.1} parent=5 // pred_region
        %s111 = ssub.s32 %s15, 1
        // Predicated region
        $region13: #{tpu_custom_call.1} parent=11 // pred_check
          %p112 = pneg %p48
        $region14: #{tpu_custom_call.1} parent=11 // pred_check_branch
          %114 = sbr.rel (%p112) target = $region16
        $region15: #{tpu_custom_call.1} parent=11 // pred_region
          %s116 = ssub.s32 16, 16
          %117 = vsyncadd [#allocation7], %s116
          %120 = dma.hbm_to_smem %s0, 16, [#allocation5], [#allocation7]
        $region16: #{tpu_custom_call.1} parent=11 // pred_fallthru
          _
        // Predicated region
        $region17: #{tpu_custom_call.1} parent=11 // pred_check
          %p121 = pneg %p69
        $region18: #{tpu_custom_call.1} parent=11 // pred_check_branch
          %123 = sbr.rel (%p121) target = $region20
        $region19: #{tpu_custom_call.1} parent=11 // pred_region
          %s125 = ssub.s32 16, 16
          %126 = vsyncadd [#allocation8], %s125
          %s128 = sshll.u32 %s1, 4
          %s129 = int_to_ptr.vmem [resolvable:$true] %s128
          %131 = dma.vmem_to_smem %s129, 16, [#allocation9], [#allocation8]
        $region20: #{tpu_custom_call.1} parent=11 // pred_fallthru
          _
      $region12: #{tpu_custom_call.1} parent=5 // pred_fallthru
        _
      %p132 = scmp.lt.s32.totalorder %s15, 4
      // Predicated region
      $region21: #{tpu_custom_call.1} parent=5 // pred_check
        %p133 = pneg %p132
      $region22: #{tpu_custom_call.1} parent=5 // pred_check_branch
        %135 = sbr.rel (%p133) target = $region24
      $region23: #{tpu_custom_call.1} parent=5 // pred_region
        _
      $region24: #{tpu_custom_call.1} parent=5 // pred_fallthru
        _
      %p136 = scmp.le.s32.totalorder 1, %s15
      %p137 = scmp.lt.s32.totalorder %s15, 5
      %p138 = pnand %p136, %p137
      %p139 = pneg %p138
      // Predicated region
      $region25: #{tpu_custom_call.1} parent=5 // pred_check
        _
      $region26: #{tpu_custom_call.1} parent=5 // pred_check_branch
        %141 = sbr.rel (%p138) target = $region28
      $region27: #{tpu_custom_call.1} parent=5 // pred_region
        %s142 = ssub.s32 %s15, 1
        // Predicated region
        $region29: #{tpu_custom_call.1} parent=27 // pred_check
          %p143 = pneg %p48
        $region30: #{tpu_custom_call.1} parent=27 // pred_check_branch
          %145 = sbr.rel (%p143) target = $region32
        $region31: #{tpu_custom_call.1} parent=27 // pred_region
          %146 = dma.done [#allocation7], 16
        $region32: #{tpu_custom_call.1} parent=27 // pred_fallthru
          _
        // Predicated region
        $region33: #{tpu_custom_call.1} parent=27 // pred_check
          %p147 = pneg %p69
        $region34: #{tpu_custom_call.1} parent=27 // pred_check_branch
          %149 = sbr.rel (%p147) target = $region36
        $region35: #{tpu_custom_call.1} parent=27 // pred_region
          %150 = dma.done [#allocation8], 16
        $region36: #{tpu_custom_call.1} parent=27 // pred_fallthru
          _
        %151 = sfence
        %p152 = pneg %p48
        %p153 = pneg %p45
        %p154 = pneg %p69
        %p155 = pneg %p66
        %p156 = pneg %p97
        %p157 = pneg %p94
        %s158 = sand.u32 %s84, 1
        %s159 = scalar_lea.sflag [#allocation6], %s158
        %s160 = sand.u32 %s84, 1
        %s161 = smul.addr %s160, 96
        %s162 = scalar_lea.vmem [#allocation10], %s161
        %s163 = smul.u32 4, %s25
        %s164 = smul.u32 %s25, 32
        %s165 = ssub.s32 %s164, 1
        %p166 = scmp.gt.s32.totalorder %s165, 0
        %s167 = scalar_select %p166, %s165, 0
        %s168 = sadd.s32 %s164, 32
        %p169 = scmp.lt.s32.totalorder %s168, 63
        %s170 = scalar_select %p169, %s168, 63
        %s171 = smul.u32 %s24, 192
        %s172 = sadd.s32 %s164, %s171
        %s173 = smul.addr %s172, 16
        %s174 = scalar_lea.hbm %s2, %s173
        %s175 = scalar_lea.vmem [#allocation2], 8
        %s177 = sshll.u32 %s175, 4
        %s178 = int_to_ptr.vmem [resolvable:$true] %s177
        %180 = dma.hbm_to_vmem [thread:$0]  %s174, 1536, %s178, [#allocation4], 1024, 768, 32
        %s181 = sadd.s32 %s167, %s171
        %s182 = smul.addr %s181, 16
        %s183 = scalar_lea.hbm %s2, %s182
        %s184 = scalar_lea.vmem [#allocation2], 7
        %s185 = scalar_lea.sflag [#allocation4], 1
        %s187 = sshll.u32 %s184, 4
        %s188 = int_to_ptr.vmem [resolvable:$true] %s187
        %190 = dma.hbm_to_vmem [thread:$0]  %s183, 48, %s188, %s185, 1024, 768, 1
        %s191 = sadd.s32 %s170, %s171
        %s192 = smul.addr %s191, 16
        %s193 = scalar_lea.hbm %s2, %s192
        %s194 = scalar_lea.vmem [#allocation2], 40
        %s195 = scalar_lea.sflag [#allocation4], 2
        %s197 = sshll.u32 %s194, 4
        %s198 = int_to_ptr.vmem [resolvable:$true] %s197
        %200 = dma.hbm_to_vmem [thread:$0]  %s193, 48, %s198, %s195, 1024, 768, 1
        %s201 = smul.u32 %s24, 64
        %s202 = sadd.s32 %s164, %s201
        %s203 = smul.addr %s202, 16
        %s204 = scalar_lea.hbm %s3, %s203
        %s205 = scalar_lea.vmem [#allocation3], 8
        %s206 = scalar_lea.sflag [#allocation4], 3
        // Predicated region
        $region37: #{tpu_custom_call.1} parent=27 // pred_check
          _
        $region38: #{tpu_custom_call.1} parent=27 // pred_check_branch
          %208 = sbr.rel target = $region40
        $region39: #{tpu_custom_call.1} parent=27 // pred_region
          %209 = sst [smem:[#allocation16]] [#allocation15]
          %210 = sst [smem:[#allocation17]] [#allocation14]
        $region40: #{tpu_custom_call.1} parent=27 // pred_fallthru
          _
        %212 = shalt.err (0)
        %s214 = sshll.u32 %s205, 4
        %s215 = int_to_ptr.vmem [resolvable:$true] %s214
        %217 = dma.hbm_to_vmem [thread:$0]  %s204, 512, %s215, %s206
        %s218 = sadd.s32 %s167, %s201
        %s219 = smul.addr %s218, 16
        %s220 = scalar_lea.hbm %s3, %s219
        %s221 = scalar_lea.vmem [#allocation3], 7
        %s222 = scalar_lea.sflag [#allocation4], 4
        // Predicated region
        $region41: #{tpu_custom_call.1} parent=27 // pred_check
          _
        $region42: #{tpu_custom_call.1} parent=27 // pred_check_branch
          %224 = sbr.rel target = $region44
        $region43: #{tpu_custom_call.1} parent=27 // pred_region
          %225 = sst [smem:[#allocation16]] [#allocation19]
          %226 = sst [smem:[#allocation17]] [#allocation18]
        $region44: #{tpu_custom_call.1} parent=27 // pred_fallthru
          _
        %228 = shalt.err (0)
        %s230 = sshll.u32 %s221, 4
        %s231 = int_to_ptr.vmem [resolvable:$true] %s230
        %233 = dma.hbm_to_vmem [thread:$0]  %s220, 16, %s231, %s222
        %s234 = sadd.s32 %s170, %s201
        %s235 = smul.addr %s234, 16
        %s236 = scalar_lea.hbm %s3, %s235
        %s237 = scalar_lea.vmem [#allocation3], 40
        %s238 = scalar_lea.sflag [#allocation4], 5
        // Predicated region
        $region45: #{tpu_custom_call.1} parent=27 // pred_check
          _
        $region46: #{tpu_custom_call.1} parent=27 // pred_check_branch
          %240 = sbr.rel target = $region48
        $region47: #{tpu_custom_call.1} parent=27 // pred_region
          %241 = sst [smem:[#allocation16]] [#allocation21]
          %242 = sst [smem:[#allocation17]] [#allocation20]
        $region48: #{tpu_custom_call.1} parent=27 // pred_fallthru
          _
        %244 = shalt.err (0)
        %s246 = sshll.u32 %s237, 4
        %s247 = int_to_ptr.vmem [resolvable:$true] %s246
        %249 = dma.hbm_to_vmem [thread:$0]  %s236, 16, %s247, %s238
        %s250 = smul.u32 3, 32
        %s251 = smul.u32 %s250, 1
        %s252 = sshll.u32 %s251, 4
        %253 = dma.done [#allocation4], %s252
        %s254 = smul.u32 3, 1
        %s255 = smul.u32 %s254, 1
        %s256 = sshll.u32 %s255, 4
        %257 = dma.done %s185, %s256
        %s258 = sshll.u32 %s255, 4
        %259 = dma.done %s195, %s258
        %s260 = smul.u32 32, 1
        %s261 = sshll.u32 %s260, 4
        %262 = dma.done %s206, %s261
        %s263 = smul.u32 1, 1
        %s264 = sshll.u32 %s263, 4
        %265 = dma.done %s222, %s264
        %s266 = sshll.u32 %s263, 4
        %267 = dma.done %s238, %s266
        %p268 = scmp.eq.s32.totalorder %s25, 0
        // Predicated region
        $region49: #{tpu_custom_call.1} parent=27 // pred_check
          %p269 = pneg %p268
        $region50: #{tpu_custom_call.1} parent=27 // pred_check_branch
          %271 = sbr.rel (%p269) target = $region52
        $region51: #{tpu_custom_call.1} parent=27 // pred_region
          %272 = vst [vmem:[#allocation2 + $0x7] sm:$0x1] 0.0
          %273 = vst [vmem:[#allocation2 + $0x37] sm:$0x1] 0.0
          %274 = vst [vmem:[#allocation2 + $0x67] sm:$0x1] 0.0
          %275 = vst [vmem:[#allocation3 + $0x7] sm:$0x1] 0.0
        $region52: #{tpu_custom_call.1} parent=27 // pred_fallthru
          _
        %p276 = scmp.eq.s32.totalorder %s25, 1
        // Predicated region
        $region53: #{tpu_custom_call.1} parent=27 // pred_check
          %p277 = pneg %p276
        $region54: #{tpu_custom_call.1} parent=27 // pred_check_branch
          %279 = sbr.rel (%p277) target = $region56
        $region55: #{tpu_custom_call.1} parent=27 // pred_region
          %280 = vst [vmem:[#allocation2 + $0x28] sm:$0x1] 0.0
          %281 = vst [vmem:[#allocation2 + $0x58] sm:$0x1] 0.0
          %282 = vst [vmem:[#allocation2 + $0x88] sm:$0x1] 0.0
          %283 = vst [vmem:[#allocation3 + $0x28] sm:$0x1] 0.0
        $region56: #{tpu_custom_call.1} parent=27 // pred_fallthru
          _
        %v284 = vld [vmem:[#allocation3] sm:$0xff]
        %v285 = vld [vmem:[#allocation3 + $0x8] sm:$0xff]
        %v286 = vld [vmem:[#allocation3 + $0x10] sm:$0xff]
        %v287 = vld [vmem:[#allocation3 + $0x18] sm:$0xff]
        %v288 = vld [vmem:[#allocation3 + $0x20] sm:$0xff]
        %v289 = vld [vmem:[#allocation3 + $0x28] sm:$0x1]
        %vm290 = vcmp.gt.f32.partialorder %v284, 0.0
        %vm291 = vcmp.gt.f32.partialorder %v285, 0.0
        %vm292 = vcmp.gt.f32.partialorder %v286, 0.0
        %vm293 = vcmp.gt.f32.partialorder %v287, 0.0
        %vm294 = vcmp.gt.f32.partialorder %v288, 0.0
        %vm295 = vcmp.gt.f32.partialorder %v289, 0.0
        %v296 = vsel %vm290, 1, 0
        %v297 = vsel %vm291, 1, 0
        %v298 = vsel %vm292, 1, 0
        %v299 = vsel %vm293, 1, 0
        %v300 = vsel %vm294, 1, 0
        %v301 = vsel %vm295, 1, 0
        %v302 = vcvt.s32.f32 %v296
        %v303 = vcvt.s32.f32 %v297
        %v304 = vcvt.s32.f32 %v298
        %v305 = vcvt.s32.f32 %v299
        %v306 = vcvt.s32.f32 %v300
        %v307 = vcvt.s32.f32 %v301
        %308 = vst [vmem:[#allocation3] sm:$0xff] %v302
        %309 = vst [vmem:[#allocation3 + $0x8] sm:$0xff] %v303
        %310 = vst [vmem:[#allocation3 + $0x10] sm:$0xff] %v304
        %311 = vst [vmem:[#allocation3 + $0x18] sm:$0xff] %v305
        %312 = vst [vmem:[#allocation3 + $0x20] sm:$0xff] %v306
        %313 = vst [vmem:[#allocation3 + $0x28] sm:$0x1] %v307
        %s314 = sld [smem:[#allocation9]]
        %v315 = vstv %s314
        %s316 = sld [smem:[#allocation9 + $0x1]]
        %v317 = vstv %s316
        %s318 = sld [smem:[#allocation9 + $0x2]]
        %v319 = vstv %s318
        %v320 = vld [vmem:[#allocation2 + $0x7] sm:$0xff]
        %s321 = sld [smem:[#allocation5]]
        %v322 = vstv %s321
        %v323 = vmul.f32 %v322, %v320
        %v324 = vadd.f32 %v323, 0.0
        %s325 = sld [smem:[#allocation5 + $0x1]]
        %v326 = vstv %s325
        %v327 = vmul.f32 %v326, %v320
        %v328 = vadd.f32 %v315, %v327
        %s329 = sld [smem:[#allocation5 + $0x2]]
        %v330 = vstv %s329
        %v331 = vmul.f32 %v330, %v320
        %v332 = vadd.f32 %v331, 0.0
        %s333 = sld [smem:[#allocation5 + $0x24]]
        %v334 = vstv %s333
        %v335 = vmul.f32 %v334, %v320
        %v336 = vadd.f32 %v335, 0.0
        %s337 = sld [smem:[#allocation5 + $0x25]]
        %v338 = vstv %s337
        %v339 = vmul.f32 %v338, %v320
        %v340 = vadd.f32 %v317, %v339
        %s341 = sld [smem:[#allocation5 + $0x26]]
        %v342 = vstv %s341
        %v343 = vmul.f32 %v342, %v320
        %v344 = vadd.f32 %v343, 0.0
        %s345 = sld [smem:[#allocation5 + $0x48]]
        %v346 = vstv %s345
        %v347 = vmul.f32 %v346, %v320
        %v348 = vadd.f32 %v347, 0.0
        %s349 = sld [smem:[#allocation5 + $0x49]]
        %v350 = vstv %s349
        %v351 = vmul.f32 %v350, %v320
        %v352 = vadd.f32 %v319, %v351
        %s353 = sld [smem:[#allocation5 + $0x4a]]
        %v354 = vstv %s353
        %v355 = vmul.f32 %v354, %v320
        %v356 = vadd.f32 %v355, 0.0
        %v357 = vld [vmem:[#allocation2 + $0x8] sm:$0xff]
        %s358 = sld [smem:[#allocation5 + $0x3]]
        %v359 = vstv %s358
        %v360 = vmul.f32 %v359, %v357
        %v361 = vadd.f32 %v324, %v360
        %s362 = sld [smem:[#allocation5 + $0x4]]
        %v363 = vstv %s362
        %v364 = vmul.f32 %v363, %v357
        %v365 = vadd.f32 %v328, %v364
        %s366 = sld [smem:[#allocation5 + $0x5]]
        %v367 = vstv %s366
        %v368 = vmul.f32 %v367, %v357
        %v369 = vadd.f32 %v332, %v368
        %s370 = sld [smem:[#allocation5 + $0x27]]
        %v371 = vstv %s370
        %v372 = vmul.f32 %v371, %v357
        %v373 = vadd.f32 %v336, %v372
        %s374 = sld [smem:[#allocation5 + $0x28]]
        %v375 = vstv %s374
        %v376 = vmul.f32 %v375, %v357
        %v377 = vadd.f32 %v340, %v376
        %s378 = sld [smem:[#allocation5 + $0x29]]
        %v379 = vstv %s378
        %v380 = vmul.f32 %v379, %v357
        %v381 = vadd.f32 %v344, %v380
        %s382 = sld [smem:[#allocation5 + $0x4b]]
        %v383 = vstv %s382
        %v384 = vmul.f32 %v383, %v357
        %v385 = vadd.f32 %v348, %v384
        %s386 = sld [smem:[#allocation5 + $0x4c]]
        %v387 = vstv %s386
        %v388 = vmul.f32 %v387, %v357
        %v389 = vadd.f32 %v352, %v388
        %s390 = sld [smem:[#allocation5 + $0x4d]]
        %v391 = vstv %s390
        %v392 = vmul.f32 %v391, %v357
        %v393 = vadd.f32 %v356, %v392
        %v394 = vld [vmem:[#allocation2 + $0x9] sm:$0xff]
        %s395 = sld [smem:[#allocation5 + $0x6]]
        %v396 = vstv %s395
        %v397 = vmul.f32 %v396, %v394
        %v398 = vadd.f32 %v361, %v397
        %s399 = sld [smem:[#allocation5 + $0x7]]
        %v400 = vstv %s399
        %v401 = vmul.f32 %v400, %v394
        %v402 = vadd.f32 %v365, %v401
        %s403 = sld [smem:[#allocation5 + $0x8]]
        %v404 = vstv %s403
        %v405 = vmul.f32 %v404, %v394
        %v406 = vadd.f32 %v369, %v405
        %s407 = sld [smem:[#allocation5 + $0x2a]]
        %v408 = vstv %s407
        %v409 = vmul.f32 %v408, %v394
        %v410 = vadd.f32 %v373, %v409
        %s411 = sld [smem:[#allocation5 + $0x2b]]
        %v412 = vstv %s411
        %v413 = vmul.f32 %v412, %v394
        %v414 = vadd.f32 %v377, %v413
        %s415 = sld [smem:[#allocation5 + $0x2c]]
        %v416 = vstv %s415
        %v417 = vmul.f32 %v416, %v394
        %v418 = vadd.f32 %v381, %v417
        %s419 = sld [smem:[#allocation5 + $0x4e]]
        %v420 = vstv %s419
        %v421 = vmul.f32 %v420, %v394
        %v422 = vadd.f32 %v385, %v421
        %s423 = sld [smem:[#allocation5 + $0x4f]]
        %v424 = vstv %s423
        %v425 = vmul.f32 %v424, %v394
        %v426 = vadd.f32 %v389, %v425
        %s427 = sld [smem:[#allocation5 + $0x50]]
        %v428 = vstv %s427
        %v429 = vmul.f32 %v428, %v394
        %v430 = vadd.f32 %v393, %v429
        %s431 = scalar_lea.vmem [#allocation2], 48
        %v432 = vld [vmem:[%s431 + $0x7] sm:$0xff]
        %s433 = sld [smem:[#allocation5 + $0x9]]
        %v434 = vstv %s433
        %v435 = vmul.f32 %v434, %v432
        %v436 = vadd.f32 %v398, %v435
        %s437 = sld [smem:[#allocation5 + $0xa]]
        %v438 = vstv %s437
        %v439 = vmul.f32 %v438, %v432
        %v440 = vadd.f32 %v402, %v439
        %s441 = sld [smem:[#allocation5 + $0xb]]
        %v442 = vstv %s441
        %v443 = vmul.f32 %v442, %v432
        %v444 = vadd.f32 %v406, %v443
        %s445 = sld [smem:[#allocation5 + $0x2d]]
        %v446 = vstv %s445
        %v447 = vmul.f32 %v446, %v432
        %v448 = vadd.f32 %v410, %v447
        %s449 = sld [smem:[#allocation5 + $0x2e]]
        %v450 = vstv %s449
        %v451 = vmul.f32 %v450, %v432
        %v452 = vadd.f32 %v414, %v451
        %s453 = sld [smem:[#allocation5 + $0x2f]]
        %v454 = vstv %s453
        %v455 = vmul.f32 %v454, %v432
        %v456 = vadd.f32 %v418, %v455
        %s457 = sld [smem:[#allocation5 + $0x51]]
        %v458 = vstv %s457
        %v459 = vmul.f32 %v458, %v432
        %v460 = vadd.f32 %v422, %v459
        %s461 = sld [smem:[#allocation5 + $0x52]]
        %v462 = vstv %s461
        %v463 = vmul.f32 %v462, %v432
        %v464 = vadd.f32 %v426, %v463
        %s465 = sld [smem:[#allocation5 + $0x53]]
        %v466 = vstv %s465
        %v467 = vmul.f32 %v466, %v432
        %v468 = vadd.f32 %v430, %v467
        %v469 = vld [vmem:[%s431 + $0x8] sm:$0xff]
        %s470 = sld [smem:[#allocation5 + $0xc]]
        %v471 = vstv %s470
        %v472 = vmul.f32 %v471, %v469
        %v473 = vadd.f32 %v436, %v472
        %s474 = sld [smem:[#allocation5 + $0xd]]
        %v475 = vstv %s474
        %v476 = vmul.f32 %v475, %v469
        %v477 = vadd.f32 %v440, %v476
        %s478 = sld [smem:[#allocation5 + $0xe]]
        %v479 = vstv %s478
        %v480 = vmul.f32 %v479, %v469
        %v481 = vadd.f32 %v444, %v480
        %s482 = sld [smem:[#allocation5 + $0x30]]
        %v483 = vstv %s482
        %v484 = vmul.f32 %v483, %v469
        %v485 = vadd.f32 %v448, %v484
        %s486 = sld [smem:[#allocation5 + $0x31]]
        %v487 = vstv %s486
        %v488 = vmul.f32 %v487, %v469
        %v489 = vadd.f32 %v452, %v488
        %s490 = sld [smem:[#allocation5 + $0x32]]
        %v491 = vstv %s490
        %v492 = vmul.f32 %v491, %v469
        %v493 = vadd.f32 %v456, %v492
        %s494 = sld [smem:[#allocation5 + $0x54]]
        %v495 = vstv %s494
        %v496 = vmul.f32 %v495, %v469
        %v497 = vadd.f32 %v460, %v496
        %s498 = sld [smem:[#allocation5 + $0x55]]
        %v499 = vstv %s498
        %v500 = vmul.f32 %v499, %v469
        %v501 = vadd.f32 %v464, %v500
        %s502 = sld [smem:[#allocation5 + $0x56]]
        %v503 = vstv %s502
        %v504 = vmul.f32 %v503, %v469
        %v505 = vadd.f32 %v468, %v504
        %v506 = vld [vmem:[%s431 + $0x9] sm:$0xff]
        %s507 = sld [smem:[#allocation5 + $0xf]]
        %v508 = vstv %s507
        %v509 = vmul.f32 %v508, %v506
        %v510 = vadd.f32 %v473, %v509
        %s511 = sld [smem:[#allocation5 + $0x10]]
        %v512 = vstv %s511
        %v513 = vmul.f32 %v512, %v506
        %v514 = vadd.f32 %v477, %v513
        %s515 = sld [smem:[#allocation5 + $0x11]]
        %v516 = vstv %s515
        %v517 = vmul.f32 %v516, %v506
        %v518 = vadd.f32 %v481, %v517
        %s519 = sld [smem:[#allocation5 + $0x33]]
        %v520 = vstv %s519
        %v521 = vmul.f32 %v520, %v506
        %v522 = vadd.f32 %v485, %v521
        %s523 = sld [smem:[#allocation5 + $0x34]]
        %v524 = vstv %s523
        %v525 = vmul.f32 %v524, %v506
        %v526 = vadd.f32 %v489, %v525
        %s527 = sld [smem:[#allocation5 + $0x35]]
        %v528 = vstv %s527
        %v529 = vmul.f32 %v528, %v506
        %v530 = vadd.f32 %v493, %v529
        %s531 = sld [smem:[#allocation5 + $0x57]]
        %v532 = vstv %s531
        %v533 = vmul.f32 %v532, %v506
        %v534 = vadd.f32 %v497, %v533
        %s535 = sld [smem:[#allocation5 + $0x58]]
        %v536 = vstv %s535
        %v537 = vmul.f32 %v536, %v506
        %v538 = vadd.f32 %v501, %v537
        %s539 = sld [smem:[#allocation5 + $0x59]]
        %v540 = vstv %s539
        %v541 = vmul.f32 %v540, %v506
        %v542 = vadd.f32 %v505, %v541
        %s543 = scalar_lea.vmem [#allocation2], 96
        %v544 = vld [vmem:[%s543 + $0x7] sm:$0xff]
        %s545 = sld [smem:[#allocation5 + $0x12]]
        %v546 = vstv %s545
        %v547 = vmul.f32 %v546, %v544
        %v548 = vadd.f32 %v510, %v547
        %s549 = sld [smem:[#allocation5 + $0x13]]
        %v550 = vstv %s549
        %v551 = vmul.f32 %v550, %v544
        %v552 = vadd.f32 %v514, %v551
        %s553 = sld [smem:[#allocation5 + $0x14]]
        %v554 = vstv %s553
        %v555 = vmul.f32 %v554, %v544
        %v556 = vadd.f32 %v518, %v555
        %s557 = sld [smem:[#allocation5 + $0x36]]
        %v558 = vstv %s557
        %v559 = vmul.f32 %v558, %v544
        %v560 = vadd.f32 %v522, %v559
        %s561 = sld [smem:[#allocation5 + $0x37]]
        %v562 = vstv %s561
        %v563 = vmul.f32 %v562, %v544
        %v564 = vadd.f32 %v526, %v563
        %s565 = sld [smem:[#allocation5 + $0x38]]
        %v566 = vstv %s565
        %v567 = vmul.f32 %v566, %v544
        %v568 = vadd.f32 %v530, %v567
        %s569 = sld [smem:[#allocation5 + $0x5a]]
        %v570 = vstv %s569
        %v571 = vmul.f32 %v570, %v544
        %v572 = vadd.f32 %v534, %v571
        %s573 = sld [smem:[#allocation5 + $0x5b]]
        %v574 = vstv %s573
        %v575 = vmul.f32 %v574, %v544
        %v576 = vadd.f32 %v538, %v575
        %s577 = sld [smem:[#allocation5 + $0x5c]]
        %v578 = vstv %s577
        %v579 = vmul.f32 %v578, %v544
        %v580 = vadd.f32 %v542, %v579
        %v581 = vld [vmem:[%s543 + $0x8] sm:$0xff]
        %s582 = sld [smem:[#allocation5 + $0x15]]
        %v583 = vstv %s582
        %v584 = vmul.f32 %v583, %v581
        %v585 = vadd.f32 %v548, %v584
        %s586 = sld [smem:[#allocation5 + $0x16]]
        %v587 = vstv %s586
        %v588 = vmul.f32 %v587, %v581
        %v589 = vadd.f32 %v552, %v588
        %s590 = sld [smem:[#allocation5 + $0x17]]
        %v591 = vstv %s590
        %v592 = vmul.f32 %v591, %v581
        %v593 = vadd.f32 %v556, %v592
        %s594 = sld [smem:[#allocation5 + $0x39]]
        %v595 = vstv %s594
        %v596 = vmul.f32 %v595, %v581
        %v597 = vadd.f32 %v560, %v596
        %s598 = sld [smem:[#allocation5 + $0x3a]]
        %v599 = vstv %s598
        %v600 = vmul.f32 %v599, %v581
        %v601 = vadd.f32 %v564, %v600
        %s602 = sld [smem:[#allocation5 + $0x3b]]
        %v603 = vstv %s602
        %v604 = vmul.f32 %v603, %v581
        %v605 = vadd.f32 %v568, %v604
        %s606 = sld [smem:[#allocation5 + $0x5d]]
        %v607 = vstv %s606
        %v608 = vmul.f32 %v607, %v581
        %v609 = vadd.f32 %v572, %v608
        %s610 = sld [smem:[#allocation5 + $0x5e]]
        %v611 = vstv %s610
        %v612 = vmul.f32 %v611, %v581
        %v613 = vadd.f32 %v576, %v612
        %s614 = sld [smem:[#allocation5 + $0x5f]]
        %v615 = vstv %s614
        %v616 = vmul.f32 %v615, %v581
        %v617 = vadd.f32 %v580, %v616
        %v618 = vld [vmem:[%s543 + $0x9] sm:$0xff]
        %s619 = sld [smem:[#allocation5 + $0x18]]
        %v620 = vstv %s619
        %v621 = vmul.f32 %v620, %v618
        %v622 = vadd.f32 %v585, %v621
        %s623 = sld [smem:[#allocation5 + $0x19]]
        %v624 = vstv %s623
        %v625 = vmul.f32 %v624, %v618
        %v626 = vadd.f32 %v589, %v625
        %s627 = sld [smem:[#allocation5 + $0x1a]]
        %v628 = vstv %s627
        %v629 = vmul.f32 %v628, %v618
        %v630 = vadd.f32 %v593, %v629
        %s631 = sld [smem:[#allocation5 + $0x3c]]
        %v632 = vstv %s631
        %v633 = vmul.f32 %v632, %v618
        %v634 = vadd.f32 %v597, %v633
        %s635 = sld [smem:[#allocation5 + $0x3d]]
        %v636 = vstv %s635
        %v637 = vmul.f32 %v636, %v618
        %v638 = vadd.f32 %v601, %v637
        %s639 = sld [smem:[#allocation5 + $0x3e]]
        %v640 = vstv %s639
        %v641 = vmul.f32 %v640, %v618
        %v642 = vadd.f32 %v605, %v641
        %s643 = sld [smem:[#allocation5 + $0x60]]
        %v644 = vstv %s643
        %v645 = vmul.f32 %v644, %v618
        %v646 = vadd.f32 %v609, %v645
        %s647 = sld [smem:[#allocation5 + $0x61]]
        %v648 = vstv %s647
        %v649 = vmul.f32 %v648, %v618
        %v650 = vadd.f32 %v613, %v649
        %s651 = sld [smem:[#allocation5 + $0x62]]
        %v652 = vstv %s651
        %v653 = vmul.f32 %v652, %v618
        %v654 = vadd.f32 %v617, %v653
        %v655 = vld [vmem:[#allocation3 + $0x7] sm:$0xff]
        %s656 = sld [smem:[#allocation5 + $0x1b]]
        %v657 = vstv %s656
        %v658 = vmul.f32 %v657, %v655
        %v659 = vadd.f32 %v622, %v658
        %s660 = sld [smem:[#allocation5 + $0x1c]]
        %v661 = vstv %s660
        %v662 = vmul.f32 %v661, %v655
        %v663 = vadd.f32 %v626, %v662
        %s664 = sld [smem:[#allocation5 + $0x1d]]
        %v665 = vstv %s664
        %v666 = vmul.f32 %v665, %v655
        %v667 = vadd.f32 %v630, %v666
        %s668 = sld [smem:[#allocation5 + $0x3f]]
        %v669 = vstv %s668
        %v670 = vmul.f32 %v669, %v655
        %v671 = vadd.f32 %v634, %v670
        %s672 = sld [smem:[#allocation5 + $0x40]]
        %v673 = vstv %s672
        %v674 = vmul.f32 %v673, %v655
        %v675 = vadd.f32 %v638, %v674
        %s676 = sld [smem:[#allocation5 + $0x41]]
        %v677 = vstv %s676
        %v678 = vmul.f32 %v677, %v655
        %v679 = vadd.f32 %v642, %v678
        %s680 = sld [smem:[#allocation5 + $0x63]]
        %v681 = vstv %s680
        %v682 = vmul.f32 %v681, %v655
        %v683 = vadd.f32 %v646, %v682
        %s684 = sld [smem:[#allocation5 + $0x64]]
        %v685 = vstv %s684
        %v686 = vmul.f32 %v685, %v655
        %v687 = vadd.f32 %v650, %v686
        %s688 = sld [smem:[#allocation5 + $0x65]]
        %v689 = vstv %s688
        %v690 = vmul.f32 %v689, %v655
        %v691 = vadd.f32 %v654, %v690
        %v692 = vld [vmem:[#allocation3 + $0x8] sm:$0xff]
        %s693 = sld [smem:[#allocation5 + $0x1e]]
        %v694 = vstv %s693
        %v695 = vmul.f32 %v694, %v692
        %v696 = vadd.f32 %v659, %v695
        %s697 = sld [smem:[#allocation5 + $0x1f]]
        %v698 = vstv %s697
        %v699 = vmul.f32 %v698, %v692
        %v700 = vadd.f32 %v663, %v699
        %s701 = sld [smem:[#allocation5 + $0x20]]
        %v702 = vstv %s701
        %v703 = vmul.f32 %v702, %v692
        %v704 = vadd.f32 %v667, %v703
        %s705 = sld [smem:[#allocation5 + $0x42]]
        %v706 = vstv %s705
        %v707 = vmul.f32 %v706, %v692
        %v708 = vadd.f32 %v671, %v707
        %s709 = sld [smem:[#allocation5 + $0x43]]
        %v710 = vstv %s709
        %v711 = vmul.f32 %v710, %v692
        %v712 = vadd.f32 %v675, %v711
        %s713 = sld [smem:[#allocation5 + $0x44]]
        %v714 = vstv %s713
        %v715 = vmul.f32 %v714, %v692
        %v716 = vadd.f32 %v679, %v715
        %s717 = sld [smem:[#allocation5 + $0x66]]
        %v718 = vstv %s717
        %v719 = vmul.f32 %v718, %v692
        %v720 = vadd.f32 %v683, %v719
        %s721 = sld [smem:[#allocation5 + $0x67]]
        %v722 = vstv %s721
        %v723 = vmul.f32 %v722, %v692
        %v724 = vadd.f32 %v687, %v723
        %s725 = sld [smem:[#allocation5 + $0x68]]
        %v726 = vstv %s725
        %v727 = vmul.f32 %v726, %v692
        %v728 = vadd.f32 %v691, %v727
        %v729 = vld [vmem:[#allocation3 + $0x9] sm:$0xff]
        %s730 = sld [smem:[#allocation5 + $0x21]]
        %v731 = vstv %s730
        %v732 = vmul.f32 %v731, %v729
        %v733 = vadd.f32 %v696, %v732
        %s734 = sld [smem:[#allocation5 + $0x22]]
        %v735 = vstv %s734
        %v736 = vmul.f32 %v735, %v729
        %v737 = vadd.f32 %v700, %v736
        %s738 = sld [smem:[#allocation5 + $0x23]]
        %v739 = vstv %s738
        %v740 = vmul.f32 %v739, %v729
        %v741 = vadd.f32 %v704, %v740
        %s742 = sld [smem:[#allocation5 + $0x45]]
        %v743 = vstv %s742
        %v744 = vmul.f32 %v743, %v729
        %v745 = vadd.f32 %v708, %v744
        %s746 = sld [smem:[#allocation5 + $0x46]]
        %v747 = vstv %s746
        %v748 = vmul.f32 %v747, %v729
        %v749 = vadd.f32 %v712, %v748
        %s750 = sld [smem:[#allocation5 + $0x47]]
        %v751 = vstv %s750
        %v752 = vmul.f32 %v751, %v729
        %v753 = vadd.f32 %v716, %v752
        %s754 = sld [smem:[#allocation5 + $0x69]]
        %v755 = vstv %s754
        %v756 = vmul.f32 %v755, %v729
        %v757 = vadd.f32 %v720, %v756
        %s758 = sld [smem:[#allocation5 + $0x6a]]
        %v759 = vstv %s758
        %v760 = vmul.f32 %v759, %v729
        %v761 = vadd.f32 %v724, %v760
        %s762 = sld [smem:[#allocation5 + $0x6b]]
        %v763 = vstv %s762
        %v764 = vmul.f32 %v763, %v729
        %v765 = vadd.f32 %v728, %v764
        %767 = vrot.lane.b32.xlu0 %v733, 1
        %v768 = vpop.permute.xlu0 %767
        %vm770 = vcmask 7168
        %v771 = vsel %vm770, 0.0, %v768
        %773 = vrot.lane.b32.xlu0 %v741, 127
        %v774 = vpop.permute.xlu0 %773
        %vm776 = vcmask 1039360
        %v777 = vsel %vm776, %v774, 0.0
        %v778 = vadd.f32 %v737, %v771
        %v779 = vadd.f32 %v778, %v777
        %v780 = vsub.f32 0.0, %v779
        %v781 = vmul.f32 %v780, 1.442695
        %v782 = vpow.pop %v781
        %v783 = vadd.f32 %v782, 1.0
        %v784 = vrcp.pop %v783
        %v785 = vmul.f32 255.0, %v784
        %v786 = vmax.f32 %v785, 0.0
        %v787 = vmin.f32 %v786, 255.0
        %788 = vst [vmem:[%s162] sm:$0xff] %v787
        %790 = vrot.lane.b32.xlu0 %v745, 1
        %v791 = vpop.permute.xlu0 %790
        %v793 = vsel %vm770, 0.0, %v791
        %795 = vrot.lane.b32.xlu0 %v753, 127
        %v796 = vpop.permute.xlu0 %795
        %v798 = vsel %vm776, %v796, 0.0
        %v799 = vadd.f32 %v749, %v793
        %v800 = vadd.f32 %v799, %v798
        %v801 = vsub.f32 0.0, %v800
        %v802 = vmul.f32 %v801, 1.442695
        %v803 = vpow.pop %v802
        %v804 = vadd.f32 %v803, 1.0
        %v805 = vrcp.pop %v804
        %v806 = vmul.f32 255.0, %v805
        %v807 = vmax.f32 %v806, 0.0
        %v808 = vmin.f32 %v807, 255.0
        %s809 = scalar_lea.vmem %s162, 32 [#allocation10]
        %810 = vst [vmem:[%s809] sm:$0xff] %v808
        %812 = vrot.lane.b32.xlu0 %v757, 1
        %v813 = vpop.permute.xlu0 %812
        %v815 = vsel %vm770, 0.0, %v813
        %817 = vrot.lane.b32.xlu0 %v765, 127
        %v818 = vpop.permute.xlu0 %817
        %v820 = vsel %vm776, %v818, 0.0
        %v821 = vadd.f32 %v761, %v815
        %v822 = vadd.f32 %v821, %v820
        %v823 = vsub.f32 0.0, %v822
        %v824 = vmul.f32 %v823, 1.442695
        %v825 = vpow.pop %v824
        %v826 = vadd.f32 %v825, 1.0
        %v827 = vrcp.pop %v826
        %v828 = vmul.f32 255.0, %v827
        %v829 = vmax.f32 %v828, 0.0
        %v830 = vmin.f32 %v829, 255.0
        %s831 = scalar_lea.vmem %s162, 64 [#allocation10]
        %832 = vst [vmem:[%s831] sm:$0xff] %v830
        %s833 = sld [smem:[#allocation9]]
        %v834 = vstv %s833
        %s835 = sld [smem:[#allocation9 + $0x1]]
        %v836 = vstv %s835
        %s837 = sld [smem:[#allocation9 + $0x2]]
        %v838 = vstv %s837
        %v839 = vld [vmem:[#allocation2 + $0xf] sm:$0xff]
        %s840 = sld [smem:[#allocation5]]
        %v841 = vstv %s840
        %v842 = vmul.f32 %v841, %v839
        %v843 = vadd.f32 %v842, 0.0
        %s844 = sld [smem:[#allocation5 + $0x1]]
        %v845 = vstv %s844
        %v846 = vmul.f32 %v845, %v839
        %v847 = vadd.f32 %v834, %v846
        %s848 = sld [smem:[#allocation5 + $0x2]]
        %v849 = vstv %s848
        %v850 = vmul.f32 %v849, %v839
        %v851 = vadd.f32 %v850, 0.0
        %s852 = sld [smem:[#allocation5 + $0x24]]
        %v853 = vstv %s852
        %v854 = vmul.f32 %v853, %v839
        %v855 = vadd.f32 %v854, 0.0
        %s856 = sld [smem:[#allocation5 + $0x25]]
        %v857 = vstv %s856
        %v858 = vmul.f32 %v857, %v839
        %v859 = vadd.f32 %v836, %v858
        %s860 = sld [smem:[#allocation5 + $0x26]]
        %v861 = vstv %s860
        %v862 = vmul.f32 %v861, %v839
        %v863 = vadd.f32 %v862, 0.0
        %s864 = sld [smem:[#allocation5 + $0x48]]
        %v865 = vstv %s864
        %v866 = vmul.f32 %v865, %v839
        %v867 = vadd.f32 %v866, 0.0
        %s868 = sld [smem:[#allocation5 + $0x49]]
        %v869 = vstv %s868
        %v870 = vmul.f32 %v869, %v839
        %v871 = vadd.f32 %v838, %v870
        %s872 = sld [smem:[#allocation5 + $0x4a]]
        %v873 = vstv %s872
        %v874 = vmul.f32 %v873, %v839
        %v875 = vadd.f32 %v874, 0.0
        %v876 = vld [vmem:[#allocation2 + $0x10] sm:$0xff]
        %s877 = sld [smem:[#allocation5 + $0x3]]
        %v878 = vstv %s877
        %v879 = vmul.f32 %v878, %v876
        %v880 = vadd.f32 %v843, %v879
        %s881 = sld [smem:[#allocation5 + $0x4]]
        %v882 = vstv %s881
        %v883 = vmul.f32 %v882, %v876
        %v884 = vadd.f32 %v847, %v883
        %s885 = sld [smem:[#allocation5 + $0x5]]
        %v886 = vstv %s885
        %v887 = vmul.f32 %v886, %v876
        %v888 = vadd.f32 %v851, %v887
        %s889 = sld [smem:[#allocation5 + $0x27]]
        %v890 = vstv %s889
        %v891 = vmul.f32 %v890, %v876
        %v892 = vadd.f32 %v855, %v891
        %s893 = sld [smem:[#allocation5 + $0x28]]
        %v894 = vstv %s893
        %v895 = vmul.f32 %v894, %v876
        %v896 = vadd.f32 %v859, %v895
        %s897 = sld [smem:[#allocation5 + $0x29]]
        %v898 = vstv %s897
        %v899 = vmul.f32 %v898, %v876
        %v900 = vadd.f32 %v863, %v899
        %s901 = sld [smem:[#allocation5 + $0x4b]]
        %v902 = vstv %s901
        %v903 = vmul.f32 %v902, %v876
        %v904 = vadd.f32 %v867, %v903
        %s905 = sld [smem:[#allocation5 + $0x4c]]
        %v906 = vstv %s905
        %v907 = vmul.f32 %v906, %v876
        %v908 = vadd.f32 %v871, %v907
        %s909 = sld [smem:[#allocation5 + $0x4d]]
        %v910 = vstv %s909
        %v911 = vmul.f32 %v910, %v876
        %v912 = vadd.f32 %v875, %v911
        %v913 = vld [vmem:[#allocation2 + $0x11] sm:$0xff]
        %s914 = sld [smem:[#allocation5 + $0x6]]
        %v915 = vstv %s914
        %v916 = vmul.f32 %v915, %v913
        %v917 = vadd.f32 %v880, %v916
        %s918 = sld [smem:[#allocation5 + $0x7]]
        %v919 = vstv %s918
        %v920 = vmul.f32 %v919, %v913
        %v921 = vadd.f32 %v884, %v920
        %s922 = sld [smem:[#allocation5 + $0x8]]
        %v923 = vstv %s922
        %v924 = vmul.f32 %v923, %v913
        %v925 = vadd.f32 %v888, %v924
        %s926 = sld [smem:[#allocation5 + $0x2a]]
        %v927 = vstv %s926
        %v928 = vmul.f32 %v927, %v913
        %v929 = vadd.f32 %v892, %v928
        %s930 = sld [smem:[#allocation5 + $0x2b]]
        %v931 = vstv %s930
        %v932 = vmul.f32 %v931, %v913
        %v933 = vadd.f32 %v896, %v932
        %s934 = sld [smem:[#allocation5 + $0x2c]]
        %v935 = vstv %s934
        %v936 = vmul.f32 %v935, %v913
        %v937 = vadd.f32 %v900, %v936
        %s938 = sld [smem:[#allocation5 + $0x4e]]
        %v939 = vstv %s938
        %v940 = vmul.f32 %v939, %v913
        %v941 = vadd.f32 %v904, %v940
        %s942 = sld [smem:[#allocation5 + $0x4f]]
        %v943 = vstv %s942
        %v944 = vmul.f32 %v943, %v913
        %v945 = vadd.f32 %v908, %v944
        %s946 = sld [smem:[#allocation5 + $0x50]]
        %v947 = vstv %s946
        %v948 = vmul.f32 %v947, %v913
        %v949 = vadd.f32 %v912, %v948
        %v950 = vld [vmem:[%s431 + $0xf] sm:$0xff]
        %s951 = sld [smem:[#allocation5 + $0x9]]
        %v952 = vstv %s951
        %v953 = vmul.f32 %v952, %v950
        %v954 = vadd.f32 %v917, %v953
        %s955 = sld [smem:[#allocation5 + $0xa]]
        %v956 = vstv %s955
        %v957 = vmul.f32 %v956, %v950
        %v958 = vadd.f32 %v921, %v957
        %s959 = sld [smem:[#allocation5 + $0xb]]
        %v960 = vstv %s959
        %v961 = vmul.f32 %v960, %v950
        %v962 = vadd.f32 %v925, %v961
        %s963 = sld [smem:[#allocation5 + $0x2d]]
        %v964 = vstv %s963
        %v965 = vmul.f32 %v964, %v950
        %v966 = vadd.f32 %v929, %v965
        %s967 = sld [smem:[#allocation5 + $0x2e]]
        %v968 = vstv %s967
        %v969 = vmul.f32 %v968, %v950
        %v970 = vadd.f32 %v933, %v969
        %s971 = sld [smem:[#allocation5 + $0x2f]]
        %v972 = vstv %s971
        %v973 = vmul.f32 %v972, %v950
        %v974 = vadd.f32 %v937, %v973
        %s975 = sld [smem:[#allocation5 + $0x51]]
        %v976 = vstv %s975
        %v977 = vmul.f32 %v976, %v950
        %v978 = vadd.f32 %v941, %v977
        %s979 = sld [smem:[#allocation5 + $0x52]]
        %v980 = vstv %s979
        %v981 = vmul.f32 %v980, %v950
        %v982 = vadd.f32 %v945, %v981
        %s983 = sld [smem:[#allocation5 + $0x53]]
        %v984 = vstv %s983
        %v985 = vmul.f32 %v984, %v950
        %v986 = vadd.f32 %v949, %v985
        %v987 = vld [vmem:[%s431 + $0x10] sm:$0xff]
        %s988 = sld [smem:[#allocation5 + $0xc]]
        %v989 = vstv %s988
        %v990 = vmul.f32 %v989, %v987
        %v991 = vadd.f32 %v954, %v990
        %s992 = sld [smem:[#allocation5 + $0xd]]
        %v993 = vstv %s992
        %v994 = vmul.f32 %v993, %v987
        %v995 = vadd.f32 %v958, %v994
        %s996 = sld [smem:[#allocation5 + $0xe]]
        %v997 = vstv %s996
        %v998 = vmul.f32 %v997, %v987
        %v999 = vadd.f32 %v962, %v998
        %s1000 = sld [smem:[#allocation5 + $0x30]]
        %v1001 = vstv %s1000
        %v1002 = vmul.f32 %v1001, %v987
        %v1003 = vadd.f32 %v966, %v1002
        %s1004 = sld [smem:[#allocation5 + $0x31]]
        %v1005 = vstv %s1004
        %v1006 = vmul.f32 %v1005, %v987
        %v1007 = vadd.f32 %v970, %v1006
        %s1008 = sld [smem:[#allocation5 + $0x32]]
        %v1009 = vstv %s1008
        %v1010 = vmul.f32 %v1009, %v987
        %v1011 = vadd.f32 %v974, %v1010
        %s1012 = sld [smem:[#allocation5 + $0x54]]
        %v1013 = vstv %s1012
        %v1014 = vmul.f32 %v1013, %v987
        %v1015 = vadd.f32 %v978, %v1014
        %s1016 = sld [smem:[#allocation5 + $0x55]]
        %v1017 = vstv %s1016
        %v1018 = vmul.f32 %v1017, %v987
        %v1019 = vadd.f32 %v982, %v1018
        %s1020 = sld [smem:[#allocation5 + $0x56]]
        %v1021 = vstv %s1020
        %v1022 = vmul.f32 %v1021, %v987
        %v1023 = vadd.f32 %v986, %v1022
        %v1024 = vld [vmem:[%s431 + $0x11] sm:$0xff]
        %s1025 = sld [smem:[#allocation5 + $0xf]]
        %v1026 = vstv %s1025
        %v1027 = vmul.f32 %v1026, %v1024
        %v1028 = vadd.f32 %v991, %v1027
        %s1029 = sld [smem:[#allocation5 + $0x10]]
        %v1030 = vstv %s1029
        %v1031 = vmul.f32 %v1030, %v1024
        %v1032 = vadd.f32 %v995, %v1031
        %s1033 = sld [smem:[#allocation5 + $0x11]]
        %v1034 = vstv %s1033
        %v1035 = vmul.f32 %v1034, %v1024
        %v1036 = vadd.f32 %v999, %v1035
        %s1037 = sld [smem:[#allocation5 + $0x33]]
        %v1038 = vstv %s1037
        %v1039 = vmul.f32 %v1038, %v1024
        %v1040 = vadd.f32 %v1003, %v1039
        %s1041 = sld [smem:[#allocation5 + $0x34]]
        %v1042 = vstv %s1041
        %v1043 = vmul.f32 %v1042, %v1024
        %v1044 = vadd.f32 %v1007, %v1043
        %s1045 = sld [smem:[#allocation5 + $0x35]]
        %v1046 = vstv %s1045
        %v1047 = vmul.f32 %v1046, %v1024
        %v1048 = vadd.f32 %v1011, %v1047
        %s1049 = sld [smem:[#allocation5 + $0x57]]
        %v1050 = vstv %s1049
        %v1051 = vmul.f32 %v1050, %v1024
        %v1052 = vadd.f32 %v1015, %v1051
        %s1053 = sld [smem:[#allocation5 + $0x58]]
        %v1054 = vstv %s1053
        %v1055 = vmul.f32 %v1054, %v1024
        %v1056 = vadd.f32 %v1019, %v1055
        %s1057 = sld [smem:[#allocation5 + $0x59]]
        %v1058 = vstv %s1057
        %v1059 = vmul.f32 %v1058, %v1024
        %v1060 = vadd.f32 %v1023, %v1059
        %v1061 = vld [vmem:[%s543 + $0xf] sm:$0xff]
        %s1062 = sld [smem:[#allocation5 + $0x12]]
        %v1063 = vstv %s1062
        %v1064 = vmul.f32 %v1063, %v1061
        %v1065 = vadd.f32 %v1028, %v1064
        %s1066 = sld [smem:[#allocation5 + $0x13]]
        %v1067 = vstv %s1066
        %v1068 = vmul.f32 %v1067, %v1061
        %v1069 = vadd.f32 %v1032, %v1068
        %s1070 = sld [smem:[#allocation5 + $0x14]]
        %v1071 = vstv %s1070
        %v1072 = vmul.f32 %v1071, %v1061
        %v1073 = vadd.f32 %v1036, %v1072
        %s1074 = sld [smem:[#allocation5 + $0x36]]
        %v1075 = vstv %s1074
        %v1076 = vmul.f32 %v1075, %v1061
        %v1077 = vadd.f32 %v1040, %v1076
        %s1078 = sld [smem:[#allocation5 + $0x37]]
        %v1079 = vstv %s1078
        %v1080 = vmul.f32 %v1079, %v1061
        %v1081 = vadd.f32 %v1044, %v1080
        %s1082 = sld [smem:[#allocation5 + $0x38]]
        %v1083 = vstv %s1082
        %v1084 = vmul.f32 %v1083, %v1061
        %v1085 = vadd.f32 %v1048, %v1084
        %s1086 = sld [smem:[#allocation5 + $0x5a]]
        %v1087 = vstv %s1086
        %v1088 = vmul.f32 %v1087, %v1061
        %v1089 = vadd.f32 %v1052, %v1088
        %s1090 = sld [smem:[#allocation5 + $0x5b]]
        %v1091 = vstv %s1090
        %v1092 = vmul.f32 %v1091, %v1061
        %v1093 = vadd.f32 %v1056, %v1092
        %s1094 = sld [smem:[#allocation5 + $0x5c]]
        %v1095 = vstv %s1094
        %v1096 = vmul.f32 %v1095, %v1061
        %v1097 = vadd.f32 %v1060, %v1096
        %v1098 = vld [vmem:[%s543 + $0x10] sm:$0xff]
        %s1099 = sld [smem:[#allocation5 + $0x15]]
        %v1100 = vstv %s1099
        %v1101 = vmul.f32 %v1100, %v1098
        %v1102 = vadd.f32 %v1065, %v1101
        %s1103 = sld [smem:[#allocation5 + $0x16]]
        %v1104 = vstv %s1103
        %v1105 = vmul.f32 %v1104, %v1098
        %v1106 = vadd.f32 %v1069, %v1105
        %s1107 = sld [smem:[#allocation5 + $0x17]]
        %v1108 = vstv %s1107
        %v1109 = vmul.f32 %v1108, %v1098
        %v1110 = vadd.f32 %v1073, %v1109
        %s1111 = sld [smem:[#allocation5 + $0x39]]
        %v1112 = vstv %s1111
        %v1113 = vmul.f32 %v1112, %v1098
        %v1114 = vadd.f32 %v1077, %v1113
        %s1115 = sld [smem:[#allocation5 + $0x3a]]
        %v1116 = vstv %s1115
        %v1117 = vmul.f32 %v1116, %v1098
        %v1118 = vadd.f32 %v1081, %v1117
        %s1119 = sld [smem:[#allocation5 + $0x3b]]
        %v1120 = vstv %s1119
        %v1121 = vmul.f32 %v1120, %v1098
        %v1122 = vadd.f32 %v1085, %v1121
        %s1123 = sld [smem:[#allocation5 + $0x5d]]
        %v1124 = vstv %s1123
        %v1125 = vmul.f32 %v1124, %v1098
        %v1126 = vadd.f32 %v1089, %v1125
        %s1127 = sld [smem:[#allocation5 + $0x5e]]
        %v1128 = vstv %s1127
        %v1129 = vmul.f32 %v1128, %v1098
        %v1130 = vadd.f32 %v1093, %v1129
        %s1131 = sld [smem:[#allocation5 + $0x5f]]
        %v1132 = vstv %s1131
        %v1133 = vmul.f32 %v1132, %v1098
        %v1134 = vadd.f32 %v1097, %v1133
        %v1135 = vld [vmem:[%s543 + $0x11] sm:$0xff]
        %s1136 = sld [smem:[#allocation5 + $0x18]]
        %v1137 = vstv %s1136
        %v1138 = vmul.f32 %v1137, %v1135
        %v1139 = vadd.f32 %v1102, %v1138
        %s1140 = sld [smem:[#allocation5 + $0x19]]
        %v1141 = vstv %s1140
        %v1142 = vmul.f32 %v1141, %v1135
        %v1143 = vadd.f32 %v1106, %v1142
        %s1144 = sld [smem:[#allocation5 + $0x1a]]
        %v1145 = vstv %s1144
        %v1146 = vmul.f32 %v1145, %v1135
        %v1147 = vadd.f32 %v1110, %v1146
        %s1148 = sld [smem:[#allocation5 + $0x3c]]
        %v1149 = vstv %s1148
        %v1150 = vmul.f32 %v1149, %v1135
        %v1151 = vadd.f32 %v1114, %v1150
        %s1152 = sld [smem:[#allocation5 + $0x3d]]
        %v1153 = vstv %s1152
        %v1154 = vmul.f32 %v1153, %v1135
        %v1155 = vadd.f32 %v1118, %v1154
        %s1156 = sld [smem:[#allocation5 + $0x3e]]
        %v1157 = vstv %s1156
        %v1158 = vmul.f32 %v1157, %v1135
        %v1159 = vadd.f32 %v1122, %v1158
        %s1160 = sld [smem:[#allocation5 + $0x60]]
        %v1161 = vstv %s1160
        %v1162 = vmul.f32 %v1161, %v1135
        %v1163 = vadd.f32 %v1126, %v1162
        %s1164 = sld [smem:[#allocation5 + $0x61]]
        %v1165 = vstv %s1164
        %v1166 = vmul.f32 %v1165, %v1135
        %v1167 = vadd.f32 %v1130, %v1166
        %s1168 = sld [smem:[#allocation5 + $0x62]]
        %v1169 = vstv %s1168
        %v1170 = vmul.f32 %v1169, %v1135
        %v1171 = vadd.f32 %v1134, %v1170
        %v1172 = vld [vmem:[#allocation3 + $0xf] sm:$0xff]
        %s1173 = sld [smem:[#allocation5 + $0x1b]]
        %v1174 = vstv %s1173
        %v1175 = vmul.f32 %v1174, %v1172
        %v1176 = vadd.f32 %v1139, %v1175
        %s1177 = sld [smem:[#allocation5 + $0x1c]]
        %v1178 = vstv %s1177
        %v1179 = vmul.f32 %v1178, %v1172
        %v1180 = vadd.f32 %v1143, %v1179
        %s1181 = sld [smem:[#allocation5 + $0x1d]]
        %v1182 = vstv %s1181
        %v1183 = vmul.f32 %v1182, %v1172
        %v1184 = vadd.f32 %v1147, %v1183
        %s1185 = sld [smem:[#allocation5 + $0x3f]]
        %v1186 = vstv %s1185
        %v1187 = vmul.f32 %v1186, %v1172
        %v1188 = vadd.f32 %v1151, %v1187
        %s1189 = sld [smem:[#allocation5 + $0x40]]
        %v1190 = vstv %s1189
        %v1191 = vmul.f32 %v1190, %v1172
        %v1192 = vadd.f32 %v1155, %v1191
        %s1193 = sld [smem:[#allocation5 + $0x41]]
        %v1194 = vstv %s1193
        %v1195 = vmul.f32 %v1194, %v1172
        %v1196 = vadd.f32 %v1159, %v1195
        %s1197 = sld [smem:[#allocation5 + $0x63]]
        %v1198 = vstv %s1197
        %v1199 = vmul.f32 %v1198, %v1172
        %v1200 = vadd.f32 %v1163, %v1199
        %s1201 = sld [smem:[#allocation5 + $0x64]]
        %v1202 = vstv %s1201
        %v1203 = vmul.f32 %v1202, %v1172
        %v1204 = vadd.f32 %v1167, %v1203
        %s1205 = sld [smem:[#allocation5 + $0x65]]
        %v1206 = vstv %s1205
        %v1207 = vmul.f32 %v1206, %v1172
        %v1208 = vadd.f32 %v1171, %v1207
        %v1209 = vld [vmem:[#allocation3 + $0x10] sm:$0xff]
        %s1210 = sld [smem:[#allocation5 + $0x1e]]
        %v1211 = vstv %s1210
        %v1212 = vmul.f32 %v1211, %v1209
        %v1213 = vadd.f32 %v1176, %v1212
        %s1214 = sld [smem:[#allocation5 + $0x1f]]
        %v1215 = vstv %s1214
        %v1216 = vmul.f32 %v1215, %v1209
        %v1217 = vadd.f32 %v1180, %v1216
        %s1218 = sld [smem:[#allocation5 + $0x20]]
        %v1219 = vstv %s1218
        %v1220 = vmul.f32 %v1219, %v1209
        %v1221 = vadd.f32 %v1184, %v1220
        %s1222 = sld [smem:[#allocation5 + $0x42]]
        %v1223 = vstv %s1222
        %v1224 = vmul.f32 %v1223, %v1209
        %v1225 = vadd.f32 %v1188, %v1224
        %s1226 = sld [smem:[#allocation5 + $0x43]]
        %v1227 = vstv %s1226
        %v1228 = vmul.f32 %v1227, %v1209
        %v1229 = vadd.f32 %v1192, %v1228
        %s1230 = sld [smem:[#allocation5 + $0x44]]
        %v1231 = vstv %s1230
        %v1232 = vmul.f32 %v1231, %v1209
        %v1233 = vadd.f32 %v1196, %v1232
        %s1234 = sld [smem:[#allocation5 + $0x66]]
        %v1235 = vstv %s1234
        %v1236 = vmul.f32 %v1235, %v1209
        %v1237 = vadd.f32 %v1200, %v1236
        %s1238 = sld [smem:[#allocation5 + $0x67]]
        %v1239 = vstv %s1238
        %v1240 = vmul.f32 %v1239, %v1209
        %v1241 = vadd.f32 %v1204, %v1240
        %s1242 = sld [smem:[#allocation5 + $0x68]]
        %v1243 = vstv %s1242
        %v1244 = vmul.f32 %v1243, %v1209
        %v1245 = vadd.f32 %v1208, %v1244
        %v1246 = vld [vmem:[#allocation3 + $0x11] sm:$0xff]
        %s1247 = sld [smem:[#allocation5 + $0x21]]
        %v1248 = vstv %s1247
        %v1249 = vmul.f32 %v1248, %v1246
        %v1250 = vadd.f32 %v1213, %v1249
        %s1251 = sld [smem:[#allocation5 + $0x22]]
        %v1252 = vstv %s1251
        %v1253 = vmul.f32 %v1252, %v1246
        %v1254 = vadd.f32 %v1217, %v1253
        %s1255 = sld [smem:[#allocation5 + $0x23]]
        %v1256 = vstv %s1255
        %v1257 = vmul.f32 %v1256, %v1246
        %v1258 = vadd.f32 %v1221, %v1257
        %s1259 = sld [smem:[#allocation5 + $0x45]]
        %v1260 = vstv %s1259
        %v1261 = vmul.f32 %v1260, %v1246
        %v1262 = vadd.f32 %v1225, %v1261
        %s1263 = sld [smem:[#allocation5 + $0x46]]
        %v1264 = vstv %s1263
        %v1265 = vmul.f32 %v1264, %v1246
        %v1266 = vadd.f32 %v1229, %v1265
        %s1267 = sld [smem:[#allocation5 + $0x47]]
        %v1268 = vstv %s1267
        %v1269 = vmul.f32 %v1268, %v1246
        %v1270 = vadd.f32 %v1233, %v1269
        %s1271 = sld [smem:[#allocation5 + $0x69]]
        %v1272 = vstv %s1271
        %v1273 = vmul.f32 %v1272, %v1246
        %v1274 = vadd.f32 %v1237, %v1273
        %s1275 = sld [smem:[#allocation5 + $0x6a]]
        %v1276 = vstv %s1275
        %v1277 = vmul.f32 %v1276, %v1246
        %v1278 = vadd.f32 %v1241, %v1277
        %s1279 = sld [smem:[#allocation5 + $0x6b]]
        %v1280 = vstv %s1279
        %v1281 = vmul.f32 %v1280, %v1246
        %v1282 = vadd.f32 %v1245, %v1281
        %1284 = vrot.lane.b32.xlu0 %v1250, 1
        %v1285 = vpop.permute.xlu0 %1284
        %v1287 = vsel %vm770, 0.0, %v1285
        %1289 = vrot.lane.b32.xlu0 %v1258, 127
        %v1290 = vpop.permute.xlu0 %1289
        %v1292 = vsel %vm776, %v1290, 0.0
        %v1293 = vadd.f32 %v1254, %v1287
        %v1294 = vadd.f32 %v1293, %v1292
        %v1295 = vsub.f32 0.0, %v1294
        %v1296 = vmul.f32 %v1295, 1.442695
        %v1297 = vpow.pop %v1296
        %v1298 = vadd.f32 %v1297, 1.0
        %v1299 = vrcp.pop %v1298
        %v1300 = vmul.f32 255.0, %v1299
        %v1301 = vmax.f32 %v1300, 0.0
        %v1302 = vmin.f32 %v1301, 255.0
        %1303 = vst [vmem:[%s162 + $0x8] sm:$0xff] %v1302
        %1305 = vrot.lane.b32.xlu0 %v1262, 1
        %v1306 = vpop.permute.xlu0 %1305
        %v1308 = vsel %vm770, 0.0, %v1306
        %1310 = vrot.lane.b32.xlu0 %v1270, 127
        %v1311 = vpop.permute.xlu0 %1310
        %v1313 = vsel %vm776, %v1311, 0.0
        %v1314 = vadd.f32 %v1266, %v1308
        %v1315 = vadd.f32 %v1314, %v1313
        %v1316 = vsub.f32 0.0, %v1315
        %v1317 = vmul.f32 %v1316, 1.442695
        %v1318 = vpow.pop %v1317
        %v1319 = vadd.f32 %v1318, 1.0
        %v1320 = vrcp.pop %v1319
        %v1321 = vmul.f32 255.0, %v1320
        %v1322 = vmax.f32 %v1321, 0.0
        %v1323 = vmin.f32 %v1322, 255.0
        %1324 = vst [vmem:[%s809 + $0x8] sm:$0xff] %v1323
        %1326 = vrot.lane.b32.xlu0 %v1274, 1
        %v1327 = vpop.permute.xlu0 %1326
        %v1329 = vsel %vm770, 0.0, %v1327
        %1331 = vrot.lane.b32.xlu0 %v1282, 127
        %v1332 = vpop.permute.xlu0 %1331
        %v1334 = vsel %vm776, %v1332, 0.0
        %v1335 = vadd.f32 %v1278, %v1329
        %v1336 = vadd.f32 %v1335, %v1334
        %v1337 = vsub.f32 0.0, %v1336
        %v1338 = vmul.f32 %v1337, 1.442695
        %v1339 = vpow.pop %v1338
        %v1340 = vadd.f32 %v1339, 1.0
        %v1341 = vrcp.pop %v1340
        %v1342 = vmul.f32 255.0, %v1341
        %v1343 = vmax.f32 %v1342, 0.0
        %v1344 = vmin.f32 %v1343, 255.0
        %1345 = vst [vmem:[%s831 + $0x8] sm:$0xff] %v1344
        %s1346 = sld [smem:[#allocation9]]
        %v1347 = vstv %s1346
        %s1348 = sld [smem:[#allocation9 + $0x1]]
        %v1349 = vstv %s1348
        %s1350 = sld [smem:[#allocation9 + $0x2]]
        %v1351 = vstv %s1350
        %v1352 = vld [vmem:[#allocation2 + $0x17] sm:$0xff]
        %s1353 = sld [smem:[#allocation5]]
        %v1354 = vstv %s1353
        %v1355 = vmul.f32 %v1354, %v1352
        %v1356 = vadd.f32 %v1355, 0.0
        %s1357 = sld [smem:[#allocation5 + $0x1]]
        %v1358 = vstv %s1357
        %v1359 = vmul.f32 %v1358, %v1352
        %v1360 = vadd.f32 %v1347, %v1359
        %s1361 = sld [smem:[#allocation5 + $0x2]]
        %v1362 = vstv %s1361
        %v1363 = vmul.f32 %v1362, %v1352
        %v1364 = vadd.f32 %v1363, 0.0
        %s1365 = sld [smem:[#allocation5 + $0x24]]
        %v1366 = vstv %s1365
        %v1367 = vmul.f32 %v1366, %v1352
        %v1368 = vadd.f32 %v1367, 0.0
        %s1369 = sld [smem:[#allocation5 + $0x25]]
        %v1370 = vstv %s1369
        %v1371 = vmul.f32 %v1370, %v1352
        %v1372 = vadd.f32 %v1349, %v1371
        %s1373 = sld [smem:[#allocation5 + $0x26]]
        %v1374 = vstv %s1373
        %v1375 = vmul.f32 %v1374, %v1352
        %v1376 = vadd.f32 %v1375, 0.0
        %s1377 = sld [smem:[#allocation5 + $0x48]]
        %v1378 = vstv %s1377
        %v1379 = vmul.f32 %v1378, %v1352
        %v1380 = vadd.f32 %v1379, 0.0
        %s1381 = sld [smem:[#allocation5 + $0x49]]
        %v1382 = vstv %s1381
        %v1383 = vmul.f32 %v1382, %v1352
        %v1384 = vadd.f32 %v1351, %v1383
        %s1385 = sld [smem:[#allocation5 + $0x4a]]
        %v1386 = vstv %s1385
        %v1387 = vmul.f32 %v1386, %v1352
        %v1388 = vadd.f32 %v1387, 0.0
        %v1389 = vld [vmem:[#allocation2 + $0x18] sm:$0xff]
        %s1390 = sld [smem:[#allocation5 + $0x3]]
        %v1391 = vstv %s1390
        %v1392 = vmul.f32 %v1391, %v1389
        %v1393 = vadd.f32 %v1356, %v1392
        %s1394 = sld [smem:[#allocation5 + $0x4]]
        %v1395 = vstv %s1394
        %v1396 = vmul.f32 %v1395, %v1389
        %v1397 = vadd.f32 %v1360, %v1396
        %s1398 = sld [smem:[#allocation5 + $0x5]]
        %v1399 = vstv %s1398
        %v1400 = vmul.f32 %v1399, %v1389
        %v1401 = vadd.f32 %v1364, %v1400
        %s1402 = sld [smem:[#allocation5 + $0x27]]
        %v1403 = vstv %s1402
        %v1404 = vmul.f32 %v1403, %v1389
        %v1405 = vadd.f32 %v1368, %v1404
        %s1406 = sld [smem:[#allocation5 + $0x28]]
        %v1407 = vstv %s1406
        %v1408 = vmul.f32 %v1407, %v1389
        %v1409 = vadd.f32 %v1372, %v1408
        %s1410 = sld [smem:[#allocation5 + $0x29]]
        %v1411 = vstv %s1410
        %v1412 = vmul.f32 %v1411, %v1389
        %v1413 = vadd.f32 %v1376, %v1412
        %s1414 = sld [smem:[#allocation5 + $0x4b]]
        %v1415 = vstv %s1414
        %v1416 = vmul.f32 %v1415, %v1389
        %v1417 = vadd.f32 %v1380, %v1416
        %s1418 = sld [smem:[#allocation5 + $0x4c]]
        %v1419 = vstv %s1418
        %v1420 = vmul.f32 %v1419, %v1389
        %v1421 = vadd.f32 %v1384, %v1420
        %s1422 = sld [smem:[#allocation5 + $0x4d]]
        %v1423 = vstv %s1422
        %v1424 = vmul.f32 %v1423, %v1389
        %v1425 = vadd.f32 %v1388, %v1424
        %v1426 = vld [vmem:[#allocation2 + $0x19] sm:$0xff]
        %s1427 = sld [smem:[#allocation5 + $0x6]]
        %v1428 = vstv %s1427
        %v1429 = vmul.f32 %v1428, %v1426
        %v1430 = vadd.f32 %v1393, %v1429
        %s1431 = sld [smem:[#allocation5 + $0x7]]
        %v1432 = vstv %s1431
        %v1433 = vmul.f32 %v1432, %v1426
        %v1434 = vadd.f32 %v1397, %v1433
        %s1435 = sld [smem:[#allocation5 + $0x8]]
        %v1436 = vstv %s1435
        %v1437 = vmul.f32 %v1436, %v1426
        %v1438 = vadd.f32 %v1401, %v1437
        %s1439 = sld [smem:[#allocation5 + $0x2a]]
        %v1440 = vstv %s1439
        %v1441 = vmul.f32 %v1440, %v1426
        %v1442 = vadd.f32 %v1405, %v1441
        %s1443 = sld [smem:[#allocation5 + $0x2b]]
        %v1444 = vstv %s1443
        %v1445 = vmul.f32 %v1444, %v1426
        %v1446 = vadd.f32 %v1409, %v1445
        %s1447 = sld [smem:[#allocation5 + $0x2c]]
        %v1448 = vstv %s1447
        %v1449 = vmul.f32 %v1448, %v1426
        %v1450 = vadd.f32 %v1413, %v1449
        %s1451 = sld [smem:[#allocation5 + $0x4e]]
        %v1452 = vstv %s1451
        %v1453 = vmul.f32 %v1452, %v1426
        %v1454 = vadd.f32 %v1417, %v1453
        %s1455 = sld [smem:[#allocation5 + $0x4f]]
        %v1456 = vstv %s1455
        %v1457 = vmul.f32 %v1456, %v1426
        %v1458 = vadd.f32 %v1421, %v1457
        %s1459 = sld [smem:[#allocation5 + $0x50]]
        %v1460 = vstv %s1459
        %v1461 = vmul.f32 %v1460, %v1426
        %v1462 = vadd.f32 %v1425, %v1461
        %v1463 = vld [vmem:[%s431 + $0x17] sm:$0xff]
        %s1464 = sld [smem:[#allocation5 + $0x9]]
        %v1465 = vstv %s1464
        %v1466 = vmul.f32 %v1465, %v1463
        %v1467 = vadd.f32 %v1430, %v1466
        %s1468 = sld [smem:[#allocation5 + $0xa]]
        %v1469 = vstv %s1468
        %v1470 = vmul.f32 %v1469, %v1463
        %v1471 = vadd.f32 %v1434, %v1470
        %s1472 = sld [smem:[#allocation5 + $0xb]]
        %v1473 = vstv %s1472
        %v1474 = vmul.f32 %v1473, %v1463
        %v1475 = vadd.f32 %v1438, %v1474
        %s1476 = sld [smem:[#allocation5 + $0x2d]]
        %v1477 = vstv %s1476
        %v1478 = vmul.f32 %v1477, %v1463
        %v1479 = vadd.f32 %v1442, %v1478
        %s1480 = sld [smem:[#allocation5 + $0x2e]]
        %v1481 = vstv %s1480
        %v1482 = vmul.f32 %v1481, %v1463
        %v1483 = vadd.f32 %v1446, %v1482
        %s1484 = sld [smem:[#allocation5 + $0x2f]]
        %v1485 = vstv %s1484
        %v1486 = vmul.f32 %v1485, %v1463
        %v1487 = vadd.f32 %v1450, %v1486
        %s1488 = sld [smem:[#allocation5 + $0x51]]
        %v1489 = vstv %s1488
        %v1490 = vmul.f32 %v1489, %v1463
        %v1491 = vadd.f32 %v1454, %v1490
        %s1492 = sld [smem:[#allocation5 + $0x52]]
        %v1493 = vstv %s1492
        %v1494 = vmul.f32 %v1493, %v1463
        %v1495 = vadd.f32 %v1458, %v1494
        %s1496 = sld [smem:[#allocation5 + $0x53]]
        %v1497 = vstv %s1496
        %v1498 = vmul.f32 %v1497, %v1463
        %v1499 = vadd.f32 %v1462, %v1498
        %v1500 = vld [vmem:[%s431 + $0x18] sm:$0xff]
        %s1501 = sld [smem:[#allocation5 + $0xc]]
        %v1502 = vstv %s1501
        %v1503 = vmul.f32 %v1502, %v1500
        %v1504 = vadd.f32 %v1467, %v1503
        %s1505 = sld [smem:[#allocation5 + $0xd]]
        %v1506 = vstv %s1505
        %v1507 = vmul.f32 %v1506, %v1500
        %v1508 = vadd.f32 %v1471, %v1507
        %s1509 = sld [smem:[#allocation5 + $0xe]]
        %v1510 = vstv %s1509
        %v1511 = vmul.f32 %v1510, %v1500
        %v1512 = vadd.f32 %v1475, %v1511
        %s1513 = sld [smem:[#allocation5 + $0x30]]
        %v1514 = vstv %s1513
        %v1515 = vmul.f32 %v1514, %v1500
        %v1516 = vadd.f32 %v1479, %v1515
        %s1517 = sld [smem:[#allocation5 + $0x31]]
        %v1518 = vstv %s1517
        %v1519 = vmul.f32 %v1518, %v1500
        %v1520 = vadd.f32 %v1483, %v1519
        %s1521 = sld [smem:[#allocation5 + $0x32]]
        %v1522 = vstv %s1521
        %v1523 = vmul.f32 %v1522, %v1500
        %v1524 = vadd.f32 %v1487, %v1523
        %s1525 = sld [smem:[#allocation5 + $0x54]]
        %v1526 = vstv %s1525
        %v1527 = vmul.f32 %v1526, %v1500
        %v1528 = vadd.f32 %v1491, %v1527
        %s1529 = sld [smem:[#allocation5 + $0x55]]
        %v1530 = vstv %s1529
        %v1531 = vmul.f32 %v1530, %v1500
        %v1532 = vadd.f32 %v1495, %v1531
        %s1533 = sld [smem:[#allocation5 + $0x56]]
        %v1534 = vstv %s1533
        %v1535 = vmul.f32 %v1534, %v1500
        %v1536 = vadd.f32 %v1499, %v1535
        %v1537 = vld [vmem:[%s431 + $0x19] sm:$0xff]
        %s1538 = sld [smem:[#allocation5 + $0xf]]
        %v1539 = vstv %s1538
        %v1540 = vmul.f32 %v1539, %v1537
        %v1541 = vadd.f32 %v1504, %v1540
        %s1542 = sld [smem:[#allocation5 + $0x10]]
        %v1543 = vstv %s1542
        %v1544 = vmul.f32 %v1543, %v1537
        %v1545 = vadd.f32 %v1508, %v1544
        %s1546 = sld [smem:[#allocation5 + $0x11]]
        %v1547 = vstv %s1546
        %v1548 = vmul.f32 %v1547, %v1537
        %v1549 = vadd.f32 %v1512, %v1548
        %s1550 = sld [smem:[#allocation5 + $0x33]]
        %v1551 = vstv %s1550
        %v1552 = vmul.f32 %v1551, %v1537
        %v1553 = vadd.f32 %v1516, %v1552
        %s1554 = sld [smem:[#allocation5 + $0x34]]
        %v1555 = vstv %s1554
        %v1556 = vmul.f32 %v1555, %v1537
        %v1557 = vadd.f32 %v1520, %v1556
        %s1558 = sld [smem:[#allocation5 + $0x35]]
        %v1559 = vstv %s1558
        %v1560 = vmul.f32 %v1559, %v1537
        %v1561 = vadd.f32 %v1524, %v1560
        %s1562 = sld [smem:[#allocation5 + $0x57]]
        %v1563 = vstv %s1562
        %v1564 = vmul.f32 %v1563, %v1537
        %v1565 = vadd.f32 %v1528, %v1564
        %s1566 = sld [smem:[#allocation5 + $0x58]]
        %v1567 = vstv %s1566
        %v1568 = vmul.f32 %v1567, %v1537
        %v1569 = vadd.f32 %v1532, %v1568
        %s1570 = sld [smem:[#allocation5 + $0x59]]
        %v1571 = vstv %s1570
        %v1572 = vmul.f32 %v1571, %v1537
        %v1573 = vadd.f32 %v1536, %v1572
        %v1574 = vld [vmem:[%s543 + $0x17] sm:$0xff]
        %s1575 = sld [smem:[#allocation5 + $0x12]]
        %v1576 = vstv %s1575
        %v1577 = vmul.f32 %v1576, %v1574
        %v1578 = vadd.f32 %v1541, %v1577
        %s1579 = sld [smem:[#allocation5 + $0x13]]
        %v1580 = vstv %s1579
        %v1581 = vmul.f32 %v1580, %v1574
        %v1582 = vadd.f32 %v1545, %v1581
        %s1583 = sld [smem:[#allocation5 + $0x14]]
        %v1584 = vstv %s1583
        %v1585 = vmul.f32 %v1584, %v1574
        %v1586 = vadd.f32 %v1549, %v1585
        %s1587 = sld [smem:[#allocation5 + $0x36]]
        %v1588 = vstv %s1587
        %v1589 = vmul.f32 %v1588, %v1574
        %v1590 = vadd.f32 %v1553, %v1589
        %s1591 = sld [smem:[#allocation5 + $0x37]]
        %v1592 = vstv %s1591
        %v1593 = vmul.f32 %v1592, %v1574
        %v1594 = vadd.f32 %v1557, %v1593
        %s1595 = sld [smem:[#allocation5 + $0x38]]
        %v1596 = vstv %s1595
        %v1597 = vmul.f32 %v1596, %v1574
        %v1598 = vadd.f32 %v1561, %v1597
        %s1599 = sld [smem:[#allocation5 + $0x5a]]
        %v1600 = vstv %s1599
        %v1601 = vmul.f32 %v1600, %v1574
        %v1602 = vadd.f32 %v1565, %v1601
        %s1603 = sld [smem:[#allocation5 + $0x5b]]
        %v1604 = vstv %s1603
        %v1605 = vmul.f32 %v1604, %v1574
        %v1606 = vadd.f32 %v1569, %v1605
        %s1607 = sld [smem:[#allocation5 + $0x5c]]
        %v1608 = vstv %s1607
        %v1609 = vmul.f32 %v1608, %v1574
        %v1610 = vadd.f32 %v1573, %v1609
        %v1611 = vld [vmem:[%s543 + $0x18] sm:$0xff]
        %s1612 = sld [smem:[#allocation5 + $0x15]]
        %v1613 = vstv %s1612
        %v1614 = vmul.f32 %v1613, %v1611
        %v1615 = vadd.f32 %v1578, %v1614
        %s1616 = sld [smem:[#allocation5 + $0x16]]
        %v1617 = vstv %s1616
        %v1618 = vmul.f32 %v1617, %v1611
        %v1619 = vadd.f32 %v1582, %v1618
        %s1620 = sld [smem:[#allocation5 + $0x17]]
        %v1621 = vstv %s1620
        %v1622 = vmul.f32 %v1621, %v1611
        %v1623 = vadd.f32 %v1586, %v1622
        %s1624 = sld [smem:[#allocation5 + $0x39]]
        %v1625 = vstv %s1624
        %v1626 = vmul.f32 %v1625, %v1611
        %v1627 = vadd.f32 %v1590, %v1626
        %s1628 = sld [smem:[#allocation5 + $0x3a]]
        %v1629 = vstv %s1628
        %v1630 = vmul.f32 %v1629, %v1611
        %v1631 = vadd.f32 %v1594, %v1630
        %s1632 = sld [smem:[#allocation5 + $0x3b]]
        %v1633 = vstv %s1632
        %v1634 = vmul.f32 %v1633, %v1611
        %v1635 = vadd.f32 %v1598, %v1634
        %s1636 = sld [smem:[#allocation5 + $0x5d]]
        %v1637 = vstv %s1636
        %v1638 = vmul.f32 %v1637, %v1611
        %v1639 = vadd.f32 %v1602, %v1638
        %s1640 = sld [smem:[#allocation5 + $0x5e]]
        %v1641 = vstv %s1640
        %v1642 = vmul.f32 %v1641, %v1611
        %v1643 = vadd.f32 %v1606, %v1642
        %s1644 = sld [smem:[#allocation5 + $0x5f]]
        %v1645 = vstv %s1644
        %v1646 = vmul.f32 %v1645, %v1611
        %v1647 = vadd.f32 %v1610, %v1646
        %v1648 = vld [vmem:[%s543 + $0x19] sm:$0xff]
        %s1649 = sld [smem:[#allocation5 + $0x18]]
        %v1650 = vstv %s1649
        %v1651 = vmul.f32 %v1650, %v1648
        %v1652 = vadd.f32 %v1615, %v1651
        %s1653 = sld [smem:[#allocation5 + $0x19]]
        %v1654 = vstv %s1653
        %v1655 = vmul.f32 %v1654, %v1648
        %v1656 = vadd.f32 %v1619, %v1655
        %s1657 = sld [smem:[#allocation5 + $0x1a]]
        %v1658 = vstv %s1657
        %v1659 = vmul.f32 %v1658, %v1648
        %v1660 = vadd.f32 %v1623, %v1659
        %s1661 = sld [smem:[#allocation5 + $0x3c]]
        %v1662 = vstv %s1661
        %v1663 = vmul.f32 %v1662, %v1648
        %v1664 = vadd.f32 %v1627, %v1663
        %s1665 = sld [smem:[#allocation5 + $0x3d]]
        %v1666 = vstv %s1665
        %v1667 = vmul.f32 %v1666, %v1648
        %v1668 = vadd.f32 %v1631, %v1667
        %s1669 = sld [smem:[#allocation5 + $0x3e]]
        %v1670 = vstv %s1669
        %v1671 = vmul.f32 %v1670, %v1648
        %v1672 = vadd.f32 %v1635, %v1671
        %s1673 = sld [smem:[#allocation5 + $0x60]]
        %v1674 = vstv %s1673
        %v1675 = vmul.f32 %v1674, %v1648
        %v1676 = vadd.f32 %v1639, %v1675
        %s1677 = sld [smem:[#allocation5 + $0x61]]
        %v1678 = vstv %s1677
        %v1679 = vmul.f32 %v1678, %v1648
        %v1680 = vadd.f32 %v1643, %v1679
        %s1681 = sld [smem:[#allocation5 + $0x62]]
        %v1682 = vstv %s1681
        %v1683 = vmul.f32 %v1682, %v1648
        %v1684 = vadd.f32 %v1647, %v1683
        %v1685 = vld [vmem:[#allocation3 + $0x17] sm:$0xff]
        %s1686 = sld [smem:[#allocation5 + $0x1b]]
        %v1687 = vstv %s1686
        %v1688 = vmul.f32 %v1687, %v1685
        %v1689 = vadd.f32 %v1652, %v1688
        %s1690 = sld [smem:[#allocation5 + $0x1c]]
        %v1691 = vstv %s1690
        %v1692 = vmul.f32 %v1691, %v1685
        %v1693 = vadd.f32 %v1656, %v1692
        %s1694 = sld [smem:[#allocation5 + $0x1d]]
        %v1695 = vstv %s1694
        %v1696 = vmul.f32 %v1695, %v1685
        %v1697 = vadd.f32 %v1660, %v1696
        %s1698 = sld [smem:[#allocation5 + $0x3f]]
        %v1699 = vstv %s1698
        %v1700 = vmul.f32 %v1699, %v1685
        %v1701 = vadd.f32 %v1664, %v1700
        %s1702 = sld [smem:[#allocation5 + $0x40]]
        %v1703 = vstv %s1702
        %v1704 = vmul.f32 %v1703, %v1685
        %v1705 = vadd.f32 %v1668, %v1704
        %s1706 = sld [smem:[#allocation5 + $0x41]]
        %v1707 = vstv %s1706
        %v1708 = vmul.f32 %v1707, %v1685
        %v1709 = vadd.f32 %v1672, %v1708
        %s1710 = sld [smem:[#allocation5 + $0x63]]
        %v1711 = vstv %s1710
        %v1712 = vmul.f32 %v1711, %v1685
        %v1713 = vadd.f32 %v1676, %v1712
        %s1714 = sld [smem:[#allocation5 + $0x64]]
        %v1715 = vstv %s1714
        %v1716 = vmul.f32 %v1715, %v1685
        %v1717 = vadd.f32 %v1680, %v1716
        %s1718 = sld [smem:[#allocation5 + $0x65]]
        %v1719 = vstv %s1718
        %v1720 = vmul.f32 %v1719, %v1685
        %v1721 = vadd.f32 %v1684, %v1720
        %v1722 = vld [vmem:[#allocation3 + $0x18] sm:$0xff]
        %s1723 = sld [smem:[#allocation5 + $0x1e]]
        %v1724 = vstv %s1723
        %v1725 = vmul.f32 %v1724, %v1722
        %v1726 = vadd.f32 %v1689, %v1725
        %s1727 = sld [smem:[#allocation5 + $0x1f]]
        %v1728 = vstv %s1727
        %v1729 = vmul.f32 %v1728, %v1722
        %v1730 = vadd.f32 %v1693, %v1729
        %s1731 = sld [smem:[#allocation5 + $0x20]]
        %v1732 = vstv %s1731
        %v1733 = vmul.f32 %v1732, %v1722
        %v1734 = vadd.f32 %v1697, %v1733
        %s1735 = sld [smem:[#allocation5 + $0x42]]
        %v1736 = vstv %s1735
        %v1737 = vmul.f32 %v1736, %v1722
        %v1738 = vadd.f32 %v1701, %v1737
        %s1739 = sld [smem:[#allocation5 + $0x43]]
        %v1740 = vstv %s1739
        %v1741 = vmul.f32 %v1740, %v1722
        %v1742 = vadd.f32 %v1705, %v1741
        %s1743 = sld [smem:[#allocation5 + $0x44]]
        %v1744 = vstv %s1743
        %v1745 = vmul.f32 %v1744, %v1722
        %v1746 = vadd.f32 %v1709, %v1745
        %s1747 = sld [smem:[#allocation5 + $0x66]]
        %v1748 = vstv %s1747
        %v1749 = vmul.f32 %v1748, %v1722
        %v1750 = vadd.f32 %v1713, %v1749
        %s1751 = sld [smem:[#allocation5 + $0x67]]
        %v1752 = vstv %s1751
        %v1753 = vmul.f32 %v1752, %v1722
        %v1754 = vadd.f32 %v1717, %v1753
        %s1755 = sld [smem:[#allocation5 + $0x68]]
        %v1756 = vstv %s1755
        %v1757 = vmul.f32 %v1756, %v1722
        %v1758 = vadd.f32 %v1721, %v1757
        %v1759 = vld [vmem:[#allocation3 + $0x19] sm:$0xff]
        %s1760 = sld [smem:[#allocation5 + $0x21]]
        %v1761 = vstv %s1760
        %v1762 = vmul.f32 %v1761, %v1759
        %v1763 = vadd.f32 %v1726, %v1762
        %s1764 = sld [smem:[#allocation5 + $0x22]]
        %v1765 = vstv %s1764
        %v1766 = vmul.f32 %v1765, %v1759
        %v1767 = vadd.f32 %v1730, %v1766
        %s1768 = sld [smem:[#allocation5 + $0x23]]
        %v1769 = vstv %s1768
        %v1770 = vmul.f32 %v1769, %v1759
        %v1771 = vadd.f32 %v1734, %v1770
        %s1772 = sld [smem:[#allocation5 + $0x45]]
        %v1773 = vstv %s1772
        %v1774 = vmul.f32 %v1773, %v1759
        %v1775 = vadd.f32 %v1738, %v1774
        %s1776 = sld [smem:[#allocation5 + $0x46]]
        %v1777 = vstv %s1776
        %v1778 = vmul.f32 %v1777, %v1759
        %v1779 = vadd.f32 %v1742, %v1778
        %s1780 = sld [smem:[#allocation5 + $0x47]]
        %v1781 = vstv %s1780
        %v1782 = vmul.f32 %v1781, %v1759
        %v1783 = vadd.f32 %v1746, %v1782
        %s1784 = sld [smem:[#allocation5 + $0x69]]
        %v1785 = vstv %s1784
        %v1786 = vmul.f32 %v1785, %v1759
        %v1787 = vadd.f32 %v1750, %v1786
        %s1788 = sld [smem:[#allocation5 + $0x6a]]
        %v1789 = vstv %s1788
        %v1790 = vmul.f32 %v1789, %v1759
        %v1791 = vadd.f32 %v1754, %v1790
        %s1792 = sld [smem:[#allocation5 + $0x6b]]
        %v1793 = vstv %s1792
        %v1794 = vmul.f32 %v1793, %v1759
        %v1795 = vadd.f32 %v1758, %v1794
        %1797 = vrot.lane.b32.xlu0 %v1763, 1
        %v1798 = vpop.permute.xlu0 %1797
        %v1800 = vsel %vm770, 0.0, %v1798
        %1802 = vrot.lane.b32.xlu0 %v1771, 127
        %v1803 = vpop.permute.xlu0 %1802
        %v1805 = vsel %vm776, %v1803, 0.0
        %v1806 = vadd.f32 %v1767, %v1800
        %v1807 = vadd.f32 %v1806, %v1805
        %v1808 = vsub.f32 0.0, %v1807
        %v1809 = vmul.f32 %v1808, 1.442695
        %v1810 = vpow.pop %v1809
        %v1811 = vadd.f32 %v1810, 1.0
        %v1812 = vrcp.pop %v1811
        %v1813 = vmul.f32 255.0, %v1812
        %v1814 = vmax.f32 %v1813, 0.0
        %v1815 = vmin.f32 %v1814, 255.0
        %1816 = vst [vmem:[%s162 + $0x10] sm:$0xff] %v1815
        %1818 = vrot.lane.b32.xlu0 %v1775, 1
        %v1819 = vpop.permute.xlu0 %1818
        %v1821 = vsel %vm770, 0.0, %v1819
        %1823 = vrot.lane.b32.xlu0 %v1783, 127
        %v1824 = vpop.permute.xlu0 %1823
        %v1826 = vsel %vm776, %v1824, 0.0
        %v1827 = vadd.f32 %v1779, %v1821
        %v1828 = vadd.f32 %v1827, %v1826
        %v1829 = vsub.f32 0.0, %v1828
        %v1830 = vmul.f32 %v1829, 1.442695
        %v1831 = vpow.pop %v1830
        %v1832 = vadd.f32 %v1831, 1.0
        %v1833 = vrcp.pop %v1832
        %v1834 = vmul.f32 255.0, %v1833
        %v1835 = vmax.f32 %v1834, 0.0
        %v1836 = vmin.f32 %v1835, 255.0
        %1837 = vst [vmem:[%s809 + $0x10] sm:$0xff] %v1836
        %1839 = vrot.lane.b32.xlu0 %v1787, 1
        %v1840 = vpop.permute.xlu0 %1839
        %v1842 = vsel %vm770, 0.0, %v1840
        %1844 = vrot.lane.b32.xlu0 %v1795, 127
        %v1845 = vpop.permute.xlu0 %1844
        %v1847 = vsel %vm776, %v1845, 0.0
        %v1848 = vadd.f32 %v1791, %v1842
        %v1849 = vadd.f32 %v1848, %v1847
        %v1850 = vsub.f32 0.0, %v1849
        %v1851 = vmul.f32 %v1850, 1.442695
        %v1852 = vpow.pop %v1851
        %v1853 = vadd.f32 %v1852, 1.0
        %v1854 = vrcp.pop %v1853
        %v1855 = vmul.f32 255.0, %v1854
        %v1856 = vmax.f32 %v1855, 0.0
        %v1857 = vmin.f32 %v1856, 255.0
        %1858 = vst [vmem:[%s831 + $0x10] sm:$0xff] %v1857
        %s1859 = sld [smem:[#allocation9]]
        %v1860 = vstv %s1859
        %s1861 = sld [smem:[#allocation9 + $0x1]]
        %v1862 = vstv %s1861
        %s1863 = sld [smem:[#allocation9 + $0x2]]
        %v1864 = vstv %s1863
        %v1865 = vld [vmem:[#allocation2 + $0x1f] sm:$0xff]
        %s1866 = sld [smem:[#allocation5]]
        %v1867 = vstv %s1866
        %v1868 = vmul.f32 %v1867, %v1865
        %v1869 = vadd.f32 %v1868, 0.0
        %s1870 = sld [smem:[#allocation5 + $0x1]]
        %v1871 = vstv %s1870
        %v1872 = vmul.f32 %v1871, %v1865
        %v1873 = vadd.f32 %v1860, %v1872
        %s1874 = sld [smem:[#allocation5 + $0x2]]
        %v1875 = vstv %s1874
        %v1876 = vmul.f32 %v1875, %v1865
        %v1877 = vadd.f32 %v1876, 0.0
        %s1878 = sld [smem:[#allocation5 + $0x24]]
        %v1879 = vstv %s1878
        %v1880 = vmul.f32 %v1879, %v1865
        %v1881 = vadd.f32 %v1880, 0.0
        %s1882 = sld [smem:[#allocation5 + $0x25]]
        %v1883 = vstv %s1882
        %v1884 = vmul.f32 %v1883, %v1865
        %v1885 = vadd.f32 %v1862, %v1884
        %s1886 = sld [smem:[#allocation5 + $0x26]]
        %v1887 = vstv %s1886
        %v1888 = vmul.f32 %v1887, %v1865
        %v1889 = vadd.f32 %v1888, 0.0
        %s1890 = sld [smem:[#allocation5 + $0x48]]
        %v1891 = vstv %s1890
        %v1892 = vmul.f32 %v1891, %v1865
        %v1893 = vadd.f32 %v1892, 0.0
        %s1894 = sld [smem:[#allocation5 + $0x49]]
        %v1895 = vstv %s1894
        %v1896 = vmul.f32 %v1895, %v1865
        %v1897 = vadd.f32 %v1864, %v1896
        %s1898 = sld [smem:[#allocation5 + $0x4a]]
        %v1899 = vstv %s1898
        %v1900 = vmul.f32 %v1899, %v1865
        %v1901 = vadd.f32 %v1900, 0.0
        %v1902 = vld [vmem:[#allocation2 + $0x20] sm:$0xff]
        %s1903 = sld [smem:[#allocation5 + $0x3]]
        %v1904 = vstv %s1903
        %v1905 = vmul.f32 %v1904, %v1902
        %v1906 = vadd.f32 %v1869, %v1905
        %s1907 = sld [smem:[#allocation5 + $0x4]]
        %v1908 = vstv %s1907
        %v1909 = vmul.f32 %v1908, %v1902
        %v1910 = vadd.f32 %v1873, %v1909
        %s1911 = sld [smem:[#allocation5 + $0x5]]
        %v1912 = vstv %s1911
        %v1913 = vmul.f32 %v1912, %v1902
        %v1914 = vadd.f32 %v1877, %v1913
        %s1915 = sld [smem:[#allocation5 + $0x27]]
        %v1916 = vstv %s1915
        %v1917 = vmul.f32 %v1916, %v1902
        %v1918 = vadd.f32 %v1881, %v1917
        %s1919 = sld [smem:[#allocation5 + $0x28]]
        %v1920 = vstv %s1919
        %v1921 = vmul.f32 %v1920, %v1902
        %v1922 = vadd.f32 %v1885, %v1921
        %s1923 = sld [smem:[#allocation5 + $0x29]]
        %v1924 = vstv %s1923
        %v1925 = vmul.f32 %v1924, %v1902
        %v1926 = vadd.f32 %v1889, %v1925
        %s1927 = sld [smem:[#allocation5 + $0x4b]]
        %v1928 = vstv %s1927
        %v1929 = vmul.f32 %v1928, %v1902
        %v1930 = vadd.f32 %v1893, %v1929
        %s1931 = sld [smem:[#allocation5 + $0x4c]]
        %v1932 = vstv %s1931
        %v1933 = vmul.f32 %v1932, %v1902
        %v1934 = vadd.f32 %v1897, %v1933
        %s1935 = sld [smem:[#allocation5 + $0x4d]]
        %v1936 = vstv %s1935
        %v1937 = vmul.f32 %v1936, %v1902
        %v1938 = vadd.f32 %v1901, %v1937
        %v1939 = vld [vmem:[#allocation2 + $0x21] sm:$0xff]
        %s1940 = sld [smem:[#allocation5 + $0x6]]
        %v1941 = vstv %s1940
        %v1942 = vmul.f32 %v1941, %v1939
        %v1943 = vadd.f32 %v1906, %v1942
        %s1944 = sld [smem:[#allocation5 + $0x7]]
        %v1945 = vstv %s1944
        %v1946 = vmul.f32 %v1945, %v1939
        %v1947 = vadd.f32 %v1910, %v1946
        %s1948 = sld [smem:[#allocation5 + $0x8]]
        %v1949 = vstv %s1948
        %v1950 = vmul.f32 %v1949, %v1939
        %v1951 = vadd.f32 %v1914, %v1950
        %s1952 = sld [smem:[#allocation5 + $0x2a]]
        %v1953 = vstv %s1952
        %v1954 = vmul.f32 %v1953, %v1939
        %v1955 = vadd.f32 %v1918, %v1954
        %s1956 = sld [smem:[#allocation5 + $0x2b]]
        %v1957 = vstv %s1956
        %v1958 = vmul.f32 %v1957, %v1939
        %v1959 = vadd.f32 %v1922, %v1958
        %s1960 = sld [smem:[#allocation5 + $0x2c]]
        %v1961 = vstv %s1960
        %v1962 = vmul.f32 %v1961, %v1939
        %v1963 = vadd.f32 %v1926, %v1962
        %s1964 = sld [smem:[#allocation5 + $0x4e]]
        %v1965 = vstv %s1964
        %v1966 = vmul.f32 %v1965, %v1939
        %v1967 = vadd.f32 %v1930, %v1966
        %s1968 = sld [smem:[#allocation5 + $0x4f]]
        %v1969 = vstv %s1968
        %v1970 = vmul.f32 %v1969, %v1939
        %v1971 = vadd.f32 %v1934, %v1970
        %s1972 = sld [smem:[#allocation5 + $0x50]]
        %v1973 = vstv %s1972
        %v1974 = vmul.f32 %v1973, %v1939
        %v1975 = vadd.f32 %v1938, %v1974
        %v1976 = vld [vmem:[%s431 + $0x1f] sm:$0xff]
        %s1977 = sld [smem:[#allocation5 + $0x9]]
        %v1978 = vstv %s1977
        %v1979 = vmul.f32 %v1978, %v1976
        %v1980 = vadd.f32 %v1943, %v1979
        %s1981 = sld [smem:[#allocation5 + $0xa]]
        %v1982 = vstv %s1981
        %v1983 = vmul.f32 %v1982, %v1976
        %v1984 = vadd.f32 %v1947, %v1983
        %s1985 = sld [smem:[#allocation5 + $0xb]]
        %v1986 = vstv %s1985
        %v1987 = vmul.f32 %v1986, %v1976
        %v1988 = vadd.f32 %v1951, %v1987
        %s1989 = sld [smem:[#allocation5 + $0x2d]]
        %v1990 = vstv %s1989
        %v1991 = vmul.f32 %v1990, %v1976
        %v1992 = vadd.f32 %v1955, %v1991
        %s1993 = sld [smem:[#allocation5 + $0x2e]]
        %v1994 = vstv %s1993
        %v1995 = vmul.f32 %v1994, %v1976
        %v1996 = vadd.f32 %v1959, %v1995
        %s1997 = sld [smem:[#allocation5 + $0x2f]]
        %v1998 = vstv %s1997
        %v1999 = vmul.f32 %v1998, %v1976
        %v2000 = vadd.f32 %v1963, %v1999
        %s2001 = sld [smem:[#allocation5 + $0x51]]
        %v2002 = vstv %s2001
        %v2003 = vmul.f32 %v2002, %v1976
        %v2004 = vadd.f32 %v1967, %v2003
        %s2005 = sld [smem:[#allocation5 + $0x52]]
        %v2006 = vstv %s2005
        %v2007 = vmul.f32 %v2006, %v1976
        %v2008 = vadd.f32 %v1971, %v2007
        %s2009 = sld [smem:[#allocation5 + $0x53]]
        %v2010 = vstv %s2009
        %v2011 = vmul.f32 %v2010, %v1976
        %v2012 = vadd.f32 %v1975, %v2011
        %v2013 = vld [vmem:[%s431 + $0x20] sm:$0xff]
        %s2014 = sld [smem:[#allocation5 + $0xc]]
        %v2015 = vstv %s2014
        %v2016 = vmul.f32 %v2015, %v2013
        %v2017 = vadd.f32 %v1980, %v2016
        %s2018 = sld [smem:[#allocation5 + $0xd]]
        %v2019 = vstv %s2018
        %v2020 = vmul.f32 %v2019, %v2013
        %v2021 = vadd.f32 %v1984, %v2020
        %s2022 = sld [smem:[#allocation5 + $0xe]]
        %v2023 = vstv %s2022
        %v2024 = vmul.f32 %v2023, %v2013
        %v2025 = vadd.f32 %v1988, %v2024
        %s2026 = sld [smem:[#allocation5 + $0x30]]
        %v2027 = vstv %s2026
        %v2028 = vmul.f32 %v2027, %v2013
        %v2029 = vadd.f32 %v1992, %v2028
        %s2030 = sld [smem:[#allocation5 + $0x31]]
        %v2031 = vstv %s2030
        %v2032 = vmul.f32 %v2031, %v2013
        %v2033 = vadd.f32 %v1996, %v2032
        %s2034 = sld [smem:[#allocation5 + $0x32]]
        %v2035 = vstv %s2034
        %v2036 = vmul.f32 %v2035, %v2013
        %v2037 = vadd.f32 %v2000, %v2036
        %s2038 = sld [smem:[#allocation5 + $0x54]]
        %v2039 = vstv %s2038
        %v2040 = vmul.f32 %v2039, %v2013
        %v2041 = vadd.f32 %v2004, %v2040
        %s2042 = sld [smem:[#allocation5 + $0x55]]
        %v2043 = vstv %s2042
        %v2044 = vmul.f32 %v2043, %v2013
        %v2045 = vadd.f32 %v2008, %v2044
        %s2046 = sld [smem:[#allocation5 + $0x56]]
        %v2047 = vstv %s2046
        %v2048 = vmul.f32 %v2047, %v2013
        %v2049 = vadd.f32 %v2012, %v2048
        %v2050 = vld [vmem:[%s431 + $0x21] sm:$0xff]
        %s2051 = sld [smem:[#allocation5 + $0xf]]
        %v2052 = vstv %s2051
        %v2053 = vmul.f32 %v2052, %v2050
        %v2054 = vadd.f32 %v2017, %v2053
        %s2055 = sld [smem:[#allocation5 + $0x10]]
        %v2056 = vstv %s2055
        %v2057 = vmul.f32 %v2056, %v2050
        %v2058 = vadd.f32 %v2021, %v2057
        %s2059 = sld [smem:[#allocation5 + $0x11]]
        %v2060 = vstv %s2059
        %v2061 = vmul.f32 %v2060, %v2050
        %v2062 = vadd.f32 %v2025, %v2061
        %s2063 = sld [smem:[#allocation5 + $0x33]]
        %v2064 = vstv %s2063
        %v2065 = vmul.f32 %v2064, %v2050
        %v2066 = vadd.f32 %v2029, %v2065
        %s2067 = sld [smem:[#allocation5 + $0x34]]
        %v2068 = vstv %s2067
        %v2069 = vmul.f32 %v2068, %v2050
        %v2070 = vadd.f32 %v2033, %v2069
        %s2071 = sld [smem:[#allocation5 + $0x35]]
        %v2072 = vstv %s2071
        %v2073 = vmul.f32 %v2072, %v2050
        %v2074 = vadd.f32 %v2037, %v2073
        %s2075 = sld [smem:[#allocation5 + $0x57]]
        %v2076 = vstv %s2075
        %v2077 = vmul.f32 %v2076, %v2050
        %v2078 = vadd.f32 %v2041, %v2077
        %s2079 = sld [smem:[#allocation5 + $0x58]]
        %v2080 = vstv %s2079
        %v2081 = vmul.f32 %v2080, %v2050
        %v2082 = vadd.f32 %v2045, %v2081
        %s2083 = sld [smem:[#allocation5 + $0x59]]
        %v2084 = vstv %s2083
        %v2085 = vmul.f32 %v2084, %v2050
        %v2086 = vadd.f32 %v2049, %v2085
        %v2087 = vld [vmem:[%s543 + $0x1f] sm:$0xff]
        %s2088 = sld [smem:[#allocation5 + $0x12]]
        %v2089 = vstv %s2088
        %v2090 = vmul.f32 %v2089, %v2087
        %v2091 = vadd.f32 %v2054, %v2090
        %s2092 = sld [smem:[#allocation5 + $0x13]]
        %v2093 = vstv %s2092
        %v2094 = vmul.f32 %v2093, %v2087
        %v2095 = vadd.f32 %v2058, %v2094
        %s2096 = sld [smem:[#allocation5 + $0x14]]
        %v2097 = vstv %s2096
        %v2098 = vmul.f32 %v2097, %v2087
        %v2099 = vadd.f32 %v2062, %v2098
        %s2100 = sld [smem:[#allocation5 + $0x36]]
        %v2101 = vstv %s2100
        %v2102 = vmul.f32 %v2101, %v2087
        %v2103 = vadd.f32 %v2066, %v2102
        %s2104 = sld [smem:[#allocation5 + $0x37]]
        %v2105 = vstv %s2104
        %v2106 = vmul.f32 %v2105, %v2087
        %v2107 = vadd.f32 %v2070, %v2106
        %s2108 = sld [smem:[#allocation5 + $0x38]]
        %v2109 = vstv %s2108
        %v2110 = vmul.f32 %v2109, %v2087
        %v2111 = vadd.f32 %v2074, %v2110
        %s2112 = sld [smem:[#allocation5 + $0x5a]]
        %v2113 = vstv %s2112
        %v2114 = vmul.f32 %v2113, %v2087
        %v2115 = vadd.f32 %v2078, %v2114
        %s2116 = sld [smem:[#allocation5 + $0x5b]]
        %v2117 = vstv %s2116
        %v2118 = vmul.f32 %v2117, %v2087
        %v2119 = vadd.f32 %v2082, %v2118
        %s2120 = sld [smem:[#allocation5 + $0x5c]]
        %v2121 = vstv %s2120
        %v2122 = vmul.f32 %v2121, %v2087
        %v2123 = vadd.f32 %v2086, %v2122
        %v2124 = vld [vmem:[%s543 + $0x20] sm:$0xff]
        %s2125 = sld [smem:[#allocation5 + $0x15]]
        %v2126 = vstv %s2125
        %v2127 = vmul.f32 %v2126, %v2124
        %v2128 = vadd.f32 %v2091, %v2127
        %s2129 = sld [smem:[#allocation5 + $0x16]]
        %v2130 = vstv %s2129
        %v2131 = vmul.f32 %v2130, %v2124
        %v2132 = vadd.f32 %v2095, %v2131
        %s2133 = sld [smem:[#allocation5 + $0x17]]
        %v2134 = vstv %s2133
        %v2135 = vmul.f32 %v2134, %v2124
        %v2136 = vadd.f32 %v2099, %v2135
        %s2137 = sld [smem:[#allocation5 + $0x39]]
        %v2138 = vstv %s2137
        %v2139 = vmul.f32 %v2138, %v2124
        %v2140 = vadd.f32 %v2103, %v2139
        %s2141 = sld [smem:[#allocation5 + $0x3a]]
        %v2142 = vstv %s2141
        %v2143 = vmul.f32 %v2142, %v2124
        %v2144 = vadd.f32 %v2107, %v2143
        %s2145 = sld [smem:[#allocation5 + $0x3b]]
        %v2146 = vstv %s2145
        %v2147 = vmul.f32 %v2146, %v2124
        %v2148 = vadd.f32 %v2111, %v2147
        %s2149 = sld [smem:[#allocation5 + $0x5d]]
        %v2150 = vstv %s2149
        %v2151 = vmul.f32 %v2150, %v2124
        %v2152 = vadd.f32 %v2115, %v2151
        %s2153 = sld [smem:[#allocation5 + $0x5e]]
        %v2154 = vstv %s2153
        %v2155 = vmul.f32 %v2154, %v2124
        %v2156 = vadd.f32 %v2119, %v2155
        %s2157 = sld [smem:[#allocation5 + $0x5f]]
        %v2158 = vstv %s2157
        %v2159 = vmul.f32 %v2158, %v2124
        %v2160 = vadd.f32 %v2123, %v2159
        %v2161 = vld [vmem:[%s543 + $0x21] sm:$0xff]
        %s2162 = sld [smem:[#allocation5 + $0x18]]
        %v2163 = vstv %s2162
        %v2164 = vmul.f32 %v2163, %v2161
        %v2165 = vadd.f32 %v2128, %v2164
        %s2166 = sld [smem:[#allocation5 + $0x19]]
        %v2167 = vstv %s2166
        %v2168 = vmul.f32 %v2167, %v2161
        %v2169 = vadd.f32 %v2132, %v2168
        %s2170 = sld [smem:[#allocation5 + $0x1a]]
        %v2171 = vstv %s2170
        %v2172 = vmul.f32 %v2171, %v2161
        %v2173 = vadd.f32 %v2136, %v2172
        %s2174 = sld [smem:[#allocation5 + $0x3c]]
        %v2175 = vstv %s2174
        %v2176 = vmul.f32 %v2175, %v2161
        %v2177 = vadd.f32 %v2140, %v2176
        %s2178 = sld [smem:[#allocation5 + $0x3d]]
        %v2179 = vstv %s2178
        %v2180 = vmul.f32 %v2179, %v2161
        %v2181 = vadd.f32 %v2144, %v2180
        %s2182 = sld [smem:[#allocation5 + $0x3e]]
        %v2183 = vstv %s2182
        %v2184 = vmul.f32 %v2183, %v2161
        %v2185 = vadd.f32 %v2148, %v2184
        %s2186 = sld [smem:[#allocation5 + $0x60]]
        %v2187 = vstv %s2186
        %v2188 = vmul.f32 %v2187, %v2161
        %v2189 = vadd.f32 %v2152, %v2188
        %s2190 = sld [smem:[#allocation5 + $0x61]]
        %v2191 = vstv %s2190
        %v2192 = vmul.f32 %v2191, %v2161
        %v2193 = vadd.f32 %v2156, %v2192
        %s2194 = sld [smem:[#allocation5 + $0x62]]
        %v2195 = vstv %s2194
        %v2196 = vmul.f32 %v2195, %v2161
        %v2197 = vadd.f32 %v2160, %v2196
        %v2198 = vld [vmem:[#allocation3 + $0x1f] sm:$0xff]
        %s2199 = sld [smem:[#allocation5 + $0x1b]]
        %v2200 = vstv %s2199
        %v2201 = vmul.f32 %v2200, %v2198
        %v2202 = vadd.f32 %v2165, %v2201
        %s2203 = sld [smem:[#allocation5 + $0x1c]]
        %v2204 = vstv %s2203
        %v2205 = vmul.f32 %v2204, %v2198
        %v2206 = vadd.f32 %v2169, %v2205
        %s2207 = sld [smem:[#allocation5 + $0x1d]]
        %v2208 = vstv %s2207
        %v2209 = vmul.f32 %v2208, %v2198
        %v2210 = vadd.f32 %v2173, %v2209
        %s2211 = sld [smem:[#allocation5 + $0x3f]]
        %v2212 = vstv %s2211
        %v2213 = vmul.f32 %v2212, %v2198
        %v2214 = vadd.f32 %v2177, %v2213
        %s2215 = sld [smem:[#allocation5 + $0x40]]
        %v2216 = vstv %s2215
        %v2217 = vmul.f32 %v2216, %v2198
        %v2218 = vadd.f32 %v2181, %v2217
        %s2219 = sld [smem:[#allocation5 + $0x41]]
        %v2220 = vstv %s2219
        %v2221 = vmul.f32 %v2220, %v2198
        %v2222 = vadd.f32 %v2185, %v2221
        %s2223 = sld [smem:[#allocation5 + $0x63]]
        %v2224 = vstv %s2223
        %v2225 = vmul.f32 %v2224, %v2198
        %v2226 = vadd.f32 %v2189, %v2225
        %s2227 = sld [smem:[#allocation5 + $0x64]]
        %v2228 = vstv %s2227
        %v2229 = vmul.f32 %v2228, %v2198
        %v2230 = vadd.f32 %v2193, %v2229
        %s2231 = sld [smem:[#allocation5 + $0x65]]
        %v2232 = vstv %s2231
        %v2233 = vmul.f32 %v2232, %v2198
        %v2234 = vadd.f32 %v2197, %v2233
        %v2235 = vld [vmem:[#allocation3 + $0x20] sm:$0xff]
        %s2236 = sld [smem:[#allocation5 + $0x1e]]
        %v2237 = vstv %s2236
        %v2238 = vmul.f32 %v2237, %v2235
        %v2239 = vadd.f32 %v2202, %v2238
        %s2240 = sld [smem:[#allocation5 + $0x1f]]
        %v2241 = vstv %s2240
        %v2242 = vmul.f32 %v2241, %v2235
        %v2243 = vadd.f32 %v2206, %v2242
        %s2244 = sld [smem:[#allocation5 + $0x20]]
        %v2245 = vstv %s2244
        %v2246 = vmul.f32 %v2245, %v2235
        %v2247 = vadd.f32 %v2210, %v2246
        %s2248 = sld [smem:[#allocation5 + $0x42]]
        %v2249 = vstv %s2248
        %v2250 = vmul.f32 %v2249, %v2235
        %v2251 = vadd.f32 %v2214, %v2250
        %s2252 = sld [smem:[#allocation5 + $0x43]]
        %v2253 = vstv %s2252
        %v2254 = vmul.f32 %v2253, %v2235
        %v2255 = vadd.f32 %v2218, %v2254
        %s2256 = sld [smem:[#allocation5 + $0x44]]
        %v2257 = vstv %s2256
        %v2258 = vmul.f32 %v2257, %v2235
        %v2259 = vadd.f32 %v2222, %v2258
        %s2260 = sld [smem:[#allocation5 + $0x66]]
        %v2261 = vstv %s2260
        %v2262 = vmul.f32 %v2261, %v2235
        %v2263 = vadd.f32 %v2226, %v2262
        %s2264 = sld [smem:[#allocation5 + $0x67]]
        %v2265 = vstv %s2264
        %v2266 = vmul.f32 %v2265, %v2235
        %v2267 = vadd.f32 %v2230, %v2266
        %s2268 = sld [smem:[#allocation5 + $0x68]]
        %v2269 = vstv %s2268
        %v2270 = vmul.f32 %v2269, %v2235
        %v2271 = vadd.f32 %v2234, %v2270
        %v2272 = vld [vmem:[#allocation3 + $0x21] sm:$0xff]
        %s2273 = sld [smem:[#allocation5 + $0x21]]
        %v2274 = vstv %s2273
        %v2275 = vmul.f32 %v2274, %v2272
        %v2276 = vadd.f32 %v2239, %v2275
        %s2277 = sld [smem:[#allocation5 + $0x22]]
        %v2278 = vstv %s2277
        %v2279 = vmul.f32 %v2278, %v2272
        %v2280 = vadd.f32 %v2243, %v2279
        %s2281 = sld [smem:[#allocation5 + $0x23]]
        %v2282 = vstv %s2281
        %v2283 = vmul.f32 %v2282, %v2272
        %v2284 = vadd.f32 %v2247, %v2283
        %s2285 = sld [smem:[#allocation5 + $0x45]]
        %v2286 = vstv %s2285
        %v2287 = vmul.f32 %v2286, %v2272
        %v2288 = vadd.f32 %v2251, %v2287
        %s2289 = sld [smem:[#allocation5 + $0x46]]
        %v2290 = vstv %s2289
        %v2291 = vmul.f32 %v2290, %v2272
        %v2292 = vadd.f32 %v2255, %v2291
        %s2293 = sld [smem:[#allocation5 + $0x47]]
        %v2294 = vstv %s2293
        %v2295 = vmul.f32 %v2294, %v2272
        %v2296 = vadd.f32 %v2259, %v2295
        %s2297 = sld [smem:[#allocation5 + $0x69]]
        %v2298 = vstv %s2297
        %v2299 = vmul.f32 %v2298, %v2272
        %v2300 = vadd.f32 %v2263, %v2299
        %s2301 = sld [smem:[#allocation5 + $0x6a]]
        %v2302 = vstv %s2301
        %v2303 = vmul.f32 %v2302, %v2272
        %v2304 = vadd.f32 %v2267, %v2303
        %s2305 = sld [smem:[#allocation5 + $0x6b]]
        %v2306 = vstv %s2305
        %v2307 = vmul.f32 %v2306, %v2272
        %v2308 = vadd.f32 %v2271, %v2307
        %2310 = vrot.lane.b32.xlu0 %v2276, 1
        %v2311 = vpop.permute.xlu0 %2310
        %v2313 = vsel %vm770, 0.0, %v2311
        %2315 = vrot.lane.b32.xlu0 %v2284, 127
        %v2316 = vpop.permute.xlu0 %2315
        %v2318 = vsel %vm776, %v2316, 0.0
        %v2319 = vadd.f32 %v2280, %v2313
        %v2320 = vadd.f32 %v2319, %v2318
        %v2321 = vsub.f32 0.0, %v2320
        %v2322 = vmul.f32 %v2321, 1.442695
        %v2323 = vpow.pop %v2322
        %v2324 = vadd.f32 %v2323, 1.0
        %v2325 = vrcp.pop %v2324
        %v2326 = vmul.f32 255.0, %v2325
        %v2327 = vmax.f32 %v2326, 0.0
        %v2328 = vmin.f32 %v2327, 255.0
        %2329 = vst [vmem:[%s162 + $0x18] sm:$0xff] %v2328
        %2331 = vrot.lane.b32.xlu0 %v2288, 1
        %v2332 = vpop.permute.xlu0 %2331
        %v2334 = vsel %vm770, 0.0, %v2332
        %2336 = vrot.lane.b32.xlu0 %v2296, 127
        %v2337 = vpop.permute.xlu0 %2336
        %v2339 = vsel %vm776, %v2337, 0.0
        %v2340 = vadd.f32 %v2292, %v2334
        %v2341 = vadd.f32 %v2340, %v2339
        %v2342 = vsub.f32 0.0, %v2341
        %v2343 = vmul.f32 %v2342, 1.442695
        %v2344 = vpow.pop %v2343
        %v2345 = vadd.f32 %v2344, 1.0
        %v2346 = vrcp.pop %v2345
        %v2347 = vmul.f32 255.0, %v2346
        %v2348 = vmax.f32 %v2347, 0.0
        %v2349 = vmin.f32 %v2348, 255.0
        %2350 = vst [vmem:[%s809 + $0x18] sm:$0xff] %v2349
        %2352 = vrot.lane.b32.xlu0 %v2300, 1
        %v2353 = vpop.permute.xlu0 %2352
        %v2355 = vsel %vm770, 0.0, %v2353
        %2357 = vrot.lane.b32.xlu0 %v2308, 127
        %v2358 = vpop.permute.xlu0 %2357
        %v2360 = vsel %vm776, %v2358, 0.0
        %v2361 = vadd.f32 %v2304, %v2355
        %v2362 = vadd.f32 %v2361, %v2360
        %v2363 = vsub.f32 0.0, %v2362
        %v2364 = vmul.f32 %v2363, 1.442695
        %v2365 = vpow.pop %v2364
        %v2366 = vadd.f32 %v2365, 1.0
        %v2367 = vrcp.pop %v2366
        %v2368 = vmul.f32 255.0, %v2367
        %v2369 = vmax.f32 %v2368, 0.0
        %v2370 = vmin.f32 %v2369, 255.0
        %2371 = vst [vmem:[%s831 + $0x18] sm:$0xff] %v2370
        %s2372 = sand.u32 %s84, 1
        %s2373 = scalar_lea.sflag [#allocation6], %s2372
        %s2374 = sand.u32 %s84, 1
        %s2375 = smul.addr %s2374, 96
        %s2376 = scalar_lea.vmem [#allocation10], %s2375
        // Predicated region
        $region57: #{tpu_custom_call.1} parent=27 // pred_check
          %p2377 = pneg %p94
        $region58: #{tpu_custom_call.1} parent=27 // pred_check_branch
          %2379 = sbr.rel (%p2377) target = $region60
        $region59: #{tpu_custom_call.1} parent=27 // pred_region
          #allocation23 [shape = 'u32[6]{0}', space=smem, size = 0x18, scoped, tag = 'DMA stride descriptor']
          %s2380 = smul.u32 4, %s25
          %s2382 = ssub.s32 1536, 1536
          %2383 = vsyncadd %s2373, %s2382
          %s2384 = smul.addr %s24, 24
          %s2385 = sadd.s32 %s2380, %s2384
          %s2386 = smul.addr %s2385, 128
          %s2387 = scalar_lea.hbm %s4, %s2386
          %s2389 = sshll.u32 1, 14
          %s2390 = sxor.u32 4294967295, %s2389
          %s2393 = sshll.u32 7, 18
          %s2394 = sxor.u32 4294967295, %s2393
          %s2395 = sand.u32 0, %s2394
          %s2397 = sor.u32 %s2395, 0
          %s2399 = sshll.u32 3, 24
          %s2400 = sxor.u32 4294967295, %s2399
          %s2401 = sand.u32 %s2397, %s2400
          %s2403 = sor.u32 %s2401, 0
          %s2404 = sshll.u32 %s2376, 4
          %s2405 = int_to_ptr.vmem [resolvable:$true] %s2404
          %2411 = sst [smem:[#allocation23]] 512
          %s2412 = scalar_lea.smem [#allocation23], 1
          %2413 = sst [smem:[%s2412]] 1024
          %s2414 = scalar_lea.smem [#allocation23], 2
          %2415 = sst [smem:[%s2414]] 4
          %s2416 = scalar_lea.smem [#allocation23], 3
          %2417 = sst [smem:[%s2416]] 128
          %s2418 = scalar_lea.smem [#allocation23], 4
          %2419 = sst [smem:[%s2418]] 128
          %s2420 = scalar_lea.smem [#allocation23], 5
          %2421 = sst [smem:[%s2420]] 8
          %2423 = dma.general %s2405, 1536, %s2387, %s2373, [#allocation22], [#allocation23], %s2403, 0
        $region60: #{tpu_custom_call.1} parent=27 // pred_fallthru
          _
      $region28: #{tpu_custom_call.1} parent=5 // pred_fallthru
        _
      %p2424 = scmp.le.s32.totalorder 2, %s15
      // Predicated region
      $region61: #{tpu_custom_call.1} parent=5 // pred_check
        %p2425 = pneg %p2424
      $region62: #{tpu_custom_call.1} parent=5 // pred_check_branch
        %2427 = sbr.rel (%p2425) target = $region64
      $region63: #{tpu_custom_call.1} parent=5 // pred_region
        %s2428 = ssub.s32 %s15, 2
        // Predicated region
        $region65: #{tpu_custom_call.1} parent=63 // pred_check
          %p2429 = pneg %p100
        $region66: #{tpu_custom_call.1} parent=63 // pred_check_branch
          %2431 = sbr.rel (%p2429) target = $region68
        $region67: #{tpu_custom_call.1} parent=63 // pred_region
          %s2432 = sand.u32 %s85, 1
          %s2433 = scalar_lea.sflag [#allocation6], %s2432
          %s2434 = sand.u32 %s85, 1
          %s2435 = smul.addr %s2434, 96
          %s2436 = scalar_lea.vmem [#allocation10], %s2435
          %2437 = dma.done %s2433, 1536
        $region68: #{tpu_custom_call.1} parent=63 // pred_fallthru
          _
      $region64: #{tpu_custom_call.1} parent=5 // pred_fallthru
        _
    $region6: #{tpu_custom_call.1} parent=1 // loop_footer
      %s19 = sadd.s32 1, %s15
    $region7: #{tpu_custom_call.1} parent=1 // loop_footer_branch
      %14 = sbr.rel target = $region3
    $region8: #{tpu_custom_call.1} parent=1 // loop_exit
      _
    %2438 = vsyncpa [#allocation6], 1
    %s2439 = scalar_lea.sflag [#allocation6], 1
    %2440 = vsyncpa %s2439, 1
    %2441 = vsyncpa [#allocation7], 1
    %s2442 = scalar_lea.sflag [#allocation7], 1
    %2443 = vsyncpa %s2442, 1
    %2444 = vsyncpa [#allocation8], 1
    %s2445 = scalar_lea.sflag [#allocation8], 1
    %2446 = vsyncpa %s2445, 1
  %2447 = vsyncmov [#allocation4]
  %s2448 = vpop.sfrf %2447
  %p2449 = scmp.eq.s32.totalorder %s2448, 0
  %p2450 = pneg %p2449
  %2452 = shalt.err (%p2450)
  %s2453 = scalar_lea.sflag [#allocation4], 1
  %2454 = vsyncmov %s2453
  %s2455 = vpop.sfrf %2454
  %p2456 = scmp.eq.s32.totalorder %s2455, 0
  %p2457 = pneg %p2456
  %2459 = shalt.err (%p2457)
  %s2460 = scalar_lea.sflag [#allocation4], 2
  %2461 = vsyncmov %s2460
  %s2462 = vpop.sfrf %2461
  %p2463 = scmp.eq.s32.totalorder %s2462, 0
  %p2464 = pneg %p2463
  %2466 = shalt.err (%p2464)
  %s2467 = scalar_lea.sflag [#allocation4], 3
  %2468 = vsyncmov %s2467
  %s2469 = vpop.sfrf %2468
  %p2470 = scmp.eq.s32.totalorder %s2469, 0
  %p2471 = pneg %p2470
  %2473 = shalt.err (%p2471)
  %s2474 = scalar_lea.sflag [#allocation4], 4
  %2475 = vsyncmov %s2474
  %s2476 = vpop.sfrf %2475
  %p2477 = scmp.eq.s32.totalorder %s2476, 0
  %p2478 = pneg %p2477
  %2480 = shalt.err (%p2478)
  %s2481 = scalar_lea.sflag [#allocation4], 5
  %2482 = vsyncmov %s2481
  %s2483 = vpop.sfrf %2482
  %p2484 = scmp.eq.s32.totalorder %s2483, 0
  %p2485 = pneg %p2484
  %2487 = shalt.err (%p2485)

</llo_original>
